<compile_context>
chip_gen: v5e
topology: v5e:2x2
jax: 0.10.0
libtpu: 0.0.40
codegen_flags: <defaults>
</compile_context>

<pallas_src>
import functools

import jax
import jax.numpy as jnp
from jax.experimental import pallas as pl
from jax.experimental.pallas import tpu as pltpu

# 3x3 tap offsets in dy*3+dx order, matching w.reshape(9, Cin, Cout) flattening.
_TAPS = tuple((dy - 1, dx - 1) for dy in range(3) for dx in range(3))


def _silu(x):
    return x * jax.nn.sigmoid(x)


def _readout_kernel(mask_ref, x_ref, w1_ref, b1_ref, w2_ref, b2_ref,
                    w3_ref, b3_ref, o_ref, *, W):
    """One grid step = B_blk images.

    Layouts (channels on sublanes, flattened pixels on lanes):
      mask_ref: (8, BHW)  f32   per-tap validity, _TAPS order with center skipped
      x_ref   : (Cin, BHW) bf16
      w1_ref  : (9*C1, Cin) bf16  tap-major stacked, each tap already (out, in)
      w2_ref  : (9*C2, C1) bf16
      w3_ref  : (Cout, C2) bf16
      b*_ref  : (C, 1) f32
      o_ref   : (Cout, BHW) f32
    """
    BHW = x_ref.shape[1]
    masks = mask_ref[...]                       # (8, BHW) f32, loaded once

    def conv3x3(src_bf16, w_ref, b_ref):
        cout = b_ref.shape[0]
        # Single stacked MXU matmul for all 9 taps, f32 accumulation.
        p_all = jnp.dot(w_ref[...], src_bf16,
                        preferred_element_type=jnp.float32)   # (9*cout, BHW)
        acc = None
        mrow = 0
        for t, (a, b) in enumerate(_TAPS):
            # 8-sublane aligned row slice (cout is a multiple of 8) -> free.
            p = p_all[t * cout:(t + 1) * cout, :]
            if (a, b) != (0, 0):
                s = a * W + b        # out[:, j] needs p[:, j + s] (zero if invalid)
                p = pltpu.roll(p, shift=(-s) % BHW, axis=1)
                p = p * masks[mrow:mrow + 1, :]      # zero invalid / wrapped taps
                mrow += 1
            acc = p if acc is None else acc + p
        return acc + b_ref[...]

    x = x_ref[...]                                           # bf16
    h1 = _silu(conv3x3(x, w1_ref, b1_ref)).astype(jnp.bfloat16)    # (C1, BHW)
    h2 = _silu(conv3x3(h1, w2_ref, b2_ref)).astype(jnp.bfloat16)   # (C2, BHW)
    # conv3 is 1x1: single matmul, lane-dense result.
    out = jnp.dot(w3_ref[...], h2, preferred_element_type=jnp.float32) + b3_ref[...]
    o_ref[...] = out.astype(o_ref.dtype)


def _pick_block_batch(N, HW):
    """Largest divisor B of N with B*HW % 128 == 0, grid length N//B even (>=2)
    when possible (v7x dual-TC), and B*HW capped ~4096 lanes (VMEM driver is the
    (9*C1, BHW) f32 stacked-matmul intermediate)."""
    target_cols = 4096
    cands = [b for b in range(1, N + 1)
             if N % b == 0 and (b * HW) % 128 == 0]
    assert cands, "need some batch block B with N % B == 0 and B*H*W % 128 == 0"
    even = [b for b in cands if (N // b) >= 2 and (N // b) % 2 == 0]
    pool = even if even else cands
    under = [b for b in pool if b * HW <= target_cols]
    return max(under) if under else min(pool)


def readout_head_dim_reducer(x_nchw, params, block_batch=None):
    """x_nchw: (N, hidden_dim_1*2, H, W) float32. Returns (N, output_channels, H, W).

    params = (w1 HWIO (3,3,Cin,C1), b1 (1,C1),
              w2 HWIO (3,3,C1,C2),  b2 (1,C2),
              w3 (C2,Cout),         b3 (1,Cout))
    """
    w1, b1, w2, b2, w3, b3 = params
    N, Cin, H, W = x_nchw.shape
    HW = H * W
    C1 = w1.shape[-1]
    C2 = w2.shape[-1]
    Cout = w3.shape[-1]

    if block_batch is None:
        block_batch = _pick_block_batch(N, HW)
    B = block_batch
    assert B > 0 and N % B == 0 and (B * HW) % 128 == 0, \
        "need a batch block B with N % B == 0 and B*H*W a multiple of 128"
    BHW = B * HW

    # ---- layout glue (plain JAX, outside the kernel) ----
    # channels -> sublanes, pixels (batch-major, row-major) -> lanes; bf16 operands.
    xt = jnp.transpose(x_nchw.astype(jnp.bfloat16).reshape(N, Cin, HW),
                       (1, 0, 2)).reshape(Cin, N * HW)
    w1s = jnp.transpose(w1.reshape(9, Cin, C1), (0, 2, 1)) \
             .reshape(9 * C1, Cin).astype(jnp.bfloat16)        # stacked tap-major
    w2s = jnp.transpose(w2.reshape(9, C1, C2), (0, 2, 1)) \
             .reshape(9 * C2, C1).astype(jnp.bfloat16)
    w3t = jnp.transpose(w3, (1, 0)).astype(jnp.bfloat16)       # (Cout, C2)
    b1t = b1.reshape(C1, 1).astype(jnp.float32)
    b2t = b2.reshape(C2, 1).astype(jnp.float32)
    b3t = b3.reshape(Cout, 1).astype(jnp.float32)

    # Precomputed per-tap boundary masks (same for every grid step), _TAPS order
    # with the center tap skipped.  f32 so the kernel applies them with one vmul.
    pix = jnp.arange(BHW, dtype=jnp.int32) % HW
    py = pix // W
    px = pix % W
    rows = []
    for (a, b) in _TAPS:
        if (a, b) == (0, 0):
            continue
        ok = (py + a >= 0) & (py + a < H) & (px + b >= 0) & (px + b < W)
        rows.append(ok)
    masks = jnp.stack(rows, axis=0).astype(jnp.float32)        # (8, BHW)

    out_flat = pl.pallas_call(
        functools.partial(_readout_kernel, W=W),
        out_shape=jax.ShapeDtypeStruct((Cout, N * HW), jnp.float32),
        grid_spec=pltpu.PrefetchScalarGridSpec(
            num_scalar_prefetch=0,
            grid=(N // B,),
            in_specs=[
                pl.BlockSpec((8, BHW), lambda g: (0, 0)),          # masks
                pl.BlockSpec((Cin, BHW), lambda g: (0, g)),        # x
                pl.BlockSpec((9 * C1, Cin), lambda g: (0, 0)),     # w1 stacked
                pl.BlockSpec((C1, 1), lambda g: (0, 0)),           # b1
                pl.BlockSpec((9 * C2, C1), lambda g: (0, 0)),      # w2 stacked
                pl.BlockSpec((C2, 1), lambda g: (0, 0)),           # b2
                pl.BlockSpec((Cout, C2), lambda g: (0, 0)),        # w3
                pl.BlockSpec((Cout, 1), lambda g: (0, 0)),         # b3
            ],
            out_specs=pl.BlockSpec((Cout, BHW), lambda g: (0, g)),
        ),
        compiler_params=pltpu.CompilerParams(
            dimension_semantics=("parallel",),     # batch blocks are independent
            vmem_limit_bytes=64 * 1024 * 1024),
    )(masks, xt, w1s, b1t, w2s, b2t, w3t, b3t)

    # (Cout, N*HW) -> (N, Cout, H, W)
    return jnp.transpose(out_flat.reshape(Cout, N, H, W), (1, 0, 2, 3))


def _ref_forward(x_nchw, params):
    """Pure-JAX f32 reference (lax conv) for correctness checking."""
    w1, b1, w2, b2, w3, b3 = params
    x = jnp.transpose(x_nchw, (0, 2, 3, 1))
    dn1 = jax.lax.conv_dimension_numbers(x.shape, w1.shape, ('NHWC', 'HWIO', 'NHWC'))
    h = jax.lax.conv_general_dilated(x, w1, (1, 1), 'SAME', dimension_numbers=dn1,
                                     precision=jax.lax.Precision.HIGHEST)
    h = jax.nn.silu(h + b1.reshape(1, 1, 1, -1))
    dn2 = jax.lax.conv_dimension_numbers(h.shape, w2.shape, ('NHWC', 'HWIO', 'NHWC'))
    h = jax.lax.conv_general_dilated(h, w2, (1, 1), 'SAME', dimension_numbers=dn2,
                                     precision=jax.lax.Precision.HIGHEST)
    h = jax.nn.silu(h + b2.reshape(1, 1, 1, -1))
    h = jnp.einsum('nhwc,co->nhwo', h, w3,
                   precision=jax.lax.Precision.HIGHEST) + b3.reshape(1, 1, 1, -1)
    return jnp.transpose(h, (0, 3, 1, 2))


if __name__ == "__main__":
    # Small config: hidden_dim_1=64, hidden_dim_2=32, output_channels=1.
    # forward() consumes hidden_dim_1*2 = 128 input channels.
    N, H, W = 4, 16, 16
    HID1, HID2, COUT = 64, 32, 1
    CIN = HID1 * 2

    key = jax.random.PRNGKey(0)
    kx, k1, k2, k3, kb1, kb2, kb3 = jax.random.split(key, 7)

    x = jax.random.normal(kx, (N, CIN, H, W), jnp.float32)

    # Deterministic synthetic parameters (HWIO layout for conv weights).
    w1 = jax.random.normal(k1, (3, 3, CIN, HID1), jnp.float32) * 0.05
    b1 = jax.random.normal(kb1, (1, HID1), jnp.float32) * 0.05
    w2 = jax.random.normal(k2, (3, 3, HID1, HID2), jnp.float32) * 0.05
    b2 = jax.random.normal(kb2, (1, HID2), jnp.float32) * 0.05
    w3 = jax.random.normal(k3, (HID2, COUT), jnp.float32) * 0.05
    b3 = jax.random.normal(kb3, (1, COUT), jnp.float32) * 0.05
    params = (w1, b1, w2, b2, w3, b3)

    # Default block selection picks B=2 here (grid of 2 even "parallel" steps).
    out = readout_head_dim_reducer(x, params)
    out = jax.block_until_ready(out)

    ref = jax.block_until_ready(_ref_forward(x, params))
    assert out.shape == (N, COUT, H, W)
    # bf16 MXU inputs with f32 accumulation -> loosened tolerance vs f32 reference
    # (expected quantization slop, per review), still far below any algorithmic error.
    assert jnp.allclose(out, ref, rtol=5e-2, atol=5e-2), \
        f"max abs err = {jnp.max(jnp.abs(out - ref))}"

    print("KERNEL_OK")
</pallas_src>

<mosaic_0001>
module attributes {stable_mosaic.version = 11 : i64} {
  func.func @_readout_kernel(%arg0: i32, %arg1: memref<8x512xf32, #tpu.memory_space<vmem>>, %arg2: memref<128x512xbf16, #tpu.memory_space<vmem>>, %arg3: memref<576x128xbf16, #tpu.memory_space<vmem>>, %arg4: memref<64x1xf32, #tpu.memory_space<vmem>>, %arg5: memref<288x64xbf16, #tpu.memory_space<vmem>>, %arg6: memref<32x1xf32, #tpu.memory_space<vmem>>, %arg7: memref<1x32xbf16, #tpu.memory_space<vmem>>, %arg8: memref<1x1xf32, #tpu.memory_space<vmem>>, %arg9: memref<1x512xf32, #tpu.memory_space<vmem>>) attributes {dimension_semantics = [#tpu.dimension_semantics<parallel>], iteration_bounds = array<i64: 2>, scalar_prefetch = 0 : i64, scratch_operands = 0 : i64, tpu.core_type = #tpu.core_type<tc>, window_params = [{pipeline_mode = #tpu.pipeline_mode<synchronous>, transform_indices = @transform_0, window_bounds = array<i64: 8, 512>}, {transform_indices = @transform_1, window_bounds = array<i64: 128, 512>}, {pipeline_mode = #tpu.pipeline_mode<synchronous>, transform_indices = @transform_2, window_bounds = array<i64: 576, 128>}, {pipeline_mode = #tpu.pipeline_mode<synchronous>, transform_indices = @transform_3, window_bounds = array<i64: 64, 1>}, {pipeline_mode = #tpu.pipeline_mode<synchronous>, transform_indices = @transform_4, window_bounds = array<i64: 288, 64>}, {pipeline_mode = #tpu.pipeline_mode<synchronous>, transform_indices = @transform_5, window_bounds = array<i64: 32, 1>}, {pipeline_mode = #tpu.pipeline_mode<synchronous>, transform_indices = @transform_6, window_bounds = array<i64: 1, 32>}, {pipeline_mode = #tpu.pipeline_mode<synchronous>, transform_indices = @transform_7, window_bounds = array<i64: 1, 1>}, {transform_indices = @transform_8, window_bounds = array<i64: 1, 512>}]} {
    %c0 = arith.constant 0 : index
    %c0_0 = arith.constant 0 : index
    %0 = vector.load %arg1[%c0, %c0_0] : memref<8x512xf32, #tpu.memory_space<vmem>>, vector<8x512xf32>
    %c0_1 = arith.constant 0 : index
    %c0_2 = arith.constant 0 : index
    %1 = vector.load %arg2[%c0_1, %c0_2] : memref<128x512xbf16, #tpu.memory_space<vmem>>, vector<128x512xbf16>
    %c0_3 = arith.constant 0 : index
    %c0_4 = arith.constant 0 : index
    %2 = vector.load %arg3[%c0_3, %c0_4] : memref<576x128xbf16, #tpu.memory_space<vmem>>, vector<576x128xbf16>
    %cst = arith.constant dense<0.000000e+00> : vector<576x512xf32>
    %3 = tpu.matmul %2, %1, %cst {dimension_numbers = #tpu.dot_dimension_numbers<[1], [0], [0], [1], [0, 0, 1, 1], [], []>} : vector<576x128xbf16>, vector<128x512xbf16>, vector<576x512xf32> -> vector<576x512xf32>
    %4 = vector.extract_strided_slice %3 {offsets = [0, 0], sizes = [64, 512], strides = [1, 1]} : vector<576x512xf32> to vector<64x512xf32>
    %c17_i32 = arith.constant 17 : i32
    %5 = tpu.dynamic_rotate %4 by %c17_i32 dim 1 : vector<64x512xf32>, i32 -> vector<64x512xf32>
    %6 = vector.extract_strided_slice %0 {offsets = [0, 0], sizes = [1, 512], strides = [1, 1]} : vector<8x512xf32> to vector<1x512xf32>
    %7 = vector.broadcast %6 : vector<1x512xf32> to vector<64x512xf32>
    %8 = arith.mulf %5, %7 : vector<64x512xf32>
    %9 = vector.extract_strided_slice %3 {offsets = [64, 0], sizes = [64, 512], strides = [1, 1]} : vector<576x512xf32> to vector<64x512xf32>
    %c16_i32 = arith.constant 16 : i32
    %10 = tpu.dynamic_rotate %9 by %c16_i32 dim 1 : vector<64x512xf32>, i32 -> vector<64x512xf32>
    %11 = vector.extract_strided_slice %0 {offsets = [1, 0], sizes = [1, 512], strides = [1, 1]} : vector<8x512xf32> to vector<1x512xf32>
    %12 = vector.broadcast %11 : vector<1x512xf32> to vector<64x512xf32>
    %13 = arith.mulf %10, %12 : vector<64x512xf32>
    %14 = arith.addf %8, %13 : vector<64x512xf32>
    %15 = vector.extract_strided_slice %3 {offsets = [128, 0], sizes = [64, 512], strides = [1, 1]} : vector<576x512xf32> to vector<64x512xf32>
    %c15_i32 = arith.constant 15 : i32
    %16 = tpu.dynamic_rotate %15 by %c15_i32 dim 1 : vector<64x512xf32>, i32 -> vector<64x512xf32>
    %17 = vector.extract_strided_slice %0 {offsets = [2, 0], sizes = [1, 512], strides = [1, 1]} : vector<8x512xf32> to vector<1x512xf32>
    %18 = vector.broadcast %17 : vector<1x512xf32> to vector<64x512xf32>
    %19 = arith.mulf %16, %18 : vector<64x512xf32>
    %20 = arith.addf %14, %19 : vector<64x512xf32>
    %21 = vector.extract_strided_slice %3 {offsets = [192, 0], sizes = [64, 512], strides = [1, 1]} : vector<576x512xf32> to vector<64x512xf32>
    %c1_i32 = arith.constant 1 : i32
    %22 = tpu.dynamic_rotate %21 by %c1_i32 dim 1 : vector<64x512xf32>, i32 -> vector<64x512xf32>
    %23 = vector.extract_strided_slice %0 {offsets = [3, 0], sizes = [1, 512], strides = [1, 1]} : vector<8x512xf32> to vector<1x512xf32>
    %24 = vector.broadcast %23 : vector<1x512xf32> to vector<64x512xf32>
    %25 = arith.mulf %22, %24 : vector<64x512xf32>
    %26 = arith.addf %20, %25 : vector<64x512xf32>
    %27 = vector.extract_strided_slice %3 {offsets = [256, 0], sizes = [64, 512], strides = [1, 1]} : vector<576x512xf32> to vector<64x512xf32>
    %28 = arith.addf %26, %27 : vector<64x512xf32>
    %29 = vector.extract_strided_slice %3 {offsets = [320, 0], sizes = [64, 512], strides = [1, 1]} : vector<576x512xf32> to vector<64x512xf32>
    %c511_i32 = arith.constant 511 : i32
    %30 = tpu.dynamic_rotate %29 by %c511_i32 dim 1 : vector<64x512xf32>, i32 -> vector<64x512xf32>
    %31 = vector.extract_strided_slice %0 {offsets = [4, 0], sizes = [1, 512], strides = [1, 1]} : vector<8x512xf32> to vector<1x512xf32>
    %32 = vector.broadcast %31 : vector<1x512xf32> to vector<64x512xf32>
    %33 = arith.mulf %30, %32 : vector<64x512xf32>
    %34 = arith.addf %28, %33 : vector<64x512xf32>
    %35 = vector.extract_strided_slice %3 {offsets = [384, 0], sizes = [64, 512], strides = [1, 1]} : vector<576x512xf32> to vector<64x512xf32>
    %c497_i32 = arith.constant 497 : i32
    %36 = tpu.dynamic_rotate %35 by %c497_i32 dim 1 : vector<64x512xf32>, i32 -> vector<64x512xf32>
    %37 = vector.extract_strided_slice %0 {offsets = [5, 0], sizes = [1, 512], strides = [1, 1]} : vector<8x512xf32> to vector<1x512xf32>
    %38 = vector.broadcast %37 : vector<1x512xf32> to vector<64x512xf32>
    %39 = arith.mulf %36, %38 : vector<64x512xf32>
    %40 = arith.addf %34, %39 : vector<64x512xf32>
    %41 = vector.extract_strided_slice %3 {offsets = [448, 0], sizes = [64, 512], strides = [1, 1]} : vector<576x512xf32> to vector<64x512xf32>
    %c496_i32 = arith.constant 496 : i32
    %42 = tpu.dynamic_rotate %41 by %c496_i32 dim 1 : vector<64x512xf32>, i32 -> vector<64x512xf32>
    %43 = vector.extract_strided_slice %0 {offsets = [6, 0], sizes = [1, 512], strides = [1, 1]} : vector<8x512xf32> to vector<1x512xf32>
    %44 = vector.broadcast %43 : vector<1x512xf32> to vector<64x512xf32>
    %45 = arith.mulf %42, %44 : vector<64x512xf32>
    %46 = arith.addf %40, %45 : vector<64x512xf32>
    %47 = vector.extract_strided_slice %3 {offsets = [512, 0], sizes = [64, 512], strides = [1, 1]} : vector<576x512xf32> to vector<64x512xf32>
    %c495_i32 = arith.constant 495 : i32
    %48 = tpu.dynamic_rotate %47 by %c495_i32 dim 1 : vector<64x512xf32>, i32 -> vector<64x512xf32>
    %49 = vector.extract_strided_slice %0 {offsets = [7, 0], sizes = [1, 512], strides = [1, 1]} : vector<8x512xf32> to vector<1x512xf32>
    %50 = vector.broadcast %49 : vector<1x512xf32> to vector<64x512xf32>
    %51 = arith.mulf %48, %50 : vector<64x512xf32>
    %52 = arith.addf %46, %51 : vector<64x512xf32>
    %c0_5 = arith.constant 0 : index
    %c0_6 = arith.constant 0 : index
    %53 = vector.load %arg4[%c0_5, %c0_6] : memref<64x1xf32, #tpu.memory_space<vmem>>, vector<64x1xf32>
    %54 = vector.broadcast %53 : vector<64x1xf32> to vector<64x512xf32>
    %55 = arith.addf %52, %54 : vector<64x512xf32>
    %56 = arith.negf %55 : vector<64x512xf32>
    %57 = math.exp %56 : vector<64x512xf32>
    %cst_7 = arith.constant 1.000000e+00 : f32
    %58 = vector.broadcast %cst_7 : f32 to vector<64x512xf32>
    %59 = arith.addf %58, %57 : vector<64x512xf32>
    %60 = arith.divf %58, %59 : vector<64x512xf32>
    %61 = arith.mulf %55, %60 : vector<64x512xf32>
    %62 = arith.truncf %61 : vector<64x512xf32> to vector<64x512xbf16>
    %c0_8 = arith.constant 0 : index
    %c0_9 = arith.constant 0 : index
    %63 = vector.load %arg5[%c0_8, %c0_9] : memref<288x64xbf16, #tpu.memory_space<vmem>>, vector<288x64xbf16>
    %cst_10 = arith.constant dense<0.000000e+00> : vector<288x512xf32>
    %64 = tpu.matmul %63, %62, %cst_10 {dimension_numbers = #tpu.dot_dimension_numbers<[1], [0], [0], [1], [0, 0, 1, 1], [], []>} : vector<288x64xbf16>, vector<64x512xbf16>, vector<288x512xf32> -> vector<288x512xf32>
    %65 = vector.extract_strided_slice %64 {offsets = [0, 0], sizes = [32, 512], strides = [1, 1]} : vector<288x512xf32> to vector<32x512xf32>
    %c17_i32_11 = arith.constant 17 : i32
    %66 = tpu.dynamic_rotate %65 by %c17_i32_11 dim 1 : vector<32x512xf32>, i32 -> vector<32x512xf32>
    %67 = vector.extract_strided_slice %0 {offsets = [0, 0], sizes = [1, 512], strides = [1, 1]} : vector<8x512xf32> to vector<1x512xf32>
    %68 = vector.broadcast %67 : vector<1x512xf32> to vector<32x512xf32>
    %69 = arith.mulf %66, %68 : vector<32x512xf32>
    %70 = vector.extract_strided_slice %64 {offsets = [32, 0], sizes = [32, 512], strides = [1, 1]} : vector<288x512xf32> to vector<32x512xf32>
    %c16_i32_12 = arith.constant 16 : i32
    %71 = tpu.dynamic_rotate %70 by %c16_i32_12 dim 1 : vector<32x512xf32>, i32 -> vector<32x512xf32>
    %72 = vector.extract_strided_slice %0 {offsets = [1, 0], sizes = [1, 512], strides = [1, 1]} : vector<8x512xf32> to vector<1x512xf32>
    %73 = vector.broadcast %72 : vector<1x512xf32> to vector<32x512xf32>
    %74 = arith.mulf %71, %73 : vector<32x512xf32>
    %75 = arith.addf %69, %74 : vector<32x512xf32>
    %76 = vector.extract_strided_slice %64 {offsets = [64, 0], sizes = [32, 512], strides = [1, 1]} : vector<288x512xf32> to vector<32x512xf32>
    %c15_i32_13 = arith.constant 15 : i32
    %77 = tpu.dynamic_rotate %76 by %c15_i32_13 dim 1 : vector<32x512xf32>, i32 -> vector<32x512xf32>
    %78 = vector.extract_strided_slice %0 {offsets = [2, 0], sizes = [1, 512], strides = [1, 1]} : vector<8x512xf32> to vector<1x512xf32>
    %79 = vector.broadcast %78 : vector<1x512xf32> to vector<32x512xf32>
    %80 = arith.mulf %77, %79 : vector<32x512xf32>
    %81 = arith.addf %75, %80 : vector<32x512xf32>
    %82 = vector.extract_strided_slice %64 {offsets = [96, 0], sizes = [32, 512], strides = [1, 1]} : vector<288x512xf32> to vector<32x512xf32>
    %c1_i32_14 = arith.constant 1 : i32
    %83 = tpu.dynamic_rotate %82 by %c1_i32_14 dim 1 : vector<32x512xf32>, i32 -> vector<32x512xf32>
    %84 = vector.extract_strided_slice %0 {offsets = [3, 0], sizes = [1, 512], strides = [1, 1]} : vector<8x512xf32> to vector<1x512xf32>
    %85 = vector.broadcast %84 : vector<1x512xf32> to vector<32x512xf32>
    %86 = arith.mulf %83, %85 : vector<32x512xf32>
    %87 = arith.addf %81, %86 : vector<32x512xf32>
    %88 = vector.extract_strided_slice %64 {offsets = [128, 0], sizes = [32, 512], strides = [1, 1]} : vector<288x512xf32> to vector<32x512xf32>
    %89 = arith.addf %87, %88 : vector<32x512xf32>
    %90 = vector.extract_strided_slice %64 {offsets = [160, 0], sizes = [32, 512], strides = [1, 1]} : vector<288x512xf32> to vector<32x512xf32>
    %c511_i32_15 = arith.constant 511 : i32
    %91 = tpu.dynamic_rotate %90 by %c511_i32_15 dim 1 : vector<32x512xf32>, i32 -> vector<32x512xf32>
    %92 = vector.extract_strided_slice %0 {offsets = [4, 0], sizes = [1, 512], strides = [1, 1]} : vector<8x512xf32> to vector<1x512xf32>
    %93 = vector.broadcast %92 : vector<1x512xf32> to vector<32x512xf32>
    %94 = arith.mulf %91, %93 : vector<32x512xf32>
    %95 = arith.addf %89, %94 : vector<32x512xf32>
    %96 = vector.extract_strided_slice %64 {offsets = [192, 0], sizes = [32, 512], strides = [1, 1]} : vector<288x512xf32> to vector<32x512xf32>
    %c497_i32_16 = arith.constant 497 : i32
    %97 = tpu.dynamic_rotate %96 by %c497_i32_16 dim 1 : vector<32x512xf32>, i32 -> vector<32x512xf32>
    %98 = vector.extract_strided_slice %0 {offsets = [5, 0], sizes = [1, 512], strides = [1, 1]} : vector<8x512xf32> to vector<1x512xf32>
    %99 = vector.broadcast %98 : vector<1x512xf32> to vector<32x512xf32>
    %100 = arith.mulf %97, %99 : vector<32x512xf32>
    %101 = arith.addf %95, %100 : vector<32x512xf32>
    %102 = vector.extract_strided_slice %64 {offsets = [224, 0], sizes = [32, 512], strides = [1, 1]} : vector<288x512xf32> to vector<32x512xf32>
    %c496_i32_17 = arith.constant 496 : i32
    %103 = tpu.dynamic_rotate %102 by %c496_i32_17 dim 1 : vector<32x512xf32>, i32 -> vector<32x512xf32>
    %104 = vector.extract_strided_slice %0 {offsets = [6, 0], sizes = [1, 512], strides = [1, 1]} : vector<8x512xf32> to vector<1x512xf32>
    %105 = vector.broadcast %104 : vector<1x512xf32> to vector<32x512xf32>
    %106 = arith.mulf %103, %105 : vector<32x512xf32>
    %107 = arith.addf %101, %106 : vector<32x512xf32>
    %108 = vector.extract_strided_slice %64 {offsets = [256, 0], sizes = [32, 512], strides = [1, 1]} : vector<288x512xf32> to vector<32x512xf32>
    %c495_i32_18 = arith.constant 495 : i32
    %109 = tpu.dynamic_rotate %108 by %c495_i32_18 dim 1 : vector<32x512xf32>, i32 -> vector<32x512xf32>
    %110 = vector.extract_strided_slice %0 {offsets = [7, 0], sizes = [1, 512], strides = [1, 1]} : vector<8x512xf32> to vector<1x512xf32>
    %111 = vector.broadcast %110 : vector<1x512xf32> to vector<32x512xf32>
    %112 = arith.mulf %109, %111 : vector<32x512xf32>
    %113 = arith.addf %107, %112 : vector<32x512xf32>
    %c0_19 = arith.constant 0 : index
    %c0_20 = arith.constant 0 : index
    %114 = vector.load %arg6[%c0_19, %c0_20] : memref<32x1xf32, #tpu.memory_space<vmem>>, vector<32x1xf32>
    %115 = vector.broadcast %114 : vector<32x1xf32> to vector<32x512xf32>
    %116 = arith.addf %113, %115 : vector<32x512xf32>
    %117 = arith.negf %116 : vector<32x512xf32>
    %118 = math.exp %117 : vector<32x512xf32>
    %cst_21 = arith.constant 1.000000e+00 : f32
    %119 = vector.broadcast %cst_21 : f32 to vector<32x512xf32>
    %120 = arith.addf %119, %118 : vector<32x512xf32>
    %121 = arith.divf %119, %120 : vector<32x512xf32>
    %122 = arith.mulf %116, %121 : vector<32x512xf32>
    %123 = arith.truncf %122 : vector<32x512xf32> to vector<32x512xbf16>
    %c0_22 = arith.constant 0 : index
    %c0_23 = arith.constant 0 : index
    %124 = vector.load %arg7[%c0_22, %c0_23] : memref<1x32xbf16, #tpu.memory_space<vmem>>, vector<1x32xbf16>
    %cst_24 = arith.constant dense<0.000000e+00> : vector<1x512xf32>
    %125 = tpu.matmul %124, %123, %cst_24 {dimension_numbers = #tpu.dot_dimension_numbers<[1], [0], [0], [1], [0, 0, 1, 1], [], []>} : vector<1x32xbf16>, vector<32x512xbf16>, vector<1x512xf32> -> vector<1x512xf32>
    %c0_25 = arith.constant 0 : index
    %c0_26 = arith.constant 0 : index
    %126 = vector.load %arg8[%c0_25, %c0_26] : memref<1x1xf32, #tpu.memory_space<vmem>>, vector<1x1xf32>
    %127 = vector.broadcast %126 : vector<1x1xf32> to vector<1x512xf32>
    %128 = arith.addf %125, %127 : vector<1x512xf32>
    %c0_27 = arith.constant 0 : index
    %c0_28 = arith.constant 0 : index
    %129 = vector.load %arg9[%c0_27, %c0_28] : memref<1x512xf32, #tpu.memory_space<vmem>>, vector<1x512xf32>
    tpu.vector_store %arg9[%c0_27, %c0_28], %128 {strides = array<i32>} : memref<1x512xf32, #tpu.memory_space<vmem>>, vector<1x512xf32>,
    return
  }
  func.func @transform_0(%arg0: i32) -> (i32, i32) {
    %c0_i32 = arith.constant 0 : i32
    %c0_i32_0 = arith.constant 0 : i32
    %c0_i32_1 = arith.constant 0 : i32
    return %c0_i32, %c0_i32_0 : i32, i32
  }
  func.func @transform_1(%arg0: i32) -> (i32, i32) {
    %c0_i32 = arith.constant 0 : i32
    %c0_i32_0 = arith.constant 0 : i32
    return %c0_i32, %arg0 : i32, i32
  }
  func.func @transform_2(%arg0: i32) -> (i32, i32) {
    %c0_i32 = arith.constant 0 : i32
    %c0_i32_0 = arith.constant 0 : i32
    %c0_i32_1 = arith.constant 0 : i32
    return %c0_i32, %c0_i32_0 : i32, i32
  }
  func.func @transform_3(%arg0: i32) -> (i32, i32) {
    %c0_i32 = arith.constant 0 : i32
    %c0_i32_0 = arith.constant 0 : i32
    %c0_i32_1 = arith.constant 0 : i32
    return %c0_i32, %c0_i32_0 : i32, i32
  }
  func.func @transform_4(%arg0: i32) -> (i32, i32) {
    %c0_i32 = arith.constant 0 : i32
    %c0_i32_0 = arith.constant 0 : i32
    %c0_i32_1 = arith.constant 0 : i32
    return %c0_i32, %c0_i32_0 : i32, i32
  }
  func.func @transform_5(%arg0: i32) -> (i32, i32) {
    %c0_i32 = arith.constant 0 : i32
    %c0_i32_0 = arith.constant 0 : i32
    %c0_i32_1 = arith.constant 0 : i32
    return %c0_i32, %c0_i32_0 : i32, i32
  }
  func.func @transform_6(%arg0: i32) -> (i32, i32) {
    %c0_i32 = arith.constant 0 : i32
    %c0_i32_0 = arith.constant 0 : i32
    %c0_i32_1 = arith.constant 0 : i32
    return %c0_i32, %c0_i32_0 : i32, i32
  }
  func.func @transform_7(%arg0: i32) -> (i32, i32) {
    %c0_i32 = arith.constant 0 : i32
    %c0_i32_0 = arith.constant 0 : i32
    %c0_i32_1 = arith.constant 0 : i32
    return %c0_i32, %c0_i32_0 : i32, i32
  }
  func.func @transform_8(%arg0: i32) -> (i32, i32) {
    %c0_i32 = arith.constant 0 : i32
    %c0_i32_0 = arith.constant 0 : i32
    return %c0_i32, %arg0 : i32, i32
  }
}

</mosaic_0001>

<llo_original>
// kernel: tpu_custom_call.1
$region0: #{tpu_custom_call.1}
  #allocation0 [shape = 'u32[]', space=smem, size = 0x4, offset = 0x4, fixed_abs, tag = 'smem constant byte address 0x4 - core index']
  #allocation1 [shape = 'u32[72,128]{1,0:T(1,128)}', space=vmem, size = 0x9000, scoped, tag = 'internal scratch']
  #allocation2 [shape = 'f32[1,1]{1,0:T(1,128)S(1)}', space=vmem, size = 0x200, scoped, tag = 'scoped memory for tpu_custom_call.1']
  %s0 = inlined_call_operand.vmem [shape: f32[8,512], index: 0, kind: input, shape index: {}]
  %s1 = inlined_call_operand.hbm [shape: bf16[128,1024], index: 1, kind: input, shape index: {}]
  %s2 = inlined_call_operand.hbm [shape: bf16[576,128], index: 2, kind: input, shape index: {}]
  %s3 = inlined_call_operand.vmem [shape: f32[64,1], index: 3, kind: input, shape index: {}]
  %s4 = inlined_call_operand.vmem [shape: bf16[288,64], index: 4, kind: input, shape index: {}]
  %s5 = inlined_call_operand.vmem [shape: f32[32,1], index: 5, kind: input, shape index: {}]
  %s6 = inlined_call_operand.vmem [shape: bf16[1,32], index: 6, kind: input, shape index: {}]
  %s7 = inlined_call_operand.<no memory space> [shape: f32[1,1], index: 7, kind: input, shape index: {}]
  %s8 = inlined_call_operand.hbm [shape: f32[1,1024], index: 8, kind: output, shape index: {}]
  %s9 = sld [smem:[#allocation0]]
  $region73: #{tpu_custom_call.1} parent=0
    _
  %s11 = ssub.s32 1, %s9
  %s12 = scalar_select 0, %s11, %s9
  %v13 = vstv %s7
  %14 = vst [vmem:[#allocation2] sm:$0x1] %v13
  $region1: #{tpu_custom_call.1} parent=0
    #allocation3 [shape = 'u8[262144]{0}', space=vmem, size = 0x40000, scoped, tag = 'input window, operand 1']
    #allocation4 [shape = 's32[2]{0}', space=sflag, size = 0x8, scoped, tag = 'scoped memory for tpu_custom_call.1']
    #allocation5 [shape = 's32[2]{0}', space=sflag, size = 0x8, scoped, tag = 'scoped memory for tpu_custom_call.1']
    #allocation6 [shape = 'u8[147456]{0}', space=vmem, size = 0x24000, scoped, tag = 'input window, operand 2, single buffered']
    #allocation7 [shape = 's32[1]{0}', space=sflag, size = 0x4, scoped, tag = 'scoped memory for tpu_custom_call.1']
    #allocation8 [shape = 'u8[4096]{0}', space=vmem, size = 0x1000, scoped, tag = 'output window, operand 0']
    %15 = vsyncpa [#allocation4], 0
    %s16 = scalar_lea.sflag [#allocation4], 1
    %17 = vsyncpa %s16, 0
    %18 = vsyncpa [#allocation7], 0
    %19 = vsyncpa [#allocation5], 0
    %s20 = scalar_lea.sflag [#allocation5], 1
    %21 = vsyncpa %s20, 0
    loop: start=0, step=1, limit=4
    $region2: #{tpu_custom_call.1} parent=1 // loop_pre_header
      _
    $region3: #{tpu_custom_call.1} parent=1 // loop_header
      %s23 = sphi 0, %s27
      %p24 = scmp.ge.s32.totalorder %s23, 4
      %s31 = sphi 0, %s31
      %s33 = sphi 0, %s31
      %s34 = sphi 0, %s33
      %s48 = sphi 0, %s34
      %s54 = sphi 0, %s56
      %s57 = sphi 0, %s54
      %s58 = sphi 0, %s57
      %s74 = sphi 0, %s58
      %s78 = sphi 0, %s78
      %s80 = sphi 0, %s78
      %s81 = sphi 0, %s80
      %s95 = sphi 0, %s81
      %s99 = sphi 0, %s99
      %s101 = sphi 0, %s99
      %s102 = sphi 0, %s101
      %s116 = sphi 0, %s102
      %s120 = sphi 0, %s120
      %s122 = sphi 0, %s120
      %s123 = sphi 0, %s122
      %s137 = sphi 0, %s123
      %s141 = sphi 0, %s141
      %s143 = sphi 0, %s141
      %s144 = sphi 0, %s143
      %s158 = sphi 0, %s144
      %s162 = sphi 0, %s162
      %s164 = sphi 0, %s162
      %s165 = sphi 0, %s164
      %s179 = sphi 0, %s165
      %s183 = sphi 0, %s183
      %s185 = sphi 0, %s183
      %s186 = sphi 0, %s185
      %s200 = sphi 0, %s186
      %s206 = sphi 0, %s208
      %s209 = sphi 0, %s206
      %s210 = sphi 0, %s209
      %s226 = sphi 0, %s210
    $region4: #{tpu_custom_call.1} parent=1 // loop_header_branch
      %26 = sbr.rel (%p24) target = $region8
    $region5: #{tpu_custom_call.1} parent=1 // loop_body
      %s28 = ssub.s32 %s23, 1
      %s29 = ssub.s32 %s23, 2
      %s30 = sadd.s32 %s23, 1
      %s32 = sadd.s32 %s31, 1
      %p35 = scmp.eq.s32.totalorder %s23, 1
      %p36 = scmp.ne.s32.totalorder %s31, %s33
      %p37 = scmp.eq.s32.totalorder %s23, 0
      %p38 = por %p36, %p37
      %p39 = scmp.ne.s32.totalorder %s31, %s33
      %p40 = scmp.eq.s32.totalorder %s28, 1
      %p41 = por %p39, %p40
      %p42 = scmp.ne.s32.totalorder %s33, %s34
      %p43 = scmp.eq.s32.totalorder %s28, 0
      %p44 = por %p42, %p43
      %p45 = scmp.ne.s32.totalorder %s33, %s34
      %p46 = scmp.eq.s32.totalorder %s29, 1
      %p47 = por %p45, %p46
      %p49 = scmp.ne.s32.totalorder %s34, %s48
      %p50 = scmp.eq.s32.totalorder %s29, 0
      %p51 = por %p49, %p50
      %s52 = ssub.s32 %s23, %s30
      %p53 = scmp.eq.s32.totalorder %s52, 0
      %s55 = sadd.s32 %s54, 1
      %s56 = scalar_select %p53, %s54, %s55
      %p59 = pneg %p53
      %p60 = scmp.eq.s32.totalorder %s23, 1
      %p61 = por %p59, %p60
      %p62 = scmp.ne.s32.totalorder %s54, %s57
      %p63 = scmp.eq.s32.totalorder %s23, 0
      %p64 = por %p62, %p63
      %p65 = scmp.ne.s32.totalorder %s54, %s57
      %p66 = scmp.eq.s32.totalorder %s28, 1
      %p67 = por %p65, %p66
      %p68 = scmp.ne.s32.totalorder %s57, %s58
      %p69 = scmp.eq.s32.totalorder %s28, 0
      %p70 = por %p68, %p69
      %p71 = scmp.ne.s32.totalorder %s57, %s58
      %p72 = scmp.eq.s32.totalorder %s29, 1
      %p73 = por %p71, %p72
      %p75 = scmp.ne.s32.totalorder %s58, %s74
      %p76 = scmp.eq.s32.totalorder %s29, 0
      %p77 = por %p75, %p76
      %s79 = sadd.s32 %s78, 1
      %p82 = scmp.eq.s32.totalorder %s23, 1
      %p83 = scmp.ne.s32.totalorder %s78, %s80
      %p84 = scmp.eq.s32.totalorder %s23, 0
      %p85 = por %p83, %p84
      %p86 = scmp.ne.s32.totalorder %s78, %s80
      %p87 = scmp.eq.s32.totalorder %s28, 1
      %p88 = por %p86, %p87
      %p89 = scmp.ne.s32.totalorder %s80, %s81
      %p90 = scmp.eq.s32.totalorder %s28, 0
      %p91 = por %p89, %p90
      %p92 = scmp.ne.s32.totalorder %s80, %s81
      %p93 = scmp.eq.s32.totalorder %s29, 1
      %p94 = por %p92, %p93
      %p96 = scmp.ne.s32.totalorder %s81, %s95
      %p97 = scmp.eq.s32.totalorder %s29, 0
      %p98 = por %p96, %p97
      %s100 = sadd.s32 %s99, 1
      %p103 = scmp.eq.s32.totalorder %s23, 1
      %p104 = scmp.ne.s32.totalorder %s99, %s101
      %p105 = scmp.eq.s32.totalorder %s23, 0
      %p106 = por %p104, %p105
      %p107 = scmp.ne.s32.totalorder %s99, %s101
      %p108 = scmp.eq.s32.totalorder %s28, 1
      %p109 = por %p107, %p108
      %p110 = scmp.ne.s32.totalorder %s101, %s102
      %p111 = scmp.eq.s32.totalorder %s28, 0
      %p112 = por %p110, %p111
      %p113 = scmp.ne.s32.totalorder %s101, %s102
      %p114 = scmp.eq.s32.totalorder %s29, 1
      %p115 = por %p113, %p114
      %p117 = scmp.ne.s32.totalorder %s102, %s116
      %p118 = scmp.eq.s32.totalorder %s29, 0
      %p119 = por %p117, %p118
      %s121 = sadd.s32 %s120, 1
      %p124 = scmp.eq.s32.totalorder %s23, 1
      %p125 = scmp.ne.s32.totalorder %s120, %s122
      %p126 = scmp.eq.s32.totalorder %s23, 0
      %p127 = por %p125, %p126
      %p128 = scmp.ne.s32.totalorder %s120, %s122
      %p129 = scmp.eq.s32.totalorder %s28, 1
      %p130 = por %p128, %p129
      %p131 = scmp.ne.s32.totalorder %s122, %s123
      %p132 = scmp.eq.s32.totalorder %s28, 0
      %p133 = por %p131, %p132
      %p134 = scmp.ne.s32.totalorder %s122, %s123
      %p135 = scmp.eq.s32.totalorder %s29, 1
      %p136 = por %p134, %p135
      %p138 = scmp.ne.s32.totalorder %s123, %s137
      %p139 = scmp.eq.s32.totalorder %s29, 0
      %p140 = por %p138, %p139
      %s142 = sadd.s32 %s141, 1
      %p145 = scmp.eq.s32.totalorder %s23, 1
      %p146 = scmp.ne.s32.totalorder %s141, %s143
      %p147 = scmp.eq.s32.totalorder %s23, 0
      %p148 = por %p146, %p147
      %p149 = scmp.ne.s32.totalorder %s141, %s143
      %p150 = scmp.eq.s32.totalorder %s28, 1
      %p151 = por %p149, %p150
      %p152 = scmp.ne.s32.totalorder %s143, %s144
      %p153 = scmp.eq.s32.totalorder %s28, 0
      %p154 = por %p152, %p153
      %p155 = scmp.ne.s32.totalorder %s143, %s144
      %p156 = scmp.eq.s32.totalorder %s29, 1
      %p157 = por %p155, %p156
      %p159 = scmp.ne.s32.totalorder %s144, %s158
      %p160 = scmp.eq.s32.totalorder %s29, 0
      %p161 = por %p159, %p160
      %s163 = sadd.s32 %s162, 1
      %p166 = scmp.eq.s32.totalorder %s23, 1
      %p167 = scmp.ne.s32.totalorder %s162, %s164
      %p168 = scmp.eq.s32.totalorder %s23, 0
      %p169 = por %p167, %p168
      %p170 = scmp.ne.s32.totalorder %s162, %s164
      %p171 = scmp.eq.s32.totalorder %s28, 1
      %p172 = por %p170, %p171
      %p173 = scmp.ne.s32.totalorder %s164, %s165
      %p174 = scmp.eq.s32.totalorder %s28, 0
      %p175 = por %p173, %p174
      %p176 = scmp.ne.s32.totalorder %s164, %s165
      %p177 = scmp.eq.s32.totalorder %s29, 1
      %p178 = por %p176, %p177
      %p180 = scmp.ne.s32.totalorder %s165, %s179
      %p181 = scmp.eq.s32.totalorder %s29, 0
      %p182 = por %p180, %p181
      %s184 = sadd.s32 %s183, 1
      %p187 = scmp.eq.s32.totalorder %s23, 1
      %p188 = scmp.ne.s32.totalorder %s183, %s185
      %p189 = scmp.eq.s32.totalorder %s23, 0
      %p190 = por %p188, %p189
      %p191 = scmp.ne.s32.totalorder %s183, %s185
      %p192 = scmp.eq.s32.totalorder %s28, 1
      %p193 = por %p191, %p192
      %p194 = scmp.ne.s32.totalorder %s185, %s186
      %p195 = scmp.eq.s32.totalorder %s28, 0
      %p196 = por %p194, %p195
      %p197 = scmp.ne.s32.totalorder %s185, %s186
      %p198 = scmp.eq.s32.totalorder %s29, 1
      %p199 = por %p197, %p198
      %p201 = scmp.ne.s32.totalorder %s186, %s200
      %p202 = scmp.eq.s32.totalorder %s29, 0
      %p203 = por %p201, %p202
      %s204 = ssub.s32 %s23, %s30
      %p205 = scmp.eq.s32.totalorder %s204, 0
      %s207 = sadd.s32 %s206, 1
      %s208 = scalar_select %p205, %s206, %s207
      %p211 = pneg %p205
      %p212 = scmp.eq.s32.totalorder %s23, 1
      %p213 = por %p211, %p212
      %p214 = scmp.ne.s32.totalorder %s206, %s209
      %p215 = scmp.eq.s32.totalorder %s23, 0
      %p216 = por %p214, %p215
      %p217 = scmp.ne.s32.totalorder %s206, %s209
      %p218 = scmp.eq.s32.totalorder %s28, 1
      %p219 = por %p217, %p218
      %p220 = scmp.ne.s32.totalorder %s209, %s210
      %p221 = scmp.eq.s32.totalorder %s28, 0
      %p222 = por %p220, %p221
      %p223 = scmp.ne.s32.totalorder %s209, %s210
      %p224 = scmp.eq.s32.totalorder %s29, 1
      %p225 = por %p223, %p224
      %p227 = scmp.ne.s32.totalorder %s210, %s226
      %p228 = scmp.eq.s32.totalorder %s29, 0
      %p229 = por %p227, %p228
      %p230 = scmp.le.s32.totalorder 1, %s23
      %p231 = scmp.lt.s32.totalorder %s23, 3
      %p232 = pnand %p230, %p231
      %p233 = pneg %p232
      // Predicated region
      $region9: #{tpu_custom_call.1} parent=5 // pred_check
        _
      $region10: #{tpu_custom_call.1} parent=5 // pred_check_branch
        %235 = sbr.rel (%p232) target = $region12
      $region11: #{tpu_custom_call.1} parent=5 // pred_region
        %s236 = ssub.s32 %s23, 1
        // Predicated region
        $region13: #{tpu_custom_call.1} parent=11 // pred_check
          %p237 = pneg %p44
        $region14: #{tpu_custom_call.1} parent=11 // pred_check_branch
          %239 = sbr.rel (%p237) target = $region16
        $region15: #{tpu_custom_call.1} parent=11 // pred_region
          _
        $region16: #{tpu_custom_call.1} parent=11 // pred_fallthru
          _
        // Predicated region
        $region17: #{tpu_custom_call.1} parent=11 // pred_check
          %p240 = pneg %p91
        $region18: #{tpu_custom_call.1} parent=11 // pred_check_branch
          %242 = sbr.rel (%p240) target = $region20
        $region19: #{tpu_custom_call.1} parent=11 // pred_region
          %244 = vsyncadd [#allocation7], 0
          %s245 = sshll.u32 %s2, 4
          %s246 = int_to_ptr.hbm [resolvable:$true] %s245
          %s247 = sshll.u32 [#allocation6], 4
          %s248 = int_to_ptr.vmem [resolvable:$true] %s247
          %253 = dma.hbm_to_vmem [thread:$0]  %s246, 4608, %s248, [#allocation7], 64, 64, 4
        $region20: #{tpu_custom_call.1} parent=11 // pred_fallthru
          _
        // Predicated region
        $region21: #{tpu_custom_call.1} parent=11 // pred_check
          %p254 = pneg %p112
        $region22: #{tpu_custom_call.1} parent=11 // pred_check_branch
          %256 = sbr.rel (%p254) target = $region24
        $region23: #{tpu_custom_call.1} parent=11 // pred_region
          _
        $region24: #{tpu_custom_call.1} parent=11 // pred_fallthru
          _
        // Predicated region
        $region25: #{tpu_custom_call.1} parent=11 // pred_check
          %p257 = pneg %p133
        $region26: #{tpu_custom_call.1} parent=11 // pred_check_branch
          %259 = sbr.rel (%p257) target = $region28
        $region27: #{tpu_custom_call.1} parent=11 // pred_region
          _
        $region28: #{tpu_custom_call.1} parent=11 // pred_fallthru
          _
        // Predicated region
        $region29: #{tpu_custom_call.1} parent=11 // pred_check
          %p260 = pneg %p154
        $region30: #{tpu_custom_call.1} parent=11 // pred_check_branch
          %262 = sbr.rel (%p260) target = $region32
        $region31: #{tpu_custom_call.1} parent=11 // pred_region
          _
        $region32: #{tpu_custom_call.1} parent=11 // pred_fallthru
          _
        // Predicated region
        $region33: #{tpu_custom_call.1} parent=11 // pred_check
          %p263 = pneg %p175
        $region34: #{tpu_custom_call.1} parent=11 // pred_check_branch
          %265 = sbr.rel (%p263) target = $region36
        $region35: #{tpu_custom_call.1} parent=11 // pred_region
          _
        $region36: #{tpu_custom_call.1} parent=11 // pred_fallthru
          _
        // Predicated region
        $region37: #{tpu_custom_call.1} parent=11 // pred_check
          %p266 = pneg %p196
        $region38: #{tpu_custom_call.1} parent=11 // pred_check_branch
          %268 = sbr.rel (%p266) target = $region40
        $region39: #{tpu_custom_call.1} parent=11 // pred_region
          _
        $region40: #{tpu_custom_call.1} parent=11 // pred_fallthru
          _
      $region12: #{tpu_custom_call.1} parent=5 // pred_fallthru
        _
      %p269 = scmp.lt.s32.totalorder %s23, 2
      // Predicated region
      $region41: #{tpu_custom_call.1} parent=5 // pred_check
        %p270 = pneg %p269
      $region42: #{tpu_custom_call.1} parent=5 // pred_check_branch
        %272 = sbr.rel (%p270) target = $region44
      $region43: #{tpu_custom_call.1} parent=5 // pred_region
        // Predicated region
        $region45: #{tpu_custom_call.1} parent=43 // pred_check
          %p273 = pneg %p64
        $region46: #{tpu_custom_call.1} parent=43 // pred_check_branch
          %275 = sbr.rel (%p273) target = $region48
        $region47: #{tpu_custom_call.1} parent=43 // pred_region
          %s276 = sand.u32 %s54, 1
          %s277 = scalar_lea.sflag [#allocation4], %s276
          %s278 = sand.u32 %s54, 1
          %s279 = smul.addr %s278, 256
          %s280 = scalar_lea.vmem [#allocation3], %s279
          %s281 = smul.u32 4, %s23
          %283 = vsyncadd %s277, 0
          %s284 = smul.addr %s281, 4
          %s285 = scalar_lea.hbm %s1, %s284
          %s286 = sshll.u32 %s285, 4
          %s287 = int_to_ptr.hbm [resolvable:$true] %s286
          %s288 = sshll.u32 %s280, 4
          %s289 = int_to_ptr.vmem [resolvable:$true] %s288
          %294 = dma.hbm_to_vmem [thread:$0]  %s287, 4096, %s289, %s277, 512, 256, 16
        $region48: #{tpu_custom_call.1} parent=43 // pred_fallthru
          _
      $region44: #{tpu_custom_call.1} parent=5 // pred_fallthru
        _
      %p295 = scmp.le.s32.totalorder 1, %s23
      %p296 = scmp.lt.s32.totalorder %s23, 3
      %p297 = pnand %p295, %p296
      %p298 = pneg %p297
      // Predicated region
      $region49: #{tpu_custom_call.1} parent=5 // pred_check
        _
      $region50: #{tpu_custom_call.1} parent=5 // pred_check_branch
        %300 = sbr.rel (%p297) target = $region52
      $region51: #{tpu_custom_call.1} parent=5 // pred_region
        %s301 = ssub.s32 %s23, 1
        %s302 = sand.u32 %s57, 1
        %s303 = scalar_lea.sflag [#allocation4], %s302
        %s304 = sand.u32 %s57, 1
        %s305 = smul.addr %s304, 256
        %s306 = scalar_lea.vmem [#allocation3], %s305
        // Predicated region
        $region53: #{tpu_custom_call.1} parent=51 // pred_check
          %p307 = pneg %p70
        $region54: #{tpu_custom_call.1} parent=51 // pred_check_branch
          %309 = sbr.rel (%p307) target = $region56
        $region55: #{tpu_custom_call.1} parent=51 // pred_region
          %311 = dma.done %s303, 4096
        $region56: #{tpu_custom_call.1} parent=51 // pred_fallthru
          _
        // Predicated region
        $region57: #{tpu_custom_call.1} parent=51 // pred_check
          %p312 = pneg %p91
        $region58: #{tpu_custom_call.1} parent=51 // pred_check_branch
          %314 = sbr.rel (%p312) target = $region60
        $region59: #{tpu_custom_call.1} parent=51 // pred_region
          %316 = dma.done [#allocation7], 4608
        $region60: #{tpu_custom_call.1} parent=51 // pred_fallthru
          _
        %p317 = pneg %p44
        %p318 = pneg %p41
        %s319 = sand.u32 %s57, 1
        %s320 = scalar_lea.sflag [#allocation4], %s319
        %s321 = sand.u32 %s57, 1
        %s322 = smul.addr %s321, 256
        %s323 = scalar_lea.vmem [#allocation3], %s322
        %p324 = pneg %p70
        %p325 = pneg %p67
        %p326 = pneg %p91
        %p327 = pneg %p88
        %p328 = pneg %p112
        %p329 = pneg %p109
        %p330 = pneg %p133
        %p331 = pneg %p130
        %p332 = pneg %p154
        %p333 = pneg %p151
        %p334 = pneg %p175
        %p335 = pneg %p172
        %p336 = pneg %p196
        %p337 = pneg %p193
        %p338 = pneg %p222
        %p339 = pneg %p219
        %s340 = sand.u32 %s209, 1
        %s341 = scalar_lea.sflag [#allocation5], %s340
        %s342 = sand.u32 %s209, 1
        %s343 = smul.addr %s342, 4
        %s344 = scalar_lea.vmem [#allocation8], %s343
        %s345 = smul.u32 4, %s28
        %s346 = smul.u32 4, %s28
        %v348 = vld [vmem:[%s0] sm:$0xff]
        %v349 = vld [vmem:[%s0 + $0x8] sm:$0xff]
        %v350 = vld [vmem:[%s0 + $0x10] sm:$0xff]
        %v351 = vld [vmem:[%s0 + $0x18] sm:$0xff]
        %v352 = vld [vmem:[%s306] sm:$0xff]
        %v353 = vld [vmem:[%s306 + $0x8] sm:$0xff]
        %v354 = vld [vmem:[%s306 + $0x10] sm:$0xff]
        %v355 = vld [vmem:[%s306 + $0x18] sm:$0xff]
        %v356 = vld [vmem:[%s306 + $0x20] sm:$0xff]
        %v357 = vld [vmem:[%s306 + $0x28] sm:$0xff]
        %v358 = vld [vmem:[%s306 + $0x30] sm:$0xff]
        %v359 = vld [vmem:[%s306 + $0x38] sm:$0xff]
        %v360 = vld [vmem:[%s306 + $0x40] sm:$0xff]
        %v361 = vld [vmem:[%s306 + $0x48] sm:$0xff]
        %v362 = vld [vmem:[%s306 + $0x50] sm:$0xff]
        %v363 = vld [vmem:[%s306 + $0x58] sm:$0xff]
        %v364 = vld [vmem:[%s306 + $0x60] sm:$0xff]
        %v365 = vld [vmem:[%s306 + $0x68] sm:$0xff]
        %v366 = vld [vmem:[%s306 + $0x70] sm:$0xff]
        %v367 = vld [vmem:[%s306 + $0x78] sm:$0xff]
        %v368 = vld [vmem:[%s306 + $0x80] sm:$0xff]
        %v369 = vld [vmem:[%s306 + $0x88] sm:$0xff]
        %v370 = vld [vmem:[%s306 + $0x90] sm:$0xff]
        %v371 = vld [vmem:[%s306 + $0x98] sm:$0xff]
        %v372 = vld [vmem:[%s306 + $0xa0] sm:$0xff]
        %v373 = vld [vmem:[%s306 + $0xa8] sm:$0xff]
        %v374 = vld [vmem:[%s306 + $0xb0] sm:$0xff]
        %v375 = vld [vmem:[%s306 + $0xb8] sm:$0xff]
        %v376 = vld [vmem:[%s306 + $0xc0] sm:$0xff]
        %v377 = vld [vmem:[%s306 + $0xc8] sm:$0xff]
        %v378 = vld [vmem:[%s306 + $0xd0] sm:$0xff]
        %v379 = vld [vmem:[%s306 + $0xd8] sm:$0xff]
        %v380 = vld [vmem:[%s306 + $0xe0] sm:$0xff]
        %v381 = vld [vmem:[%s306 + $0xe8] sm:$0xff]
        %v382 = vld [vmem:[%s306 + $0xf0] sm:$0xff]
        %v383 = vld [vmem:[%s306 + $0xf8] sm:$0xff]
        %v384 = vld [vmem:[#allocation6] sm:$0xf]
        %v385 = vld [vmem:[#allocation6 + $0x4] sm:$0xf]
        %v386 = vld [vmem:[#allocation6 + $0x8] sm:$0xf]
        %v387 = vld [vmem:[#allocation6 + $0xc] sm:$0xf]
        %v388 = vld [vmem:[#allocation6 + $0x10] sm:$0xf]
        %v389 = vld [vmem:[#allocation6 + $0x14] sm:$0xf]
        %v390 = vld [vmem:[#allocation6 + $0x18] sm:$0xf]
        %v391 = vld [vmem:[#allocation6 + $0x1c] sm:$0xf]
        %v392 = vld [vmem:[#allocation6 + $0x20] sm:$0xf]
        %v393 = vld [vmem:[#allocation6 + $0x24] sm:$0xf]
        %v394 = vld [vmem:[#allocation6 + $0x28] sm:$0xf]
        %v395 = vld [vmem:[#allocation6 + $0x2c] sm:$0xf]
        %v396 = vld [vmem:[#allocation6 + $0x30] sm:$0xf]
        %v397 = vld [vmem:[#allocation6 + $0x34] sm:$0xf]
        %v398 = vld [vmem:[#allocation6 + $0x38] sm:$0xf]
        %v399 = vld [vmem:[#allocation6 + $0x3c] sm:$0xf]
        %v400 = vld [vmem:[#allocation6 + $0x40] sm:$0xf]
        %v401 = vld [vmem:[#allocation6 + $0x44] sm:$0xf]
        %v402 = vld [vmem:[#allocation6 + $0x48] sm:$0xf]
        %v403 = vld [vmem:[#allocation6 + $0x4c] sm:$0xf]
        %v404 = vld [vmem:[#allocation6 + $0x50] sm:$0xf]
        %v405 = vld [vmem:[#allocation6 + $0x54] sm:$0xf]
        %v406 = vld [vmem:[#allocation6 + $0x58] sm:$0xf]
        %v407 = vld [vmem:[#allocation6 + $0x5c] sm:$0xf]
        %v408 = vld [vmem:[#allocation6 + $0x60] sm:$0xf]
        %v409 = vld [vmem:[#allocation6 + $0x64] sm:$0xf]
        %v410 = vld [vmem:[#allocation6 + $0x68] sm:$0xf]
        %v411 = vld [vmem:[#allocation6 + $0x6c] sm:$0xf]
        %v412 = vld [vmem:[#allocation6 + $0x70] sm:$0xf]
        %v413 = vld [vmem:[#allocation6 + $0x74] sm:$0xf]
        %v414 = vld [vmem:[#allocation6 + $0x78] sm:$0xf]
        %v415 = vld [vmem:[#allocation6 + $0x7c] sm:$0xf]
        %v416 = vld [vmem:[#allocation6 + $0x80] sm:$0xf]
        %v417 = vld [vmem:[#allocation6 + $0x84] sm:$0xf]
        %v418 = vld [vmem:[#allocation6 + $0x88] sm:$0xf]
        %v419 = vld [vmem:[#allocation6 + $0x8c] sm:$0xf]
        %v420 = vld [vmem:[#allocation6 + $0x90] sm:$0xf]
        %v421 = vld [vmem:[#allocation6 + $0x94] sm:$0xf]
        %v422 = vld [vmem:[#allocation6 + $0x98] sm:$0xf]
        %v423 = vld [vmem:[#allocation6 + $0x9c] sm:$0xf]
        %v424 = vld [vmem:[#allocation6 + $0xa0] sm:$0xf]
        %v425 = vld [vmem:[#allocation6 + $0xa4] sm:$0xf]
        %v426 = vld [vmem:[#allocation6 + $0xa8] sm:$0xf]
        %v427 = vld [vmem:[#allocation6 + $0xac] sm:$0xf]
        %v428 = vld [vmem:[#allocation6 + $0xb0] sm:$0xf]
        %v429 = vld [vmem:[#allocation6 + $0xb4] sm:$0xf]
        %v430 = vld [vmem:[#allocation6 + $0xb8] sm:$0xf]
        %v431 = vld [vmem:[#allocation6 + $0xbc] sm:$0xf]
        %v432 = vld [vmem:[#allocation6 + $0xc0] sm:$0xf]
        %v433 = vld [vmem:[#allocation6 + $0xc4] sm:$0xf]
        %v434 = vld [vmem:[#allocation6 + $0xc8] sm:$0xf]
        %v435 = vld [vmem:[#allocation6 + $0xcc] sm:$0xf]
        %v436 = vld [vmem:[#allocation6 + $0xd0] sm:$0xf]
        %v437 = vld [vmem:[#allocation6 + $0xd4] sm:$0xf]
        %v438 = vld [vmem:[#allocation6 + $0xd8] sm:$0xf]
        %v439 = vld [vmem:[#allocation6 + $0xdc] sm:$0xf]
        %v440 = vld [vmem:[#allocation6 + $0xe0] sm:$0xf]
        %v441 = vld [vmem:[#allocation6 + $0xe4] sm:$0xf]
        %v442 = vld [vmem:[#allocation6 + $0xe8] sm:$0xf]
        %v443 = vld [vmem:[#allocation6 + $0xec] sm:$0xf]
        %v444 = vld [vmem:[#allocation6 + $0xf0] sm:$0xf]
        %v445 = vld [vmem:[#allocation6 + $0xf4] sm:$0xf]
        %v446 = vld [vmem:[#allocation6 + $0xf8] sm:$0xf]
        %v447 = vld [vmem:[#allocation6 + $0xfc] sm:$0xf]
        %v448 = vld [vmem:[#allocation6 + $0x100] sm:$0xf]
        %v449 = vld [vmem:[#allocation6 + $0x104] sm:$0xf]
        %v450 = vld [vmem:[#allocation6 + $0x108] sm:$0xf]
        %v451 = vld [vmem:[#allocation6 + $0x10c] sm:$0xf]
        %v452 = vld [vmem:[#allocation6 + $0x110] sm:$0xf]
        %v453 = vld [vmem:[#allocation6 + $0x114] sm:$0xf]
        %v454 = vld [vmem:[#allocation6 + $0x118] sm:$0xf]
        %v455 = vld [vmem:[#allocation6 + $0x11c] sm:$0xf]
        %v528 = vunpack.c.l.b16 %v384
        %v529 = vunpack.c.l.b16 %v385
        %v530 = vunpack.c.l.b16 %v386
        %v531 = vunpack.c.l.b16 %v387
        %v532 = vunpack.c.l.b16 %v388
        %v533 = vunpack.c.l.b16 %v389
        %v534 = vunpack.c.l.b16 %v390
        %v535 = vunpack.c.l.b16 %v391
        %v536 = vunpack.c.l.b16 %v392
        %v537 = vunpack.c.l.b16 %v393
        %v538 = vunpack.c.l.b16 %v394
        %v539 = vunpack.c.l.b16 %v395
        %v540 = vunpack.c.l.b16 %v396
        %v541 = vunpack.c.l.b16 %v397
        %v542 = vunpack.c.l.b16 %v398
        %v543 = vunpack.c.l.b16 %v399
        %v544 = vunpack.c.l.b16 %v400
        %v545 = vunpack.c.l.b16 %v401
        %v546 = vunpack.c.l.b16 %v402
        %v547 = vunpack.c.l.b16 %v403
        %v548 = vunpack.c.l.b16 %v404
        %v549 = vunpack.c.l.b16 %v405
        %v550 = vunpack.c.l.b16 %v406
        %v551 = vunpack.c.l.b16 %v407
        %v552 = vunpack.c.l.b16 %v408
        %v553 = vunpack.c.l.b16 %v409
        %v554 = vunpack.c.l.b16 %v410
        %v555 = vunpack.c.l.b16 %v411
        %v556 = vunpack.c.l.b16 %v412
        %v557 = vunpack.c.l.b16 %v413
        %v558 = vunpack.c.l.b16 %v414
        %v559 = vunpack.c.l.b16 %v415
        %v560 = vunpack.c.l.b16 %v416
        %v561 = vunpack.c.l.b16 %v417
        %v562 = vunpack.c.l.b16 %v418
        %v563 = vunpack.c.l.b16 %v419
        %v564 = vunpack.c.l.b16 %v420
        %v565 = vunpack.c.l.b16 %v421
        %v566 = vunpack.c.l.b16 %v422
        %v567 = vunpack.c.l.b16 %v423
        %v568 = vunpack.c.l.b16 %v424
        %v569 = vunpack.c.l.b16 %v425
        %v570 = vunpack.c.l.b16 %v426
        %v571 = vunpack.c.l.b16 %v427
        %v572 = vunpack.c.l.b16 %v428
        %v573 = vunpack.c.l.b16 %v429
        %v574 = vunpack.c.l.b16 %v430
        %v575 = vunpack.c.l.b16 %v431
        %v576 = vunpack.c.l.b16 %v432
        %v577 = vunpack.c.l.b16 %v433
        %v578 = vunpack.c.l.b16 %v434
        %v579 = vunpack.c.l.b16 %v435
        %v580 = vunpack.c.l.b16 %v436
        %v581 = vunpack.c.l.b16 %v437
        %v582 = vunpack.c.l.b16 %v438
        %v583 = vunpack.c.l.b16 %v439
        %v584 = vunpack.c.l.b16 %v440
        %v585 = vunpack.c.l.b16 %v441
        %v586 = vunpack.c.l.b16 %v442
        %v587 = vunpack.c.l.b16 %v443
        %v588 = vunpack.c.l.b16 %v444
        %v589 = vunpack.c.l.b16 %v445
        %v590 = vunpack.c.l.b16 %v446
        %v591 = vunpack.c.l.b16 %v447
        %v592 = vunpack.c.l.b16 %v448
        %v593 = vunpack.c.l.b16 %v449
        %v594 = vunpack.c.l.b16 %v450
        %v595 = vunpack.c.l.b16 %v451
        %v596 = vunpack.c.l.b16 %v452
        %v597 = vunpack.c.l.b16 %v453
        %v598 = vunpack.c.l.b16 %v454
        %v599 = vunpack.c.l.b16 %v455
        %v600 = vpack.c.b16 %v529, %v528
        %v601 = vpack.c.b16 %v531, %v530
        %v602 = vpack.c.b16 %v533, %v532
        %v603 = vpack.c.b16 %v535, %v534
        %v604 = vpack.c.b16 %v537, %v536
        %v605 = vpack.c.b16 %v539, %v538
        %v606 = vpack.c.b16 %v541, %v540
        %v607 = vpack.c.b16 %v543, %v542
        %v608 = vpack.c.b16 %v545, %v544
        %v609 = vpack.c.b16 %v547, %v546
        %v610 = vpack.c.b16 %v549, %v548
        %v611 = vpack.c.b16 %v551, %v550
        %v612 = vpack.c.b16 %v553, %v552
        %v613 = vpack.c.b16 %v555, %v554
        %v614 = vpack.c.b16 %v557, %v556
        %v615 = vpack.c.b16 %v559, %v558
        %v616 = vpack.c.b16 %v561, %v560
        %v617 = vpack.c.b16 %v563, %v562
        %v618 = vpack.c.b16 %v565, %v564
        %v619 = vpack.c.b16 %v567, %v566
        %v620 = vpack.c.b16 %v569, %v568
        %v621 = vpack.c.b16 %v571, %v570
        %v622 = vpack.c.b16 %v573, %v572
        %v623 = vpack.c.b16 %v575, %v574
        %v624 = vpack.c.b16 %v577, %v576
        %v625 = vpack.c.b16 %v579, %v578
        %v626 = vpack.c.b16 %v581, %v580
        %v627 = vpack.c.b16 %v583, %v582
        %v628 = vpack.c.b16 %v585, %v584
        %v629 = vpack.c.b16 %v587, %v586
        %v630 = vpack.c.b16 %v589, %v588
        %v631 = vpack.c.b16 %v591, %v590
        %v632 = vpack.c.b16 %v593, %v592
        %v633 = vpack.c.b16 %v595, %v594
        %v634 = vpack.c.b16 %v597, %v596
        %v635 = vpack.c.b16 %v599, %v598
        %v704 = vunpack.c.l.b16 %v352
        %v705 = vunpack.c.h.b16 %v352
        %v706 = vunpack.c.l.b16 %v353
        %v707 = vunpack.c.h.b16 %v353
        %v708 = vunpack.c.l.b16 %v354
        %v709 = vunpack.c.h.b16 %v354
        %v710 = vunpack.c.l.b16 %v355
        %v711 = vunpack.c.h.b16 %v355
        %v712 = vunpack.c.l.b16 %v356
        %v713 = vunpack.c.h.b16 %v356
        %v714 = vunpack.c.l.b16 %v357
        %v715 = vunpack.c.h.b16 %v357
        %v716 = vunpack.c.l.b16 %v358
        %v717 = vunpack.c.h.b16 %v358
        %v718 = vunpack.c.l.b16 %v359
        %v719 = vunpack.c.h.b16 %v359
        %v720 = vunpack.c.l.b16 %v360
        %v721 = vunpack.c.h.b16 %v360
        %v722 = vunpack.c.l.b16 %v361
        %v723 = vunpack.c.h.b16 %v361
        %v724 = vunpack.c.l.b16 %v362
        %v725 = vunpack.c.h.b16 %v362
        %v726 = vunpack.c.l.b16 %v363
        %v727 = vunpack.c.h.b16 %v363
        %v728 = vunpack.c.l.b16 %v364
        %v729 = vunpack.c.h.b16 %v364
        %v730 = vunpack.c.l.b16 %v365
        %v731 = vunpack.c.h.b16 %v365
        %v732 = vunpack.c.l.b16 %v366
        %v733 = vunpack.c.h.b16 %v366
        %v734 = vunpack.c.l.b16 %v367
        %v735 = vunpack.c.h.b16 %v367
        %v736 = vunpack.c.l.b16 %v368
        %v737 = vunpack.c.h.b16 %v368
        %v738 = vunpack.c.l.b16 %v369
        %v739 = vunpack.c.h.b16 %v369
        %v740 = vunpack.c.l.b16 %v370
        %v741 = vunpack.c.h.b16 %v370
        %v742 = vunpack.c.l.b16 %v371
        %v743 = vunpack.c.h.b16 %v371
        %v744 = vunpack.c.l.b16 %v372
        %v745 = vunpack.c.h.b16 %v372
        %v746 = vunpack.c.l.b16 %v373
        %v747 = vunpack.c.h.b16 %v373
        %v748 = vunpack.c.l.b16 %v374
        %v749 = vunpack.c.h.b16 %v374
        %v750 = vunpack.c.l.b16 %v375
        %v751 = vunpack.c.h.b16 %v375
        %v752 = vunpack.c.l.b16 %v376
        %v753 = vunpack.c.h.b16 %v376
        %v754 = vunpack.c.l.b16 %v377
        %v755 = vunpack.c.h.b16 %v377
        %v756 = vunpack.c.l.b16 %v378
        %v757 = vunpack.c.h.b16 %v378
        %v758 = vunpack.c.l.b16 %v379
        %v759 = vunpack.c.h.b16 %v379
        %v760 = vunpack.c.l.b16 %v380
        %v761 = vunpack.c.h.b16 %v380
        %v762 = vunpack.c.l.b16 %v381
        %v763 = vunpack.c.h.b16 %v381
        %v764 = vunpack.c.l.b16 %v382
        %v765 = vunpack.c.h.b16 %v382
        %v766 = vunpack.c.l.b16 %v383
        %v767 = vunpack.c.h.b16 %v383
        %v768 = vpack.c.b16 %v708, %v704
        %v769 = vpack.c.b16 %v709, %v705
        %v770 = vpack.c.b16 %v710, %v706
        %v771 = vpack.c.b16 %v711, %v707
        %v772 = vpack.c.b16 %v716, %v712
        %v773 = vpack.c.b16 %v717, %v713
        %v774 = vpack.c.b16 %v718, %v714
        %v775 = vpack.c.b16 %v719, %v715
        %v776 = vpack.c.b16 %v724, %v720
        %v777 = vpack.c.b16 %v725, %v721
        %v778 = vpack.c.b16 %v726, %v722
        %v779 = vpack.c.b16 %v727, %v723
        %v780 = vpack.c.b16 %v732, %v728
        %v781 = vpack.c.b16 %v733, %v729
        %v782 = vpack.c.b16 %v734, %v730
        %v783 = vpack.c.b16 %v735, %v731
        %v784 = vpack.c.b16 %v740, %v736
        %v785 = vpack.c.b16 %v741, %v737
        %v786 = vpack.c.b16 %v742, %v738
        %v787 = vpack.c.b16 %v743, %v739
        %v788 = vpack.c.b16 %v748, %v744
        %v789 = vpack.c.b16 %v749, %v745
        %v790 = vpack.c.b16 %v750, %v746
        %v791 = vpack.c.b16 %v751, %v747
        %v792 = vpack.c.b16 %v756, %v752
        %v793 = vpack.c.b16 %v757, %v753
        %v794 = vpack.c.b16 %v758, %v754
        %v795 = vpack.c.b16 %v759, %v755
        %v796 = vpack.c.b16 %v764, %v760
        %v797 = vpack.c.b16 %v765, %v761
        %v798 = vpack.c.b16 %v766, %v762
        %v799 = vpack.c.b16 %v767, %v763
        %832 = vmatpush.bf16.msra.mxu0 %v796
        %833 = vmatpush.bf16.msra.mxu0 %v792
        %834 = vmatpush.bf16.msra.mxu0 %v788
        %835 = vmatpush.bf16.msra.mxu0 %v784
        %836 = vmatpush.bf16.msra.mxu0 %v780
        %837 = vmatpush.bf16.msra.mxu0 %v776
        %838 = vmatpush.bf16.msra.mxu0 %v772
        %839 = vmatpush.bf16.msra.mxu0 %v768
        %840 = vmatmul.bf16.gmra.mxu0 %v600
        %v841 = vpop.f32.mrf.mxu0
        %v842 = vadd.f32 0.0, %v841
        %v843 = vpop.f32.mrf.mxu0
        %v844 = vadd.f32 0.0, %v843
        %845 = vmatmul.bf16.gmra.mxu0 %v601
        %v846 = vpop.f32.mrf.mxu0
        %v847 = vadd.f32 0.0, %v846
        %v848 = vpop.f32.mrf.mxu0
        %v849 = vadd.f32 0.0, %v848
        %850 = vmatmul.bf16.gmra.mxu0 %v602
        %v851 = vpop.f32.mrf.mxu0
        %v852 = vadd.f32 0.0, %v851
        %v853 = vpop.f32.mrf.mxu0
        %v854 = vadd.f32 0.0, %v853
        %855 = vmatmul.bf16.gmra.mxu0 %v603
        %v856 = vpop.f32.mrf.mxu0
        %v857 = vadd.f32 0.0, %v856
        %v858 = vpop.f32.mrf.mxu0
        %v859 = vadd.f32 0.0, %v858
        %860 = vmatmul.bf16.gmra.mxu0 %v604
        %v861 = vpop.f32.mrf.mxu0
        %v862 = vadd.f32 0.0, %v861
        %v863 = vpop.f32.mrf.mxu0
        %v864 = vadd.f32 0.0, %v863
        %865 = vmatmul.bf16.gmra.mxu0 %v605
        %v866 = vpop.f32.mrf.mxu0
        %v867 = vadd.f32 0.0, %v866
        %v868 = vpop.f32.mrf.mxu0
        %v869 = vadd.f32 0.0, %v868
        %870 = vmatmul.bf16.gmra.mxu0 %v606
        %v871 = vpop.f32.mrf.mxu0
        %v872 = vadd.f32 0.0, %v871
        %v873 = vpop.f32.mrf.mxu0
        %v874 = vadd.f32 0.0, %v873
        %875 = vmatmul.bf16.gmra.mxu0 %v607
        %v876 = vpop.f32.mrf.mxu0
        %v877 = vadd.f32 0.0, %v876
        %v878 = vpop.f32.mrf.mxu0
        %v879 = vadd.f32 0.0, %v878
        %880 = vmatmul.bf16.gmra.mxu0 %v608
        %v881 = vpop.f32.mrf.mxu0
        %v882 = vadd.f32 0.0, %v881
        %v883 = vpop.f32.mrf.mxu0
        %v884 = vadd.f32 0.0, %v883
        %885 = vmatmul.bf16.gmra.mxu0 %v609
        %v886 = vpop.f32.mrf.mxu0
        %v887 = vadd.f32 0.0, %v886
        %v888 = vpop.f32.mrf.mxu0
        %v889 = vadd.f32 0.0, %v888
        %890 = vmatmul.bf16.gmra.mxu0 %v610
        %v891 = vpop.f32.mrf.mxu0
        %v892 = vadd.f32 0.0, %v891
        %v893 = vpop.f32.mrf.mxu0
        %v894 = vadd.f32 0.0, %v893
        %895 = vmatmul.bf16.gmra.mxu0 %v611
        %v896 = vpop.f32.mrf.mxu0
        %v897 = vadd.f32 0.0, %v896
        %v898 = vpop.f32.mrf.mxu0
        %v899 = vadd.f32 0.0, %v898
        %900 = vmatmul.bf16.gmra.mxu0 %v612
        %v901 = vpop.f32.mrf.mxu0
        %v902 = vadd.f32 0.0, %v901
        %v903 = vpop.f32.mrf.mxu0
        %v904 = vadd.f32 0.0, %v903
        %905 = vmatmul.bf16.gmra.mxu0 %v613
        %v906 = vpop.f32.mrf.mxu0
        %v907 = vadd.f32 0.0, %v906
        %v908 = vpop.f32.mrf.mxu0
        %v909 = vadd.f32 0.0, %v908
        %910 = vmatmul.bf16.gmra.mxu0 %v614
        %v911 = vpop.f32.mrf.mxu0
        %v912 = vadd.f32 0.0, %v911
        %v913 = vpop.f32.mrf.mxu0
        %v914 = vadd.f32 0.0, %v913
        %915 = vmatmul.bf16.gmra.mxu0 %v615
        %v916 = vpop.f32.mrf.mxu0
        %v917 = vadd.f32 0.0, %v916
        %v918 = vpop.f32.mrf.mxu0
        %v919 = vadd.f32 0.0, %v918
        %920 = vmatmul.bf16.gmra.mxu0 %v616
        %v921 = vpop.f32.mrf.mxu0
        %v922 = vadd.f32 0.0, %v921
        %v923 = vpop.f32.mrf.mxu0
        %v924 = vadd.f32 0.0, %v923
        %925 = vmatmul.bf16.gmra.mxu0 %v617
        %v926 = vpop.f32.mrf.mxu0
        %v927 = vadd.f32 0.0, %v926
        %v928 = vpop.f32.mrf.mxu0
        %v929 = vadd.f32 0.0, %v928
        %930 = vmatmul.bf16.gmra.mxu0 %v618
        %v931 = vpop.f32.mrf.mxu0
        %v932 = vadd.f32 0.0, %v931
        %v933 = vpop.f32.mrf.mxu0
        %v934 = vadd.f32 0.0, %v933
        %935 = vmatmul.bf16.gmra.mxu0 %v619
        %v936 = vpop.f32.mrf.mxu0
        %v937 = vadd.f32 0.0, %v936
        %v938 = vpop.f32.mrf.mxu0
        %v939 = vadd.f32 0.0, %v938
        %940 = vmatmul.bf16.gmra.mxu0 %v620
        %v941 = vpop.f32.mrf.mxu0
        %v942 = vadd.f32 0.0, %v941
        %v943 = vpop.f32.mrf.mxu0
        %v944 = vadd.f32 0.0, %v943
        %945 = vmatmul.bf16.gmra.mxu0 %v621
        %v946 = vpop.f32.mrf.mxu0
        %v947 = vadd.f32 0.0, %v946
        %v948 = vpop.f32.mrf.mxu0
        %v949 = vadd.f32 0.0, %v948
        %950 = vmatmul.bf16.gmra.mxu0 %v622
        %v951 = vpop.f32.mrf.mxu0
        %v952 = vadd.f32 0.0, %v951
        %v953 = vpop.f32.mrf.mxu0
        %v954 = vadd.f32 0.0, %v953
        %955 = vmatmul.bf16.gmra.mxu0 %v623
        %v956 = vpop.f32.mrf.mxu0
        %v957 = vadd.f32 0.0, %v956
        %v958 = vpop.f32.mrf.mxu0
        %v959 = vadd.f32 0.0, %v958
        %960 = vmatmul.bf16.gmra.mxu0 %v624
        %v961 = vpop.f32.mrf.mxu0
        %v962 = vadd.f32 0.0, %v961
        %v963 = vpop.f32.mrf.mxu0
        %v964 = vadd.f32 0.0, %v963
        %965 = vmatmul.bf16.gmra.mxu0 %v625
        %v966 = vpop.f32.mrf.mxu0
        %v967 = vadd.f32 0.0, %v966
        %v968 = vpop.f32.mrf.mxu0
        %v969 = vadd.f32 0.0, %v968
        %970 = vmatmul.bf16.gmra.mxu0 %v626
        %v971 = vpop.f32.mrf.mxu0
        %v972 = vadd.f32 0.0, %v971
        %v973 = vpop.f32.mrf.mxu0
        %v974 = vadd.f32 0.0, %v973
        %975 = vmatmul.bf16.gmra.mxu0 %v627
        %v976 = vpop.f32.mrf.mxu0
        %v977 = vadd.f32 0.0, %v976
        %v978 = vpop.f32.mrf.mxu0
        %v979 = vadd.f32 0.0, %v978
        %980 = vmatmul.bf16.gmra.mxu0 %v628
        %v981 = vpop.f32.mrf.mxu0
        %v982 = vadd.f32 0.0, %v981
        %v983 = vpop.f32.mrf.mxu0
        %v984 = vadd.f32 0.0, %v983
        %985 = vmatmul.bf16.gmra.mxu0 %v629
        %v986 = vpop.f32.mrf.mxu0
        %v987 = vadd.f32 0.0, %v986
        %v988 = vpop.f32.mrf.mxu0
        %v989 = vadd.f32 0.0, %v988
        %990 = vmatmul.bf16.gmra.mxu0 %v630
        %v991 = vpop.f32.mrf.mxu0
        %v992 = vadd.f32 0.0, %v991
        %v993 = vpop.f32.mrf.mxu0
        %v994 = vadd.f32 0.0, %v993
        %995 = vmatmul.bf16.gmra.mxu0 %v631
        %v996 = vpop.f32.mrf.mxu0
        %v997 = vadd.f32 0.0, %v996
        %v998 = vpop.f32.mrf.mxu0
        %v999 = vadd.f32 0.0, %v998
        %1000 = vmatmul.bf16.gmra.mxu0 %v632
        %v1001 = vpop.f32.mrf.mxu0
        %v1002 = vadd.f32 0.0, %v1001
        %v1003 = vpop.f32.mrf.mxu0
        %v1004 = vadd.f32 0.0, %v1003
        %1005 = vmatmul.bf16.gmra.mxu0 %v633
        %v1006 = vpop.f32.mrf.mxu0
        %v1007 = vadd.f32 0.0, %v1006
        %v1008 = vpop.f32.mrf.mxu0
        %v1009 = vadd.f32 0.0, %v1008
        %1010 = vmatmul.bf16.gmra.mxu0 %v634
        %v1011 = vpop.f32.mrf.mxu0
        %v1012 = vadd.f32 0.0, %v1011
        %v1013 = vpop.f32.mrf.mxu0
        %v1014 = vadd.f32 0.0, %v1013
        %1015 = vmatmul.bf16.gmra.mxu0 %v635
        %v1016 = vpop.f32.mrf.mxu0
        %v1017 = vadd.f32 0.0, %v1016
        %v1018 = vpop.f32.mrf.mxu0
        %v1019 = vadd.f32 0.0, %v1018
        %1020 = vdwg.mxu0
        %1021 = vmatpush.bf16.msra.mxu0 %v797
        %1022 = vmatpush.bf16.msra.mxu0 %v793
        %1023 = vmatpush.bf16.msra.mxu0 %v789
        %1024 = vmatpush.bf16.msra.mxu0 %v785
        %1025 = vmatpush.bf16.msra.mxu0 %v781
        %1026 = vmatpush.bf16.msra.mxu0 %v777
        %1027 = vmatpush.bf16.msra.mxu0 %v773
        %1028 = vmatpush.bf16.msra.mxu0 %v769
        %1029 = vmatmul.bf16.gmra.mxu0 %v600
        %v1030 = vpop.f32.mrf.mxu0
        %v1031 = vadd.f32 0.0, %v1030
        %v1032 = vpop.f32.mrf.mxu0
        %v1033 = vadd.f32 0.0, %v1032
        %1034 = vmatmul.bf16.gmra.mxu0 %v601
        %v1035 = vpop.f32.mrf.mxu0
        %v1036 = vadd.f32 0.0, %v1035
        %v1037 = vpop.f32.mrf.mxu0
        %v1038 = vadd.f32 0.0, %v1037
        %1039 = vmatmul.bf16.gmra.mxu0 %v602
        %v1040 = vpop.f32.mrf.mxu0
        %v1041 = vadd.f32 0.0, %v1040
        %v1042 = vpop.f32.mrf.mxu0
        %v1043 = vadd.f32 0.0, %v1042
        %1044 = vmatmul.bf16.gmra.mxu0 %v603
        %v1045 = vpop.f32.mrf.mxu0
        %v1046 = vadd.f32 0.0, %v1045
        %v1047 = vpop.f32.mrf.mxu0
        %v1048 = vadd.f32 0.0, %v1047
        %1049 = vmatmul.bf16.gmra.mxu0 %v604
        %v1050 = vpop.f32.mrf.mxu0
        %v1051 = vadd.f32 0.0, %v1050
        %v1052 = vpop.f32.mrf.mxu0
        %v1053 = vadd.f32 0.0, %v1052
        %1054 = vmatmul.bf16.gmra.mxu0 %v605
        %v1055 = vpop.f32.mrf.mxu0
        %v1056 = vadd.f32 0.0, %v1055
        %v1057 = vpop.f32.mrf.mxu0
        %v1058 = vadd.f32 0.0, %v1057
        %1059 = vmatmul.bf16.gmra.mxu0 %v606
        %v1060 = vpop.f32.mrf.mxu0
        %v1061 = vadd.f32 0.0, %v1060
        %v1062 = vpop.f32.mrf.mxu0
        %v1063 = vadd.f32 0.0, %v1062
        %1064 = vmatmul.bf16.gmra.mxu0 %v607
        %v1065 = vpop.f32.mrf.mxu0
        %v1066 = vadd.f32 0.0, %v1065
        %v1067 = vpop.f32.mrf.mxu0
        %v1068 = vadd.f32 0.0, %v1067
        %1069 = vmatmul.bf16.gmra.mxu0 %v608
        %v1070 = vpop.f32.mrf.mxu0
        %v1071 = vadd.f32 0.0, %v1070
        %v1072 = vpop.f32.mrf.mxu0
        %v1073 = vadd.f32 0.0, %v1072
        %1074 = vmatmul.bf16.gmra.mxu0 %v609
        %v1075 = vpop.f32.mrf.mxu0
        %v1076 = vadd.f32 0.0, %v1075
        %v1077 = vpop.f32.mrf.mxu0
        %v1078 = vadd.f32 0.0, %v1077
        %1079 = vmatmul.bf16.gmra.mxu0 %v610
        %v1080 = vpop.f32.mrf.mxu0
        %v1081 = vadd.f32 0.0, %v1080
        %v1082 = vpop.f32.mrf.mxu0
        %v1083 = vadd.f32 0.0, %v1082
        %1084 = vmatmul.bf16.gmra.mxu0 %v611
        %v1085 = vpop.f32.mrf.mxu0
        %v1086 = vadd.f32 0.0, %v1085
        %v1087 = vpop.f32.mrf.mxu0
        %v1088 = vadd.f32 0.0, %v1087
        %1089 = vmatmul.bf16.gmra.mxu0 %v612
        %v1090 = vpop.f32.mrf.mxu0
        %v1091 = vadd.f32 0.0, %v1090
        %v1092 = vpop.f32.mrf.mxu0
        %v1093 = vadd.f32 0.0, %v1092
        %1094 = vmatmul.bf16.gmra.mxu0 %v613
        %v1095 = vpop.f32.mrf.mxu0
        %v1096 = vadd.f32 0.0, %v1095
        %v1097 = vpop.f32.mrf.mxu0
        %v1098 = vadd.f32 0.0, %v1097
        %1099 = vmatmul.bf16.gmra.mxu0 %v614
        %v1100 = vpop.f32.mrf.mxu0
        %v1101 = vadd.f32 0.0, %v1100
        %v1102 = vpop.f32.mrf.mxu0
        %v1103 = vadd.f32 0.0, %v1102
        %1104 = vmatmul.bf16.gmra.mxu0 %v615
        %v1105 = vpop.f32.mrf.mxu0
        %v1106 = vadd.f32 0.0, %v1105
        %v1107 = vpop.f32.mrf.mxu0
        %v1108 = vadd.f32 0.0, %v1107
        %1109 = vmatmul.bf16.gmra.mxu0 %v616
        %v1110 = vpop.f32.mrf.mxu0
        %v1111 = vadd.f32 0.0, %v1110
        %v1112 = vpop.f32.mrf.mxu0
        %v1113 = vadd.f32 0.0, %v1112
        %1114 = vmatmul.bf16.gmra.mxu0 %v617
        %v1115 = vpop.f32.mrf.mxu0
        %v1116 = vadd.f32 0.0, %v1115
        %v1117 = vpop.f32.mrf.mxu0
        %v1118 = vadd.f32 0.0, %v1117
        %1119 = vmatmul.bf16.gmra.mxu0 %v618
        %v1120 = vpop.f32.mrf.mxu0
        %v1121 = vadd.f32 0.0, %v1120
        %v1122 = vpop.f32.mrf.mxu0
        %v1123 = vadd.f32 0.0, %v1122
        %1124 = vmatmul.bf16.gmra.mxu0 %v619
        %v1125 = vpop.f32.mrf.mxu0
        %v1126 = vadd.f32 0.0, %v1125
        %v1127 = vpop.f32.mrf.mxu0
        %v1128 = vadd.f32 0.0, %v1127
        %1129 = vmatmul.bf16.gmra.mxu0 %v620
        %v1130 = vpop.f32.mrf.mxu0
        %v1131 = vadd.f32 0.0, %v1130
        %v1132 = vpop.f32.mrf.mxu0
        %v1133 = vadd.f32 0.0, %v1132
        %1134 = vmatmul.bf16.gmra.mxu0 %v621
        %v1135 = vpop.f32.mrf.mxu0
        %v1136 = vadd.f32 0.0, %v1135
        %v1137 = vpop.f32.mrf.mxu0
        %v1138 = vadd.f32 0.0, %v1137
        %1139 = vmatmul.bf16.gmra.mxu0 %v622
        %v1140 = vpop.f32.mrf.mxu0
        %v1141 = vadd.f32 0.0, %v1140
        %v1142 = vpop.f32.mrf.mxu0
        %v1143 = vadd.f32 0.0, %v1142
        %1144 = vmatmul.bf16.gmra.mxu0 %v623
        %v1145 = vpop.f32.mrf.mxu0
        %v1146 = vadd.f32 0.0, %v1145
        %v1147 = vpop.f32.mrf.mxu0
        %v1148 = vadd.f32 0.0, %v1147
        %1149 = vmatmul.bf16.gmra.mxu0 %v624
        %v1150 = vpop.f32.mrf.mxu0
        %v1151 = vadd.f32 0.0, %v1150
        %v1152 = vpop.f32.mrf.mxu0
        %v1153 = vadd.f32 0.0, %v1152
        %1154 = vmatmul.bf16.gmra.mxu0 %v625
        %v1155 = vpop.f32.mrf.mxu0
        %v1156 = vadd.f32 0.0, %v1155
        %v1157 = vpop.f32.mrf.mxu0
        %v1158 = vadd.f32 0.0, %v1157
        %1159 = vmatmul.bf16.gmra.mxu0 %v626
        %v1160 = vpop.f32.mrf.mxu0
        %v1161 = vadd.f32 0.0, %v1160
        %v1162 = vpop.f32.mrf.mxu0
        %v1163 = vadd.f32 0.0, %v1162
        %1164 = vmatmul.bf16.gmra.mxu0 %v627
        %v1165 = vpop.f32.mrf.mxu0
        %v1166 = vadd.f32 0.0, %v1165
        %v1167 = vpop.f32.mrf.mxu0
        %v1168 = vadd.f32 0.0, %v1167
        %1169 = vmatmul.bf16.gmra.mxu0 %v628
        %v1170 = vpop.f32.mrf.mxu0
        %v1171 = vadd.f32 0.0, %v1170
        %v1172 = vpop.f32.mrf.mxu0
        %v1173 = vadd.f32 0.0, %v1172
        %1174 = vmatmul.bf16.gmra.mxu0 %v629
        %v1175 = vpop.f32.mrf.mxu0
        %v1176 = vadd.f32 0.0, %v1175
        %v1177 = vpop.f32.mrf.mxu0
        %v1178 = vadd.f32 0.0, %v1177
        %1179 = vmatmul.bf16.gmra.mxu0 %v630
        %v1180 = vpop.f32.mrf.mxu0
        %v1181 = vadd.f32 0.0, %v1180
        %v1182 = vpop.f32.mrf.mxu0
        %v1183 = vadd.f32 0.0, %v1182
        %1184 = vmatmul.bf16.gmra.mxu0 %v631
        %v1185 = vpop.f32.mrf.mxu0
        %v1186 = vadd.f32 0.0, %v1185
        %v1187 = vpop.f32.mrf.mxu0
        %v1188 = vadd.f32 0.0, %v1187
        %1189 = vmatmul.bf16.gmra.mxu0 %v632
        %v1190 = vpop.f32.mrf.mxu0
        %v1191 = vadd.f32 0.0, %v1190
        %v1192 = vpop.f32.mrf.mxu0
        %v1193 = vadd.f32 0.0, %v1192
        %1194 = vmatmul.bf16.gmra.mxu0 %v633
        %v1195 = vpop.f32.mrf.mxu0
        %v1196 = vadd.f32 0.0, %v1195
        %v1197 = vpop.f32.mrf.mxu0
        %v1198 = vadd.f32 0.0, %v1197
        %1199 = vmatmul.bf16.gmra.mxu0 %v634
        %v1200 = vpop.f32.mrf.mxu0
        %v1201 = vadd.f32 0.0, %v1200
        %v1202 = vpop.f32.mrf.mxu0
        %v1203 = vadd.f32 0.0, %v1202
        %1204 = vmatmul.bf16.gmra.mxu0 %v635
        %v1205 = vpop.f32.mrf.mxu0
        %v1206 = vadd.f32 0.0, %v1205
        %v1207 = vpop.f32.mrf.mxu0
        %v1208 = vadd.f32 0.0, %v1207
        %1209 = vdwg.mxu0
        %1210 = vmatpush.bf16.msra.mxu0 %v798
        %1211 = vmatpush.bf16.msra.mxu0 %v794
        %1212 = vmatpush.bf16.msra.mxu0 %v790
        %1213 = vmatpush.bf16.msra.mxu0 %v786
        %1214 = vmatpush.bf16.msra.mxu0 %v782
        %1215 = vmatpush.bf16.msra.mxu0 %v778
        %1216 = vmatpush.bf16.msra.mxu0 %v774
        %1217 = vmatpush.bf16.msra.mxu0 %v770
        %1218 = vmatmul.bf16.gmra.mxu0 %v600
        %v1219 = vpop.f32.mrf.mxu0
        %v1220 = vadd.f32 0.0, %v1219
        %v1221 = vpop.f32.mrf.mxu0
        %v1222 = vadd.f32 0.0, %v1221
        %1223 = vmatmul.bf16.gmra.mxu0 %v601
        %v1224 = vpop.f32.mrf.mxu0
        %v1225 = vadd.f32 0.0, %v1224
        %v1226 = vpop.f32.mrf.mxu0
        %v1227 = vadd.f32 0.0, %v1226
        %1228 = vmatmul.bf16.gmra.mxu0 %v602
        %v1229 = vpop.f32.mrf.mxu0
        %v1230 = vadd.f32 0.0, %v1229
        %v1231 = vpop.f32.mrf.mxu0
        %v1232 = vadd.f32 0.0, %v1231
        %1233 = vmatmul.bf16.gmra.mxu0 %v603
        %v1234 = vpop.f32.mrf.mxu0
        %v1235 = vadd.f32 0.0, %v1234
        %v1236 = vpop.f32.mrf.mxu0
        %v1237 = vadd.f32 0.0, %v1236
        %1238 = vmatmul.bf16.gmra.mxu0 %v604
        %v1239 = vpop.f32.mrf.mxu0
        %v1240 = vadd.f32 0.0, %v1239
        %v1241 = vpop.f32.mrf.mxu0
        %v1242 = vadd.f32 0.0, %v1241
        %1243 = vmatmul.bf16.gmra.mxu0 %v605
        %v1244 = vpop.f32.mrf.mxu0
        %v1245 = vadd.f32 0.0, %v1244
        %v1246 = vpop.f32.mrf.mxu0
        %v1247 = vadd.f32 0.0, %v1246
        %1248 = vmatmul.bf16.gmra.mxu0 %v606
        %v1249 = vpop.f32.mrf.mxu0
        %v1250 = vadd.f32 0.0, %v1249
        %v1251 = vpop.f32.mrf.mxu0
        %v1252 = vadd.f32 0.0, %v1251
        %1253 = vmatmul.bf16.gmra.mxu0 %v607
        %v1254 = vpop.f32.mrf.mxu0
        %v1255 = vadd.f32 0.0, %v1254
        %v1256 = vpop.f32.mrf.mxu0
        %v1257 = vadd.f32 0.0, %v1256
        %1258 = vmatmul.bf16.gmra.mxu0 %v608
        %v1259 = vpop.f32.mrf.mxu0
        %v1260 = vadd.f32 0.0, %v1259
        %v1261 = vpop.f32.mrf.mxu0
        %v1262 = vadd.f32 0.0, %v1261
        %1263 = vmatmul.bf16.gmra.mxu0 %v609
        %v1264 = vpop.f32.mrf.mxu0
        %v1265 = vadd.f32 0.0, %v1264
        %v1266 = vpop.f32.mrf.mxu0
        %v1267 = vadd.f32 0.0, %v1266
        %1268 = vmatmul.bf16.gmra.mxu0 %v610
        %v1269 = vpop.f32.mrf.mxu0
        %v1270 = vadd.f32 0.0, %v1269
        %v1271 = vpop.f32.mrf.mxu0
        %v1272 = vadd.f32 0.0, %v1271
        %1273 = vmatmul.bf16.gmra.mxu0 %v611
        %v1274 = vpop.f32.mrf.mxu0
        %v1275 = vadd.f32 0.0, %v1274
        %v1276 = vpop.f32.mrf.mxu0
        %v1277 = vadd.f32 0.0, %v1276
        %1278 = vmatmul.bf16.gmra.mxu0 %v612
        %v1279 = vpop.f32.mrf.mxu0
        %v1280 = vadd.f32 0.0, %v1279
        %v1281 = vpop.f32.mrf.mxu0
        %v1282 = vadd.f32 0.0, %v1281
        %1283 = vmatmul.bf16.gmra.mxu0 %v613
        %v1284 = vpop.f32.mrf.mxu0
        %v1285 = vadd.f32 0.0, %v1284
        %v1286 = vpop.f32.mrf.mxu0
        %v1287 = vadd.f32 0.0, %v1286
        %1288 = vmatmul.bf16.gmra.mxu0 %v614
        %v1289 = vpop.f32.mrf.mxu0
        %v1290 = vadd.f32 0.0, %v1289
        %v1291 = vpop.f32.mrf.mxu0
        %v1292 = vadd.f32 0.0, %v1291
        %1293 = vmatmul.bf16.gmra.mxu0 %v615
        %v1294 = vpop.f32.mrf.mxu0
        %v1295 = vadd.f32 0.0, %v1294
        %v1296 = vpop.f32.mrf.mxu0
        %v1297 = vadd.f32 0.0, %v1296
        %1298 = vmatmul.bf16.gmra.mxu0 %v616
        %v1299 = vpop.f32.mrf.mxu0
        %v1300 = vadd.f32 0.0, %v1299
        %v1301 = vpop.f32.mrf.mxu0
        %v1302 = vadd.f32 0.0, %v1301
        %1303 = vmatmul.bf16.gmra.mxu0 %v617
        %v1304 = vpop.f32.mrf.mxu0
        %v1305 = vadd.f32 0.0, %v1304
        %v1306 = vpop.f32.mrf.mxu0
        %v1307 = vadd.f32 0.0, %v1306
        %1308 = vmatmul.bf16.gmra.mxu0 %v618
        %v1309 = vpop.f32.mrf.mxu0
        %v1310 = vadd.f32 0.0, %v1309
        %v1311 = vpop.f32.mrf.mxu0
        %v1312 = vadd.f32 0.0, %v1311
        %1313 = vmatmul.bf16.gmra.mxu0 %v619
        %v1314 = vpop.f32.mrf.mxu0
        %v1315 = vadd.f32 0.0, %v1314
        %v1316 = vpop.f32.mrf.mxu0
        %v1317 = vadd.f32 0.0, %v1316
        %1318 = vmatmul.bf16.gmra.mxu0 %v620
        %v1319 = vpop.f32.mrf.mxu0
        %v1320 = vadd.f32 0.0, %v1319
        %v1321 = vpop.f32.mrf.mxu0
        %v1322 = vadd.f32 0.0, %v1321
        %1323 = vmatmul.bf16.gmra.mxu0 %v621
        %v1324 = vpop.f32.mrf.mxu0
        %v1325 = vadd.f32 0.0, %v1324
        %v1326 = vpop.f32.mrf.mxu0
        %v1327 = vadd.f32 0.0, %v1326
        %1328 = vmatmul.bf16.gmra.mxu0 %v622
        %v1329 = vpop.f32.mrf.mxu0
        %v1330 = vadd.f32 0.0, %v1329
        %v1331 = vpop.f32.mrf.mxu0
        %v1332 = vadd.f32 0.0, %v1331
        %1333 = vmatmul.bf16.gmra.mxu0 %v623
        %v1334 = vpop.f32.mrf.mxu0
        %v1335 = vadd.f32 0.0, %v1334
        %v1336 = vpop.f32.mrf.mxu0
        %v1337 = vadd.f32 0.0, %v1336
        %1338 = vmatmul.bf16.gmra.mxu0 %v624
        %v1339 = vpop.f32.mrf.mxu0
        %v1340 = vadd.f32 0.0, %v1339
        %v1341 = vpop.f32.mrf.mxu0
        %v1342 = vadd.f32 0.0, %v1341
        %1343 = vmatmul.bf16.gmra.mxu0 %v625
        %v1344 = vpop.f32.mrf.mxu0
        %v1345 = vadd.f32 0.0, %v1344
        %v1346 = vpop.f32.mrf.mxu0
        %v1347 = vadd.f32 0.0, %v1346
        %1348 = vmatmul.bf16.gmra.mxu0 %v626
        %v1349 = vpop.f32.mrf.mxu0
        %v1350 = vadd.f32 0.0, %v1349
        %v1351 = vpop.f32.mrf.mxu0
        %v1352 = vadd.f32 0.0, %v1351
        %1353 = vmatmul.bf16.gmra.mxu0 %v627
        %v1354 = vpop.f32.mrf.mxu0
        %v1355 = vadd.f32 0.0, %v1354
        %v1356 = vpop.f32.mrf.mxu0
        %v1357 = vadd.f32 0.0, %v1356
        %1358 = vmatmul.bf16.gmra.mxu0 %v628
        %v1359 = vpop.f32.mrf.mxu0
        %v1360 = vadd.f32 0.0, %v1359
        %v1361 = vpop.f32.mrf.mxu0
        %v1362 = vadd.f32 0.0, %v1361
        %1363 = vmatmul.bf16.gmra.mxu0 %v629
        %v1364 = vpop.f32.mrf.mxu0
        %v1365 = vadd.f32 0.0, %v1364
        %v1366 = vpop.f32.mrf.mxu0
        %v1367 = vadd.f32 0.0, %v1366
        %1368 = vmatmul.bf16.gmra.mxu0 %v630
        %v1369 = vpop.f32.mrf.mxu0
        %v1370 = vadd.f32 0.0, %v1369
        %v1371 = vpop.f32.mrf.mxu0
        %v1372 = vadd.f32 0.0, %v1371
        %1373 = vmatmul.bf16.gmra.mxu0 %v631
        %v1374 = vpop.f32.mrf.mxu0
        %v1375 = vadd.f32 0.0, %v1374
        %v1376 = vpop.f32.mrf.mxu0
        %v1377 = vadd.f32 0.0, %v1376
        %1378 = vmatmul.bf16.gmra.mxu0 %v632
        %v1379 = vpop.f32.mrf.mxu0
        %v1380 = vadd.f32 0.0, %v1379
        %v1381 = vpop.f32.mrf.mxu0
        %v1382 = vadd.f32 0.0, %v1381
        %1383 = vmatmul.bf16.gmra.mxu0 %v633
        %v1384 = vpop.f32.mrf.mxu0
        %v1385 = vadd.f32 0.0, %v1384
        %v1386 = vpop.f32.mrf.mxu0
        %v1387 = vadd.f32 0.0, %v1386
        %1388 = vmatmul.bf16.gmra.mxu0 %v634
        %v1389 = vpop.f32.mrf.mxu0
        %v1390 = vadd.f32 0.0, %v1389
        %v1391 = vpop.f32.mrf.mxu0
        %v1392 = vadd.f32 0.0, %v1391
        %1393 = vmatmul.bf16.gmra.mxu0 %v635
        %v1394 = vpop.f32.mrf.mxu0
        %v1395 = vadd.f32 0.0, %v1394
        %v1396 = vpop.f32.mrf.mxu0
        %v1397 = vadd.f32 0.0, %v1396
        %1398 = vdwg.mxu0
        %1399 = vmatpush.bf16.msra.mxu0 %v799
        %1400 = vmatpush.bf16.msra.mxu0 %v795
        %1401 = vmatpush.bf16.msra.mxu0 %v791
        %1402 = vmatpush.bf16.msra.mxu0 %v787
        %1403 = vmatpush.bf16.msra.mxu0 %v783
        %1404 = vmatpush.bf16.msra.mxu0 %v779
        %1405 = vmatpush.bf16.msra.mxu0 %v775
        %1406 = vmatpush.bf16.msra.mxu0 %v771
        %1407 = vmatmul.bf16.gmra.mxu0 %v600
        %v1408 = vpop.f32.mrf.mxu0
        %v1409 = vadd.f32 0.0, %v1408
        %v1410 = vpop.f32.mrf.mxu0
        %v1411 = vadd.f32 0.0, %v1410
        %1412 = vmatmul.bf16.gmra.mxu0 %v601
        %v1413 = vpop.f32.mrf.mxu0
        %v1414 = vadd.f32 0.0, %v1413
        %v1415 = vpop.f32.mrf.mxu0
        %v1416 = vadd.f32 0.0, %v1415
        %1417 = vmatmul.bf16.gmra.mxu0 %v602
        %v1418 = vpop.f32.mrf.mxu0
        %v1419 = vadd.f32 0.0, %v1418
        %v1420 = vpop.f32.mrf.mxu0
        %v1421 = vadd.f32 0.0, %v1420
        %1422 = vmatmul.bf16.gmra.mxu0 %v603
        %v1423 = vpop.f32.mrf.mxu0
        %v1424 = vadd.f32 0.0, %v1423
        %v1425 = vpop.f32.mrf.mxu0
        %v1426 = vadd.f32 0.0, %v1425
        %1427 = vmatmul.bf16.gmra.mxu0 %v604
        %v1428 = vpop.f32.mrf.mxu0
        %v1429 = vadd.f32 0.0, %v1428
        %v1430 = vpop.f32.mrf.mxu0
        %v1431 = vadd.f32 0.0, %v1430
        %1432 = vmatmul.bf16.gmra.mxu0 %v605
        %v1433 = vpop.f32.mrf.mxu0
        %v1434 = vadd.f32 0.0, %v1433
        %v1435 = vpop.f32.mrf.mxu0
        %v1436 = vadd.f32 0.0, %v1435
        %1437 = vmatmul.bf16.gmra.mxu0 %v606
        %v1438 = vpop.f32.mrf.mxu0
        %v1439 = vadd.f32 0.0, %v1438
        %v1440 = vpop.f32.mrf.mxu0
        %v1441 = vadd.f32 0.0, %v1440
        %1442 = vmatmul.bf16.gmra.mxu0 %v607
        %v1443 = vpop.f32.mrf.mxu0
        %v1444 = vadd.f32 0.0, %v1443
        %v1445 = vpop.f32.mrf.mxu0
        %v1446 = vadd.f32 0.0, %v1445
        %1447 = vmatmul.bf16.gmra.mxu0 %v608
        %v1448 = vpop.f32.mrf.mxu0
        %v1449 = vadd.f32 0.0, %v1448
        %v1450 = vpop.f32.mrf.mxu0
        %v1451 = vadd.f32 0.0, %v1450
        %1452 = vmatmul.bf16.gmra.mxu0 %v609
        %v1453 = vpop.f32.mrf.mxu0
        %v1454 = vadd.f32 0.0, %v1453
        %v1455 = vpop.f32.mrf.mxu0
        %v1456 = vadd.f32 0.0, %v1455
        %1457 = vmatmul.bf16.gmra.mxu0 %v610
        %v1458 = vpop.f32.mrf.mxu0
        %v1459 = vadd.f32 0.0, %v1458
        %v1460 = vpop.f32.mrf.mxu0
        %v1461 = vadd.f32 0.0, %v1460
        %1462 = vmatmul.bf16.gmra.mxu0 %v611
        %v1463 = vpop.f32.mrf.mxu0
        %v1464 = vadd.f32 0.0, %v1463
        %v1465 = vpop.f32.mrf.mxu0
        %v1466 = vadd.f32 0.0, %v1465
        %1467 = vmatmul.bf16.gmra.mxu0 %v612
        %v1468 = vpop.f32.mrf.mxu0
        %v1469 = vadd.f32 0.0, %v1468
        %v1470 = vpop.f32.mrf.mxu0
        %v1471 = vadd.f32 0.0, %v1470
        %1472 = vmatmul.bf16.gmra.mxu0 %v613
        %v1473 = vpop.f32.mrf.mxu0
        %v1474 = vadd.f32 0.0, %v1473
        %v1475 = vpop.f32.mrf.mxu0
        %v1476 = vadd.f32 0.0, %v1475
        %1477 = vmatmul.bf16.gmra.mxu0 %v614
        %v1478 = vpop.f32.mrf.mxu0
        %v1479 = vadd.f32 0.0, %v1478
        %v1480 = vpop.f32.mrf.mxu0
        %v1481 = vadd.f32 0.0, %v1480
        %1482 = vmatmul.bf16.gmra.mxu0 %v615
        %v1483 = vpop.f32.mrf.mxu0
        %v1484 = vadd.f32 0.0, %v1483
        %v1485 = vpop.f32.mrf.mxu0
        %v1486 = vadd.f32 0.0, %v1485
        %1487 = vmatmul.bf16.gmra.mxu0 %v616
        %v1488 = vpop.f32.mrf.mxu0
        %v1489 = vadd.f32 0.0, %v1488
        %v1490 = vpop.f32.mrf.mxu0
        %v1491 = vadd.f32 0.0, %v1490
        %1492 = vmatmul.bf16.gmra.mxu0 %v617
        %v1493 = vpop.f32.mrf.mxu0
        %v1494 = vadd.f32 0.0, %v1493
        %v1495 = vpop.f32.mrf.mxu0
        %v1496 = vadd.f32 0.0, %v1495
        %1497 = vmatmul.bf16.gmra.mxu0 %v618
        %v1498 = vpop.f32.mrf.mxu0
        %v1499 = vadd.f32 0.0, %v1498
        %v1500 = vpop.f32.mrf.mxu0
        %v1501 = vadd.f32 0.0, %v1500
        %1502 = vmatmul.bf16.gmra.mxu0 %v619
        %v1503 = vpop.f32.mrf.mxu0
        %v1504 = vadd.f32 0.0, %v1503
        %v1505 = vpop.f32.mrf.mxu0
        %v1506 = vadd.f32 0.0, %v1505
        %1507 = vmatmul.bf16.gmra.mxu0 %v620
        %v1508 = vpop.f32.mrf.mxu0
        %v1509 = vadd.f32 0.0, %v1508
        %v1510 = vpop.f32.mrf.mxu0
        %v1511 = vadd.f32 0.0, %v1510
        %1512 = vmatmul.bf16.gmra.mxu0 %v621
        %v1513 = vpop.f32.mrf.mxu0
        %v1514 = vadd.f32 0.0, %v1513
        %v1515 = vpop.f32.mrf.mxu0
        %v1516 = vadd.f32 0.0, %v1515
        %1517 = vmatmul.bf16.gmra.mxu0 %v622
        %v1518 = vpop.f32.mrf.mxu0
        %v1519 = vadd.f32 0.0, %v1518
        %v1520 = vpop.f32.mrf.mxu0
        %v1521 = vadd.f32 0.0, %v1520
        %1522 = vmatmul.bf16.gmra.mxu0 %v623
        %v1523 = vpop.f32.mrf.mxu0
        %v1524 = vadd.f32 0.0, %v1523
        %v1525 = vpop.f32.mrf.mxu0
        %v1526 = vadd.f32 0.0, %v1525
        %1527 = vmatmul.bf16.gmra.mxu0 %v624
        %v1528 = vpop.f32.mrf.mxu0
        %v1529 = vadd.f32 0.0, %v1528
        %v1530 = vpop.f32.mrf.mxu0
        %v1531 = vadd.f32 0.0, %v1530
        %1532 = vmatmul.bf16.gmra.mxu0 %v625
        %v1533 = vpop.f32.mrf.mxu0
        %v1534 = vadd.f32 0.0, %v1533
        %v1535 = vpop.f32.mrf.mxu0
        %v1536 = vadd.f32 0.0, %v1535
        %1537 = vmatmul.bf16.gmra.mxu0 %v626
        %v1538 = vpop.f32.mrf.mxu0
        %v1539 = vadd.f32 0.0, %v1538
        %v1540 = vpop.f32.mrf.mxu0
        %v1541 = vadd.f32 0.0, %v1540
        %1542 = vmatmul.bf16.gmra.mxu0 %v627
        %v1543 = vpop.f32.mrf.mxu0
        %v1544 = vadd.f32 0.0, %v1543
        %v1545 = vpop.f32.mrf.mxu0
        %v1546 = vadd.f32 0.0, %v1545
        %1547 = vmatmul.bf16.gmra.mxu0 %v628
        %v1548 = vpop.f32.mrf.mxu0
        %v1549 = vadd.f32 0.0, %v1548
        %v1550 = vpop.f32.mrf.mxu0
        %v1551 = vadd.f32 0.0, %v1550
        %1552 = vmatmul.bf16.gmra.mxu0 %v629
        %v1553 = vpop.f32.mrf.mxu0
        %v1554 = vadd.f32 0.0, %v1553
        %v1555 = vpop.f32.mrf.mxu0
        %v1556 = vadd.f32 0.0, %v1555
        %1557 = vmatmul.bf16.gmra.mxu0 %v630
        %v1558 = vpop.f32.mrf.mxu0
        %v1559 = vadd.f32 0.0, %v1558
        %v1560 = vpop.f32.mrf.mxu0
        %v1561 = vadd.f32 0.0, %v1560
        %1562 = vmatmul.bf16.gmra.mxu0 %v631
        %v1563 = vpop.f32.mrf.mxu0
        %v1564 = vadd.f32 0.0, %v1563
        %v1565 = vpop.f32.mrf.mxu0
        %v1566 = vadd.f32 0.0, %v1565
        %1567 = vmatmul.bf16.gmra.mxu0 %v632
        %v1568 = vpop.f32.mrf.mxu0
        %v1569 = vadd.f32 0.0, %v1568
        %v1570 = vpop.f32.mrf.mxu0
        %v1571 = vadd.f32 0.0, %v1570
        %1572 = vmatmul.bf16.gmra.mxu0 %v633
        %v1573 = vpop.f32.mrf.mxu0
        %v1574 = vadd.f32 0.0, %v1573
        %v1575 = vpop.f32.mrf.mxu0
        %v1576 = vadd.f32 0.0, %v1575
        %1577 = vmatmul.bf16.gmra.mxu0 %v634
        %v1578 = vpop.f32.mrf.mxu0
        %v1579 = vadd.f32 0.0, %v1578
        %v1580 = vpop.f32.mrf.mxu0
        %v1581 = vadd.f32 0.0, %v1580
        %1582 = vmatmul.bf16.gmra.mxu0 %v635
        %v1583 = vpop.f32.mrf.mxu0
        %v1584 = vadd.f32 0.0, %v1583
        %v1585 = vpop.f32.mrf.mxu0
        %v1586 = vadd.f32 0.0, %v1585
        %1587 = vdwg.mxu0
        %1588 = vrot.lane.b32.xlu0 %v842, 17
        %v1589 = vpop.permute.xlu0 %1588
        %1590 = vrot.lane.b32.xlu0 %v844, 17
        %v1591 = vpop.permute.xlu0 %1590
        %1592 = vrot.lane.b32.xlu0 %v847, 17
        %v1593 = vpop.permute.xlu0 %1592
        %1594 = vrot.lane.b32.xlu0 %v849, 17
        %v1595 = vpop.permute.xlu0 %1594
        %1596 = vrot.lane.b32.xlu0 %v852, 17
        %v1597 = vpop.permute.xlu0 %1596
        %1598 = vrot.lane.b32.xlu0 %v854, 17
        %v1599 = vpop.permute.xlu0 %1598
        %1600 = vrot.lane.b32.xlu0 %v857, 17
        %v1601 = vpop.permute.xlu0 %1600
        %1602 = vrot.lane.b32.xlu0 %v859, 17
        %v1603 = vpop.permute.xlu0 %1602
        %1604 = vrot.lane.b32.xlu0 %v1031, 17
        %v1605 = vpop.permute.xlu0 %1604
        %1606 = vrot.lane.b32.xlu0 %v1033, 17
        %v1607 = vpop.permute.xlu0 %1606
        %1608 = vrot.lane.b32.xlu0 %v1036, 17
        %v1609 = vpop.permute.xlu0 %1608
        %1610 = vrot.lane.b32.xlu0 %v1038, 17
        %v1611 = vpop.permute.xlu0 %1610
        %1612 = vrot.lane.b32.xlu0 %v1041, 17
        %v1613 = vpop.permute.xlu0 %1612
        %1614 = vrot.lane.b32.xlu0 %v1043, 17
        %v1615 = vpop.permute.xlu0 %1614
        %1616 = vrot.lane.b32.xlu0 %v1046, 17
        %v1617 = vpop.permute.xlu0 %1616
        %1618 = vrot.lane.b32.xlu0 %v1048, 17
        %v1619 = vpop.permute.xlu0 %1618
        %1620 = vrot.lane.b32.xlu0 %v1220, 17
        %v1621 = vpop.permute.xlu0 %1620
        %1622 = vrot.lane.b32.xlu0 %v1222, 17
        %v1623 = vpop.permute.xlu0 %1622
        %1624 = vrot.lane.b32.xlu0 %v1225, 17
        %v1625 = vpop.permute.xlu0 %1624
        %1626 = vrot.lane.b32.xlu0 %v1227, 17
        %v1627 = vpop.permute.xlu0 %1626
        %1628 = vrot.lane.b32.xlu0 %v1230, 17
        %v1629 = vpop.permute.xlu0 %1628
        %1630 = vrot.lane.b32.xlu0 %v1232, 17
        %v1631 = vpop.permute.xlu0 %1630
        %1632 = vrot.lane.b32.xlu0 %v1235, 17
        %v1633 = vpop.permute.xlu0 %1632
        %1634 = vrot.lane.b32.xlu0 %v1237, 17
        %v1635 = vpop.permute.xlu0 %1634
        %1636 = vrot.lane.b32.xlu0 %v1409, 17
        %v1637 = vpop.permute.xlu0 %1636
        %1638 = vrot.lane.b32.xlu0 %v1411, 17
        %v1639 = vpop.permute.xlu0 %1638
        %1640 = vrot.lane.b32.xlu0 %v1414, 17
        %v1641 = vpop.permute.xlu0 %1640
        %1642 = vrot.lane.b32.xlu0 %v1416, 17
        %v1643 = vpop.permute.xlu0 %1642
        %1644 = vrot.lane.b32.xlu0 %v1419, 17
        %v1645 = vpop.permute.xlu0 %1644
        %1646 = vrot.lane.b32.xlu0 %v1421, 17
        %v1647 = vpop.permute.xlu0 %1646
        %1648 = vrot.lane.b32.xlu0 %v1424, 17
        %v1649 = vpop.permute.xlu0 %1648
        %1650 = vrot.lane.b32.xlu0 %v1426, 17
        %v1651 = vpop.permute.xlu0 %1650
        %v1652 = vlaneseq
        %v1653 = vand.u32 %v1652, 127
        %vm1654 = vcmp.lt.s32.totalorder %v1653, 17
        %v1655 = vsel %vm1654, %v1621, %v1637
        %v1656 = vsel %vm1654, %v1623, %v1639
        %v1657 = vsel %vm1654, %v1625, %v1641
        %v1658 = vsel %vm1654, %v1627, %v1643
        %v1659 = vsel %vm1654, %v1629, %v1645
        %v1660 = vsel %vm1654, %v1631, %v1647
        %v1661 = vsel %vm1654, %v1633, %v1649
        %v1662 = vsel %vm1654, %v1635, %v1651
        %v1663 = vsel %vm1654, %v1605, %v1621
        %v1664 = vsel %vm1654, %v1607, %v1623
        %v1665 = vsel %vm1654, %v1609, %v1625
        %v1666 = vsel %vm1654, %v1611, %v1627
        %v1667 = vsel %vm1654, %v1613, %v1629
        %v1668 = vsel %vm1654, %v1615, %v1631
        %v1669 = vsel %vm1654, %v1617, %v1633
        %v1670 = vsel %vm1654, %v1619, %v1635
        %v1671 = vsel %vm1654, %v1589, %v1605
        %v1672 = vsel %vm1654, %v1591, %v1607
        %v1673 = vsel %vm1654, %v1593, %v1609
        %v1674 = vsel %vm1654, %v1595, %v1611
        %v1675 = vsel %vm1654, %v1597, %v1613
        %v1676 = vsel %vm1654, %v1599, %v1615
        %v1677 = vsel %vm1654, %v1601, %v1617
        %v1678 = vsel %vm1654, %v1603, %v1619
        %v1679 = vsel %vm1654, %v1637, %v1589
        %v1680 = vsel %vm1654, %v1639, %v1591
        %v1681 = vsel %vm1654, %v1641, %v1593
        %v1682 = vsel %vm1654, %v1643, %v1595
        %v1683 = vsel %vm1654, %v1645, %v1597
        %v1684 = vsel %vm1654, %v1647, %v1599
        %v1685 = vsel %vm1654, %v1649, %v1601
        %v1686 = vsel %vm1654, %v1651, %v1603
        %v1687 = vperm.slane %v348, 0
        %v1688 = vperm.slane %v349, 0
        %v1689 = vperm.slane %v350, 0
        %v1690 = vperm.slane %v351, 0
        %v1691 = vmul.f32 %v1679, %v1687
        %v1692 = vmul.f32 %v1671, %v1688
        %v1693 = vmul.f32 %v1663, %v1689
        %v1694 = vmul.f32 %v1655, %v1690
        %v1695 = vmul.f32 %v1680, %v1687
        %v1696 = vmul.f32 %v1672, %v1688
        %v1697 = vmul.f32 %v1664, %v1689
        %v1698 = vmul.f32 %v1656, %v1690
        %v1699 = vmul.f32 %v1681, %v1687
        %v1700 = vmul.f32 %v1673, %v1688
        %v1701 = vmul.f32 %v1665, %v1689
        %v1702 = vmul.f32 %v1657, %v1690
        %v1703 = vmul.f32 %v1682, %v1687
        %v1704 = vmul.f32 %v1674, %v1688
        %v1705 = vmul.f32 %v1666, %v1689
        %v1706 = vmul.f32 %v1658, %v1690
        %v1707 = vmul.f32 %v1683, %v1687
        %v1708 = vmul.f32 %v1675, %v1688
        %v1709 = vmul.f32 %v1667, %v1689
        %v1710 = vmul.f32 %v1659, %v1690
        %v1711 = vmul.f32 %v1684, %v1687
        %v1712 = vmul.f32 %v1676, %v1688
        %v1713 = vmul.f32 %v1668, %v1689
        %v1714 = vmul.f32 %v1660, %v1690
        %v1715 = vmul.f32 %v1685, %v1687
        %v1716 = vmul.f32 %v1677, %v1688
        %v1717 = vmul.f32 %v1669, %v1689
        %v1718 = vmul.f32 %v1661, %v1690
        %v1719 = vmul.f32 %v1686, %v1687
        %v1720 = vmul.f32 %v1678, %v1688
        %v1721 = vmul.f32 %v1670, %v1689
        %v1722 = vmul.f32 %v1662, %v1690
        %1723 = vrot.lane.b32.xlu0 %v862, 16
        %v1724 = vpop.permute.xlu0 %1723
        %1725 = vrot.lane.b32.xlu0 %v864, 16
        %v1726 = vpop.permute.xlu0 %1725
        %1727 = vrot.lane.b32.xlu0 %v867, 16
        %v1728 = vpop.permute.xlu0 %1727
        %1729 = vrot.lane.b32.xlu0 %v869, 16
        %v1730 = vpop.permute.xlu0 %1729
        %1731 = vrot.lane.b32.xlu0 %v872, 16
        %v1732 = vpop.permute.xlu0 %1731
        %1733 = vrot.lane.b32.xlu0 %v874, 16
        %v1734 = vpop.permute.xlu0 %1733
        %1735 = vrot.lane.b32.xlu0 %v877, 16
        %v1736 = vpop.permute.xlu0 %1735
        %1737 = vrot.lane.b32.xlu0 %v879, 16
        %v1738 = vpop.permute.xlu0 %1737
        %1739 = vrot.lane.b32.xlu0 %v1051, 16
        %v1740 = vpop.permute.xlu0 %1739
        %1741 = vrot.lane.b32.xlu0 %v1053, 16
        %v1742 = vpop.permute.xlu0 %1741
        %1743 = vrot.lane.b32.xlu0 %v1056, 16
        %v1744 = vpop.permute.xlu0 %1743
        %1745 = vrot.lane.b32.xlu0 %v1058, 16
        %v1746 = vpop.permute.xlu0 %1745
        %1747 = vrot.lane.b32.xlu0 %v1061, 16
        %v1748 = vpop.permute.xlu0 %1747
        %1749 = vrot.lane.b32.xlu0 %v1063, 16
        %v1750 = vpop.permute.xlu0 %1749
        %1751 = vrot.lane.b32.xlu0 %v1066, 16
        %v1752 = vpop.permute.xlu0 %1751
        %1753 = vrot.lane.b32.xlu0 %v1068, 16
        %v1754 = vpop.permute.xlu0 %1753
        %1755 = vrot.lane.b32.xlu0 %v1240, 16
        %v1756 = vpop.permute.xlu0 %1755
        %1757 = vrot.lane.b32.xlu0 %v1242, 16
        %v1758 = vpop.permute.xlu0 %1757
        %1759 = vrot.lane.b32.xlu0 %v1245, 16
        %v1760 = vpop.permute.xlu0 %1759
        %1761 = vrot.lane.b32.xlu0 %v1247, 16
        %v1762 = vpop.permute.xlu0 %1761
        %1763 = vrot.lane.b32.xlu0 %v1250, 16
        %v1764 = vpop.permute.xlu0 %1763
        %1765 = vrot.lane.b32.xlu0 %v1252, 16
        %v1766 = vpop.permute.xlu0 %1765
        %1767 = vrot.lane.b32.xlu0 %v1255, 16
        %v1768 = vpop.permute.xlu0 %1767
        %1769 = vrot.lane.b32.xlu0 %v1257, 16
        %v1770 = vpop.permute.xlu0 %1769
        %1771 = vrot.lane.b32.xlu0 %v1429, 16
        %v1772 = vpop.permute.xlu0 %1771
        %1773 = vrot.lane.b32.xlu0 %v1431, 16
        %v1774 = vpop.permute.xlu0 %1773
        %1775 = vrot.lane.b32.xlu0 %v1434, 16
        %v1776 = vpop.permute.xlu0 %1775
        %1777 = vrot.lane.b32.xlu0 %v1436, 16
        %v1778 = vpop.permute.xlu0 %1777
        %1779 = vrot.lane.b32.xlu0 %v1439, 16
        %v1780 = vpop.permute.xlu0 %1779
        %1781 = vrot.lane.b32.xlu0 %v1441, 16
        %v1782 = vpop.permute.xlu0 %1781
        %1783 = vrot.lane.b32.xlu0 %v1444, 16
        %v1784 = vpop.permute.xlu0 %1783
        %1785 = vrot.lane.b32.xlu0 %v1446, 16
        %v1786 = vpop.permute.xlu0 %1785
        %vm1787 = vcmp.lt.s32.totalorder %v1653, 16
        %v1788 = vsel %vm1787, %v1756, %v1772
        %v1789 = vsel %vm1787, %v1758, %v1774
        %v1790 = vsel %vm1787, %v1760, %v1776
        %v1791 = vsel %vm1787, %v1762, %v1778
        %v1792 = vsel %vm1787, %v1764, %v1780
        %v1793 = vsel %vm1787, %v1766, %v1782
        %v1794 = vsel %vm1787, %v1768, %v1784
        %v1795 = vsel %vm1787, %v1770, %v1786
        %v1796 = vsel %vm1787, %v1740, %v1756
        %v1797 = vsel %vm1787, %v1742, %v1758
        %v1798 = vsel %vm1787, %v1744, %v1760
        %v1799 = vsel %vm1787, %v1746, %v1762
        %v1800 = vsel %vm1787, %v1748, %v1764
        %v1801 = vsel %vm1787, %v1750, %v1766
        %v1802 = vsel %vm1787, %v1752, %v1768
        %v1803 = vsel %vm1787, %v1754, %v1770
        %v1804 = vsel %vm1787, %v1724, %v1740
        %v1805 = vsel %vm1787, %v1726, %v1742
        %v1806 = vsel %vm1787, %v1728, %v1744
        %v1807 = vsel %vm1787, %v1730, %v1746
        %v1808 = vsel %vm1787, %v1732, %v1748
        %v1809 = vsel %vm1787, %v1734, %v1750
        %v1810 = vsel %vm1787, %v1736, %v1752
        %v1811 = vsel %vm1787, %v1738, %v1754
        %v1812 = vsel %vm1787, %v1772, %v1724
        %v1813 = vsel %vm1787, %v1774, %v1726
        %v1814 = vsel %vm1787, %v1776, %v1728
        %v1815 = vsel %vm1787, %v1778, %v1730
        %v1816 = vsel %vm1787, %v1780, %v1732
        %v1817 = vsel %vm1787, %v1782, %v1734
        %v1818 = vsel %vm1787, %v1784, %v1736
        %v1819 = vsel %vm1787, %v1786, %v1738
        %v1820 = vperm.slane %v348, 1
        %v1821 = vperm.slane %v349, 1
        %v1822 = vperm.slane %v350, 1
        %v1823 = vperm.slane %v351, 1
        %v1824 = vmul.f32 %v1812, %v1820
        %v1825 = vmul.f32 %v1804, %v1821
        %v1826 = vmul.f32 %v1796, %v1822
        %v1827 = vmul.f32 %v1788, %v1823
        %v1828 = vmul.f32 %v1813, %v1820
        %v1829 = vmul.f32 %v1805, %v1821
        %v1830 = vmul.f32 %v1797, %v1822
        %v1831 = vmul.f32 %v1789, %v1823
        %v1832 = vmul.f32 %v1814, %v1820
        %v1833 = vmul.f32 %v1806, %v1821
        %v1834 = vmul.f32 %v1798, %v1822
        %v1835 = vmul.f32 %v1790, %v1823
        %v1836 = vmul.f32 %v1815, %v1820
        %v1837 = vmul.f32 %v1807, %v1821
        %v1838 = vmul.f32 %v1799, %v1822
        %v1839 = vmul.f32 %v1791, %v1823
        %v1840 = vmul.f32 %v1816, %v1820
        %v1841 = vmul.f32 %v1808, %v1821
        %v1842 = vmul.f32 %v1800, %v1822
        %v1843 = vmul.f32 %v1792, %v1823
        %v1844 = vmul.f32 %v1817, %v1820
        %v1845 = vmul.f32 %v1809, %v1821
        %v1846 = vmul.f32 %v1801, %v1822
        %v1847 = vmul.f32 %v1793, %v1823
        %v1848 = vmul.f32 %v1818, %v1820
        %v1849 = vmul.f32 %v1810, %v1821
        %v1850 = vmul.f32 %v1802, %v1822
        %v1851 = vmul.f32 %v1794, %v1823
        %v1852 = vmul.f32 %v1819, %v1820
        %v1853 = vmul.f32 %v1811, %v1821
        %v1854 = vmul.f32 %v1803, %v1822
        %v1855 = vmul.f32 %v1795, %v1823
        %v1856 = vadd.f32 %v1691, %v1824
        %v1857 = vadd.f32 %v1692, %v1825
        %v1858 = vadd.f32 %v1693, %v1826
        %v1859 = vadd.f32 %v1694, %v1827
        %v1860 = vadd.f32 %v1695, %v1828
        %v1861 = vadd.f32 %v1696, %v1829
        %v1862 = vadd.f32 %v1697, %v1830
        %v1863 = vadd.f32 %v1698, %v1831
        %v1864 = vadd.f32 %v1699, %v1832
        %v1865 = vadd.f32 %v1700, %v1833
        %v1866 = vadd.f32 %v1701, %v1834
        %v1867 = vadd.f32 %v1702, %v1835
        %v1868 = vadd.f32 %v1703, %v1836
        %v1869 = vadd.f32 %v1704, %v1837
        %v1870 = vadd.f32 %v1705, %v1838
        %v1871 = vadd.f32 %v1706, %v1839
        %v1872 = vadd.f32 %v1707, %v1840
        %v1873 = vadd.f32 %v1708, %v1841
        %v1874 = vadd.f32 %v1709, %v1842
        %v1875 = vadd.f32 %v1710, %v1843
        %v1876 = vadd.f32 %v1711, %v1844
        %v1877 = vadd.f32 %v1712, %v1845
        %v1878 = vadd.f32 %v1713, %v1846
        %v1879 = vadd.f32 %v1714, %v1847
        %v1880 = vadd.f32 %v1715, %v1848
        %v1881 = vadd.f32 %v1716, %v1849
        %v1882 = vadd.f32 %v1717, %v1850
        %v1883 = vadd.f32 %v1718, %v1851
        %v1884 = vadd.f32 %v1719, %v1852
        %v1885 = vadd.f32 %v1720, %v1853
        %v1886 = vadd.f32 %v1721, %v1854
        %v1887 = vadd.f32 %v1722, %v1855
        %1888 = vrot.lane.b32.xlu0 %v882, 15
        %v1889 = vpop.permute.xlu0 %1888
        %1890 = vrot.lane.b32.xlu0 %v884, 15
        %v1891 = vpop.permute.xlu0 %1890
        %1892 = vrot.lane.b32.xlu0 %v887, 15
        %v1893 = vpop.permute.xlu0 %1892
        %1894 = vrot.lane.b32.xlu0 %v889, 15
        %v1895 = vpop.permute.xlu0 %1894
        %1896 = vrot.lane.b32.xlu0 %v892, 15
        %v1897 = vpop.permute.xlu0 %1896
        %1898 = vrot.lane.b32.xlu0 %v894, 15
        %v1899 = vpop.permute.xlu0 %1898
        %1900 = vrot.lane.b32.xlu0 %v897, 15
        %v1901 = vpop.permute.xlu0 %1900
        %1902 = vrot.lane.b32.xlu0 %v899, 15
        %v1903 = vpop.permute.xlu0 %1902
        %1904 = vrot.lane.b32.xlu0 %v1071, 15
        %v1905 = vpop.permute.xlu0 %1904
        %1906 = vrot.lane.b32.xlu0 %v1073, 15
        %v1907 = vpop.permute.xlu0 %1906
        %1908 = vrot.lane.b32.xlu0 %v1076, 15
        %v1909 = vpop.permute.xlu0 %1908
        %1910 = vrot.lane.b32.xlu0 %v1078, 15
        %v1911 = vpop.permute.xlu0 %1910
        %1912 = vrot.lane.b32.xlu0 %v1081, 15
        %v1913 = vpop.permute.xlu0 %1912
        %1914 = vrot.lane.b32.xlu0 %v1083, 15
        %v1915 = vpop.permute.xlu0 %1914
        %1916 = vrot.lane.b32.xlu0 %v1086, 15
        %v1917 = vpop.permute.xlu0 %1916
        %1918 = vrot.lane.b32.xlu0 %v1088, 15
        %v1919 = vpop.permute.xlu0 %1918
        %1920 = vrot.lane.b32.xlu0 %v1260, 15
        %v1921 = vpop.permute.xlu0 %1920
        %1922 = vrot.lane.b32.xlu0 %v1262, 15
        %v1923 = vpop.permute.xlu0 %1922
        %1924 = vrot.lane.b32.xlu0 %v1265, 15
        %v1925 = vpop.permute.xlu0 %1924
        %1926 = vrot.lane.b32.xlu0 %v1267, 15
        %v1927 = vpop.permute.xlu0 %1926
        %1928 = vrot.lane.b32.xlu0 %v1270, 15
        %v1929 = vpop.permute.xlu0 %1928
        %1930 = vrot.lane.b32.xlu0 %v1272, 15
        %v1931 = vpop.permute.xlu0 %1930
        %1932 = vrot.lane.b32.xlu0 %v1275, 15
        %v1933 = vpop.permute.xlu0 %1932
        %1934 = vrot.lane.b32.xlu0 %v1277, 15
        %v1935 = vpop.permute.xlu0 %1934
        %1936 = vrot.lane.b32.xlu0 %v1449, 15
        %v1937 = vpop.permute.xlu0 %1936
        %1938 = vrot.lane.b32.xlu0 %v1451, 15
        %v1939 = vpop.permute.xlu0 %1938
        %1940 = vrot.lane.b32.xlu0 %v1454, 15
        %v1941 = vpop.permute.xlu0 %1940
        %1942 = vrot.lane.b32.xlu0 %v1456, 15
        %v1943 = vpop.permute.xlu0 %1942
        %1944 = vrot.lane.b32.xlu0 %v1459, 15
        %v1945 = vpop.permute.xlu0 %1944
        %1946 = vrot.lane.b32.xlu0 %v1461, 15
        %v1947 = vpop.permute.xlu0 %1946
        %1948 = vrot.lane.b32.xlu0 %v1464, 15
        %v1949 = vpop.permute.xlu0 %1948
        %1950 = vrot.lane.b32.xlu0 %v1466, 15
        %v1951 = vpop.permute.xlu0 %1950
        %vm1952 = vcmp.lt.s32.totalorder %v1653, 15
        %v1953 = vsel %vm1952, %v1921, %v1937
        %v1954 = vsel %vm1952, %v1923, %v1939
        %v1955 = vsel %vm1952, %v1925, %v1941
        %v1956 = vsel %vm1952, %v1927, %v1943
        %v1957 = vsel %vm1952, %v1929, %v1945
        %v1958 = vsel %vm1952, %v1931, %v1947
        %v1959 = vsel %vm1952, %v1933, %v1949
        %v1960 = vsel %vm1952, %v1935, %v1951
        %v1961 = vsel %vm1952, %v1905, %v1921
        %v1962 = vsel %vm1952, %v1907, %v1923
        %v1963 = vsel %vm1952, %v1909, %v1925
        %v1964 = vsel %vm1952, %v1911, %v1927
        %v1965 = vsel %vm1952, %v1913, %v1929
        %v1966 = vsel %vm1952, %v1915, %v1931
        %v1967 = vsel %vm1952, %v1917, %v1933
        %v1968 = vsel %vm1952, %v1919, %v1935
        %v1969 = vsel %vm1952, %v1889, %v1905
        %v1970 = vsel %vm1952, %v1891, %v1907
        %v1971 = vsel %vm1952, %v1893, %v1909
        %v1972 = vsel %vm1952, %v1895, %v1911
        %v1973 = vsel %vm1952, %v1897, %v1913
        %v1974 = vsel %vm1952, %v1899, %v1915
        %v1975 = vsel %vm1952, %v1901, %v1917
        %v1976 = vsel %vm1952, %v1903, %v1919
        %v1977 = vsel %vm1952, %v1937, %v1889
        %v1978 = vsel %vm1952, %v1939, %v1891
        %v1979 = vsel %vm1952, %v1941, %v1893
        %v1980 = vsel %vm1952, %v1943, %v1895
        %v1981 = vsel %vm1952, %v1945, %v1897
        %v1982 = vsel %vm1952, %v1947, %v1899
        %v1983 = vsel %vm1952, %v1949, %v1901
        %v1984 = vsel %vm1952, %v1951, %v1903
        %v1985 = vperm.slane %v348, 2
        %v1986 = vperm.slane %v349, 2
        %v1987 = vperm.slane %v350, 2
        %v1988 = vperm.slane %v351, 2
        %v1989 = vmul.f32 %v1977, %v1985
        %v1990 = vmul.f32 %v1969, %v1986
        %v1991 = vmul.f32 %v1961, %v1987
        %v1992 = vmul.f32 %v1953, %v1988
        %v1993 = vmul.f32 %v1978, %v1985
        %v1994 = vmul.f32 %v1970, %v1986
        %v1995 = vmul.f32 %v1962, %v1987
        %v1996 = vmul.f32 %v1954, %v1988
        %v1997 = vmul.f32 %v1979, %v1985
        %v1998 = vmul.f32 %v1971, %v1986
        %v1999 = vmul.f32 %v1963, %v1987
        %v2000 = vmul.f32 %v1955, %v1988
        %v2001 = vmul.f32 %v1980, %v1985
        %v2002 = vmul.f32 %v1972, %v1986
        %v2003 = vmul.f32 %v1964, %v1987
        %v2004 = vmul.f32 %v1956, %v1988
        %v2005 = vmul.f32 %v1981, %v1985
        %v2006 = vmul.f32 %v1973, %v1986
        %v2007 = vmul.f32 %v1965, %v1987
        %v2008 = vmul.f32 %v1957, %v1988
        %v2009 = vmul.f32 %v1982, %v1985
        %v2010 = vmul.f32 %v1974, %v1986
        %v2011 = vmul.f32 %v1966, %v1987
        %v2012 = vmul.f32 %v1958, %v1988
        %v2013 = vmul.f32 %v1983, %v1985
        %v2014 = vmul.f32 %v1975, %v1986
        %v2015 = vmul.f32 %v1967, %v1987
        %v2016 = vmul.f32 %v1959, %v1988
        %v2017 = vmul.f32 %v1984, %v1985
        %v2018 = vmul.f32 %v1976, %v1986
        %v2019 = vmul.f32 %v1968, %v1987
        %v2020 = vmul.f32 %v1960, %v1988
        %v2021 = vadd.f32 %v1856, %v1989
        %v2022 = vadd.f32 %v1857, %v1990
        %v2023 = vadd.f32 %v1858, %v1991
        %v2024 = vadd.f32 %v1859, %v1992
        %v2025 = vadd.f32 %v1860, %v1993
        %v2026 = vadd.f32 %v1861, %v1994
        %v2027 = vadd.f32 %v1862, %v1995
        %v2028 = vadd.f32 %v1863, %v1996
        %v2029 = vadd.f32 %v1864, %v1997
        %v2030 = vadd.f32 %v1865, %v1998
        %v2031 = vadd.f32 %v1866, %v1999
        %v2032 = vadd.f32 %v1867, %v2000
        %v2033 = vadd.f32 %v1868, %v2001
        %v2034 = vadd.f32 %v1869, %v2002
        %v2035 = vadd.f32 %v1870, %v2003
        %v2036 = vadd.f32 %v1871, %v2004
        %v2037 = vadd.f32 %v1872, %v2005
        %v2038 = vadd.f32 %v1873, %v2006
        %v2039 = vadd.f32 %v1874, %v2007
        %v2040 = vadd.f32 %v1875, %v2008
        %v2041 = vadd.f32 %v1876, %v2009
        %v2042 = vadd.f32 %v1877, %v2010
        %v2043 = vadd.f32 %v1878, %v2011
        %v2044 = vadd.f32 %v1879, %v2012
        %v2045 = vadd.f32 %v1880, %v2013
        %v2046 = vadd.f32 %v1881, %v2014
        %v2047 = vadd.f32 %v1882, %v2015
        %v2048 = vadd.f32 %v1883, %v2016
        %v2049 = vadd.f32 %v1884, %v2017
        %v2050 = vadd.f32 %v1885, %v2018
        %v2051 = vadd.f32 %v1886, %v2019
        %v2052 = vadd.f32 %v1887, %v2020
        %2053 = vrot.lane.b32.xlu0 %v902, 1
        %v2054 = vpop.permute.xlu0 %2053
        %2055 = vrot.lane.b32.xlu0 %v904, 1
        %v2056 = vpop.permute.xlu0 %2055
        %2057 = vrot.lane.b32.xlu0 %v907, 1
        %v2058 = vpop.permute.xlu0 %2057
        %2059 = vrot.lane.b32.xlu0 %v909, 1
        %v2060 = vpop.permute.xlu0 %2059
        %2061 = vrot.lane.b32.xlu0 %v912, 1
        %v2062 = vpop.permute.xlu0 %2061
        %2063 = vrot.lane.b32.xlu0 %v914, 1
        %v2064 = vpop.permute.xlu0 %2063
        %2065 = vrot.lane.b32.xlu0 %v917, 1
        %v2066 = vpop.permute.xlu0 %2065
        %2067 = vrot.lane.b32.xlu0 %v919, 1
        %v2068 = vpop.permute.xlu0 %2067
        %2069 = vrot.lane.b32.xlu0 %v1091, 1
        %v2070 = vpop.permute.xlu0 %2069
        %2071 = vrot.lane.b32.xlu0 %v1093, 1
        %v2072 = vpop.permute.xlu0 %2071
        %2073 = vrot.lane.b32.xlu0 %v1096, 1
        %v2074 = vpop.permute.xlu0 %2073
        %2075 = vrot.lane.b32.xlu0 %v1098, 1
        %v2076 = vpop.permute.xlu0 %2075
        %2077 = vrot.lane.b32.xlu0 %v1101, 1
        %v2078 = vpop.permute.xlu0 %2077
        %2079 = vrot.lane.b32.xlu0 %v1103, 1
        %v2080 = vpop.permute.xlu0 %2079
        %2081 = vrot.lane.b32.xlu0 %v1106, 1
        %v2082 = vpop.permute.xlu0 %2081
        %2083 = vrot.lane.b32.xlu0 %v1108, 1
        %v2084 = vpop.permute.xlu0 %2083
        %2085 = vrot.lane.b32.xlu0 %v1280, 1
        %v2086 = vpop.permute.xlu0 %2085
        %2087 = vrot.lane.b32.xlu0 %v1282, 1
        %v2088 = vpop.permute.xlu0 %2087
        %2089 = vrot.lane.b32.xlu0 %v1285, 1
        %v2090 = vpop.permute.xlu0 %2089
        %2091 = vrot.lane.b32.xlu0 %v1287, 1
        %v2092 = vpop.permute.xlu0 %2091
        %2093 = vrot.lane.b32.xlu0 %v1290, 1
        %v2094 = vpop.permute.xlu0 %2093
        %2095 = vrot.lane.b32.xlu0 %v1292, 1
        %v2096 = vpop.permute.xlu0 %2095
        %2097 = vrot.lane.b32.xlu0 %v1295, 1
        %v2098 = vpop.permute.xlu0 %2097
        %2099 = vrot.lane.b32.xlu0 %v1297, 1
        %v2100 = vpop.permute.xlu0 %2099
        %2101 = vrot.lane.b32.xlu0 %v1469, 1
        %v2102 = vpop.permute.xlu0 %2101
        %2103 = vrot.lane.b32.xlu0 %v1471, 1
        %v2104 = vpop.permute.xlu0 %2103
        %2105 = vrot.lane.b32.xlu0 %v1474, 1
        %v2106 = vpop.permute.xlu0 %2105
        %2107 = vrot.lane.b32.xlu0 %v1476, 1
        %v2108 = vpop.permute.xlu0 %2107
        %2109 = vrot.lane.b32.xlu0 %v1479, 1
        %v2110 = vpop.permute.xlu0 %2109
        %2111 = vrot.lane.b32.xlu0 %v1481, 1
        %v2112 = vpop.permute.xlu0 %2111
        %2113 = vrot.lane.b32.xlu0 %v1484, 1
        %v2114 = vpop.permute.xlu0 %2113
        %2115 = vrot.lane.b32.xlu0 %v1486, 1
        %v2116 = vpop.permute.xlu0 %2115
        %vm2117 = vcmp.lt.s32.totalorder %v1653, 1
        %v2118 = vsel %vm2117, %v2086, %v2102
        %v2119 = vsel %vm2117, %v2088, %v2104
        %v2120 = vsel %vm2117, %v2090, %v2106
        %v2121 = vsel %vm2117, %v2092, %v2108
        %v2122 = vsel %vm2117, %v2094, %v2110
        %v2123 = vsel %vm2117, %v2096, %v2112
        %v2124 = vsel %vm2117, %v2098, %v2114
        %v2125 = vsel %vm2117, %v2100, %v2116
        %v2126 = vsel %vm2117, %v2070, %v2086
        %v2127 = vsel %vm2117, %v2072, %v2088
        %v2128 = vsel %vm2117, %v2074, %v2090
        %v2129 = vsel %vm2117, %v2076, %v2092
        %v2130 = vsel %vm2117, %v2078, %v2094
        %v2131 = vsel %vm2117, %v2080, %v2096
        %v2132 = vsel %vm2117, %v2082, %v2098
        %v2133 = vsel %vm2117, %v2084, %v2100
        %v2134 = vsel %vm2117, %v2054, %v2070
        %v2135 = vsel %vm2117, %v2056, %v2072
        %v2136 = vsel %vm2117, %v2058, %v2074
        %v2137 = vsel %vm2117, %v2060, %v2076
        %v2138 = vsel %vm2117, %v2062, %v2078
        %v2139 = vsel %vm2117, %v2064, %v2080
        %v2140 = vsel %vm2117, %v2066, %v2082
        %v2141 = vsel %vm2117, %v2068, %v2084
        %v2142 = vsel %vm2117, %v2102, %v2054
        %v2143 = vsel %vm2117, %v2104, %v2056
        %v2144 = vsel %vm2117, %v2106, %v2058
        %v2145 = vsel %vm2117, %v2108, %v2060
        %v2146 = vsel %vm2117, %v2110, %v2062
        %v2147 = vsel %vm2117, %v2112, %v2064
        %v2148 = vsel %vm2117, %v2114, %v2066
        %v2149 = vsel %vm2117, %v2116, %v2068
        %v2150 = vperm.slane %v348, 3
        %v2151 = vperm.slane %v349, 3
        %v2152 = vperm.slane %v350, 3
        %v2153 = vperm.slane %v351, 3
        %v2154 = vmul.f32 %v2142, %v2150
        %v2155 = vmul.f32 %v2134, %v2151
        %v2156 = vmul.f32 %v2126, %v2152
        %v2157 = vmul.f32 %v2118, %v2153
        %v2158 = vmul.f32 %v2143, %v2150
        %v2159 = vmul.f32 %v2135, %v2151
        %v2160 = vmul.f32 %v2127, %v2152
        %v2161 = vmul.f32 %v2119, %v2153
        %v2162 = vmul.f32 %v2144, %v2150
        %v2163 = vmul.f32 %v2136, %v2151
        %v2164 = vmul.f32 %v2128, %v2152
        %v2165 = vmul.f32 %v2120, %v2153
        %v2166 = vmul.f32 %v2145, %v2150
        %v2167 = vmul.f32 %v2137, %v2151
        %v2168 = vmul.f32 %v2129, %v2152
        %v2169 = vmul.f32 %v2121, %v2153
        %v2170 = vmul.f32 %v2146, %v2150
        %v2171 = vmul.f32 %v2138, %v2151
        %v2172 = vmul.f32 %v2130, %v2152
        %v2173 = vmul.f32 %v2122, %v2153
        %v2174 = vmul.f32 %v2147, %v2150
        %v2175 = vmul.f32 %v2139, %v2151
        %v2176 = vmul.f32 %v2131, %v2152
        %v2177 = vmul.f32 %v2123, %v2153
        %v2178 = vmul.f32 %v2148, %v2150
        %v2179 = vmul.f32 %v2140, %v2151
        %v2180 = vmul.f32 %v2132, %v2152
        %v2181 = vmul.f32 %v2124, %v2153
        %v2182 = vmul.f32 %v2149, %v2150
        %v2183 = vmul.f32 %v2141, %v2151
        %v2184 = vmul.f32 %v2133, %v2152
        %v2185 = vmul.f32 %v2125, %v2153
        %v2186 = vadd.f32 %v2021, %v2154
        %v2187 = vadd.f32 %v2022, %v2155
        %v2188 = vadd.f32 %v2023, %v2156
        %v2189 = vadd.f32 %v2024, %v2157
        %v2190 = vadd.f32 %v2025, %v2158
        %v2191 = vadd.f32 %v2026, %v2159
        %v2192 = vadd.f32 %v2027, %v2160
        %v2193 = vadd.f32 %v2028, %v2161
        %v2194 = vadd.f32 %v2029, %v2162
        %v2195 = vadd.f32 %v2030, %v2163
        %v2196 = vadd.f32 %v2031, %v2164
        %v2197 = vadd.f32 %v2032, %v2165
        %v2198 = vadd.f32 %v2033, %v2166
        %v2199 = vadd.f32 %v2034, %v2167
        %v2200 = vadd.f32 %v2035, %v2168
        %v2201 = vadd.f32 %v2036, %v2169
        %v2202 = vadd.f32 %v2037, %v2170
        %v2203 = vadd.f32 %v2038, %v2171
        %v2204 = vadd.f32 %v2039, %v2172
        %v2205 = vadd.f32 %v2040, %v2173
        %v2206 = vadd.f32 %v2041, %v2174
        %v2207 = vadd.f32 %v2042, %v2175
        %v2208 = vadd.f32 %v2043, %v2176
        %v2209 = vadd.f32 %v2044, %v2177
        %v2210 = vadd.f32 %v2045, %v2178
        %v2211 = vadd.f32 %v2046, %v2179
        %v2212 = vadd.f32 %v2047, %v2180
        %v2213 = vadd.f32 %v2048, %v2181
        %v2214 = vadd.f32 %v2049, %v2182
        %v2215 = vadd.f32 %v2050, %v2183
        %v2216 = vadd.f32 %v2051, %v2184
        %v2217 = vadd.f32 %v2052, %v2185
        %v2218 = vadd.f32 %v2186, %v922
        %v2219 = vadd.f32 %v2187, %v1111
        %v2220 = vadd.f32 %v2188, %v1300
        %v2221 = vadd.f32 %v2189, %v1489
        %v2222 = vadd.f32 %v2190, %v924
        %v2223 = vadd.f32 %v2191, %v1113
        %v2224 = vadd.f32 %v2192, %v1302
        %v2225 = vadd.f32 %v2193, %v1491
        %v2226 = vadd.f32 %v2194, %v927
        %v2227 = vadd.f32 %v2195, %v1116
        %v2228 = vadd.f32 %v2196, %v1305
        %v2229 = vadd.f32 %v2197, %v1494
        %v2230 = vadd.f32 %v2198, %v929
        %v2231 = vadd.f32 %v2199, %v1118
        %v2232 = vadd.f32 %v2200, %v1307
        %v2233 = vadd.f32 %v2201, %v1496
        %v2234 = vadd.f32 %v2202, %v932
        %v2235 = vadd.f32 %v2203, %v1121
        %v2236 = vadd.f32 %v2204, %v1310
        %v2237 = vadd.f32 %v2205, %v1499
        %v2238 = vadd.f32 %v2206, %v934
        %v2239 = vadd.f32 %v2207, %v1123
        %v2240 = vadd.f32 %v2208, %v1312
        %v2241 = vadd.f32 %v2209, %v1501
        %v2242 = vadd.f32 %v2210, %v937
        %v2243 = vadd.f32 %v2211, %v1126
        %v2244 = vadd.f32 %v2212, %v1315
        %v2245 = vadd.f32 %v2213, %v1504
        %v2246 = vadd.f32 %v2214, %v939
        %v2247 = vadd.f32 %v2215, %v1128
        %v2248 = vadd.f32 %v2216, %v1317
        %v2249 = vadd.f32 %v2217, %v1506
        %2250 = vrot.lane.b32.xlu0 %v942, 127
        %v2251 = vpop.permute.xlu0 %2250
        %2252 = vrot.lane.b32.xlu0 %v944, 127
        %v2253 = vpop.permute.xlu0 %2252
        %2254 = vrot.lane.b32.xlu0 %v947, 127
        %v2255 = vpop.permute.xlu0 %2254
        %2256 = vrot.lane.b32.xlu0 %v949, 127
        %v2257 = vpop.permute.xlu0 %2256
        %2258 = vrot.lane.b32.xlu0 %v952, 127
        %v2259 = vpop.permute.xlu0 %2258
        %2260 = vrot.lane.b32.xlu0 %v954, 127
        %v2261 = vpop.permute.xlu0 %2260
        %2262 = vrot.lane.b32.xlu0 %v957, 127
        %v2263 = vpop.permute.xlu0 %2262
        %2264 = vrot.lane.b32.xlu0 %v959, 127
        %v2265 = vpop.permute.xlu0 %2264
        %2266 = vrot.lane.b32.xlu0 %v1131, 127
        %v2267 = vpop.permute.xlu0 %2266
        %2268 = vrot.lane.b32.xlu0 %v1133, 127
        %v2269 = vpop.permute.xlu0 %2268
        %2270 = vrot.lane.b32.xlu0 %v1136, 127
        %v2271 = vpop.permute.xlu0 %2270
        %2272 = vrot.lane.b32.xlu0 %v1138, 127
        %v2273 = vpop.permute.xlu0 %2272
        %2274 = vrot.lane.b32.xlu0 %v1141, 127
        %v2275 = vpop.permute.xlu0 %2274
        %2276 = vrot.lane.b32.xlu0 %v1143, 127
        %v2277 = vpop.permute.xlu0 %2276
        %2278 = vrot.lane.b32.xlu0 %v1146, 127
        %v2279 = vpop.permute.xlu0 %2278
        %2280 = vrot.lane.b32.xlu0 %v1148, 127
        %v2281 = vpop.permute.xlu0 %2280
        %2282 = vrot.lane.b32.xlu0 %v1320, 127
        %v2283 = vpop.permute.xlu0 %2282
        %2284 = vrot.lane.b32.xlu0 %v1322, 127
        %v2285 = vpop.permute.xlu0 %2284
        %2286 = vrot.lane.b32.xlu0 %v1325, 127
        %v2287 = vpop.permute.xlu0 %2286
        %2288 = vrot.lane.b32.xlu0 %v1327, 127
        %v2289 = vpop.permute.xlu0 %2288
        %2290 = vrot.lane.b32.xlu0 %v1330, 127
        %v2291 = vpop.permute.xlu0 %2290
        %2292 = vrot.lane.b32.xlu0 %v1332, 127
        %v2293 = vpop.permute.xlu0 %2292
        %2294 = vrot.lane.b32.xlu0 %v1335, 127
        %v2295 = vpop.permute.xlu0 %2294
        %2296 = vrot.lane.b32.xlu0 %v1337, 127
        %v2297 = vpop.permute.xlu0 %2296
        %2298 = vrot.lane.b32.xlu0 %v1509, 127
        %v2299 = vpop.permute.xlu0 %2298
        %2300 = vrot.lane.b32.xlu0 %v1511, 127
        %v2301 = vpop.permute.xlu0 %2300
        %2302 = vrot.lane.b32.xlu0 %v1514, 127
        %v2303 = vpop.permute.xlu0 %2302
        %2304 = vrot.lane.b32.xlu0 %v1516, 127
        %v2305 = vpop.permute.xlu0 %2304
        %2306 = vrot.lane.b32.xlu0 %v1519, 127
        %v2307 = vpop.permute.xlu0 %2306
        %2308 = vrot.lane.b32.xlu0 %v1521, 127
        %v2309 = vpop.permute.xlu0 %2308
        %2310 = vrot.lane.b32.xlu0 %v1524, 127
        %v2311 = vpop.permute.xlu0 %2310
        %2312 = vrot.lane.b32.xlu0 %v1526, 127
        %v2313 = vpop.permute.xlu0 %2312
        %vm2314 = vcmp.lt.s32.totalorder %v1653, 127
        %v2315 = vsel %vm2314, %v2283, %v2299
        %v2316 = vsel %vm2314, %v2285, %v2301
        %v2317 = vsel %vm2314, %v2287, %v2303
        %v2318 = vsel %vm2314, %v2289, %v2305
        %v2319 = vsel %vm2314, %v2291, %v2307
        %v2320 = vsel %vm2314, %v2293, %v2309
        %v2321 = vsel %vm2314, %v2295, %v2311
        %v2322 = vsel %vm2314, %v2297, %v2313
        %v2323 = vsel %vm2314, %v2267, %v2283
        %v2324 = vsel %vm2314, %v2269, %v2285
        %v2325 = vsel %vm2314, %v2271, %v2287
        %v2326 = vsel %vm2314, %v2273, %v2289
        %v2327 = vsel %vm2314, %v2275, %v2291
        %v2328 = vsel %vm2314, %v2277, %v2293
        %v2329 = vsel %vm2314, %v2279, %v2295
        %v2330 = vsel %vm2314, %v2281, %v2297
        %v2331 = vsel %vm2314, %v2251, %v2267
        %v2332 = vsel %vm2314, %v2253, %v2269
        %v2333 = vsel %vm2314, %v2255, %v2271
        %v2334 = vsel %vm2314, %v2257, %v2273
        %v2335 = vsel %vm2314, %v2259, %v2275
        %v2336 = vsel %vm2314, %v2261, %v2277
        %v2337 = vsel %vm2314, %v2263, %v2279
        %v2338 = vsel %vm2314, %v2265, %v2281
        %v2339 = vsel %vm2314, %v2299, %v2251
        %v2340 = vsel %vm2314, %v2301, %v2253
        %v2341 = vsel %vm2314, %v2303, %v2255
        %v2342 = vsel %vm2314, %v2305, %v2257
        %v2343 = vsel %vm2314, %v2307, %v2259
        %v2344 = vsel %vm2314, %v2309, %v2261
        %v2345 = vsel %vm2314, %v2311, %v2263
        %v2346 = vsel %vm2314, %v2313, %v2265
        %v2347 = vperm.slane %v348, 4
        %v2348 = vperm.slane %v349, 4
        %v2349 = vperm.slane %v350, 4
        %v2350 = vperm.slane %v351, 4
        %v2351 = vmul.f32 %v2331, %v2347
        %v2352 = vmul.f32 %v2323, %v2348
        %v2353 = vmul.f32 %v2315, %v2349
        %v2354 = vmul.f32 %v2339, %v2350
        %v2355 = vmul.f32 %v2332, %v2347
        %v2356 = vmul.f32 %v2324, %v2348
        %v2357 = vmul.f32 %v2316, %v2349
        %v2358 = vmul.f32 %v2340, %v2350
        %v2359 = vmul.f32 %v2333, %v2347
        %v2360 = vmul.f32 %v2325, %v2348
        %v2361 = vmul.f32 %v2317, %v2349
        %v2362 = vmul.f32 %v2341, %v2350
        %v2363 = vmul.f32 %v2334, %v2347
        %v2364 = vmul.f32 %v2326, %v2348
        %v2365 = vmul.f32 %v2318, %v2349
        %v2366 = vmul.f32 %v2342, %v2350
        %v2367 = vmul.f32 %v2335, %v2347
        %v2368 = vmul.f32 %v2327, %v2348
        %v2369 = vmul.f32 %v2319, %v2349
        %v2370 = vmul.f32 %v2343, %v2350
        %v2371 = vmul.f32 %v2336, %v2347
        %v2372 = vmul.f32 %v2328, %v2348
        %v2373 = vmul.f32 %v2320, %v2349
        %v2374 = vmul.f32 %v2344, %v2350
        %v2375 = vmul.f32 %v2337, %v2347
        %v2376 = vmul.f32 %v2329, %v2348
        %v2377 = vmul.f32 %v2321, %v2349
        %v2378 = vmul.f32 %v2345, %v2350
        %v2379 = vmul.f32 %v2338, %v2347
        %v2380 = vmul.f32 %v2330, %v2348
        %v2381 = vmul.f32 %v2322, %v2349
        %v2382 = vmul.f32 %v2346, %v2350
        %v2383 = vadd.f32 %v2218, %v2351
        %v2384 = vadd.f32 %v2219, %v2352
        %v2385 = vadd.f32 %v2220, %v2353
        %v2386 = vadd.f32 %v2221, %v2354
        %v2387 = vadd.f32 %v2222, %v2355
        %v2388 = vadd.f32 %v2223, %v2356
        %v2389 = vadd.f32 %v2224, %v2357
        %v2390 = vadd.f32 %v2225, %v2358
        %v2391 = vadd.f32 %v2226, %v2359
        %v2392 = vadd.f32 %v2227, %v2360
        %v2393 = vadd.f32 %v2228, %v2361
        %v2394 = vadd.f32 %v2229, %v2362
        %v2395 = vadd.f32 %v2230, %v2363
        %v2396 = vadd.f32 %v2231, %v2364
        %v2397 = vadd.f32 %v2232, %v2365
        %v2398 = vadd.f32 %v2233, %v2366
        %v2399 = vadd.f32 %v2234, %v2367
        %v2400 = vadd.f32 %v2235, %v2368
        %v2401 = vadd.f32 %v2236, %v2369
        %v2402 = vadd.f32 %v2237, %v2370
        %v2403 = vadd.f32 %v2238, %v2371
        %v2404 = vadd.f32 %v2239, %v2372
        %v2405 = vadd.f32 %v2240, %v2373
        %v2406 = vadd.f32 %v2241, %v2374
        %v2407 = vadd.f32 %v2242, %v2375
        %v2408 = vadd.f32 %v2243, %v2376
        %v2409 = vadd.f32 %v2244, %v2377
        %v2410 = vadd.f32 %v2245, %v2378
        %v2411 = vadd.f32 %v2246, %v2379
        %v2412 = vadd.f32 %v2247, %v2380
        %v2413 = vadd.f32 %v2248, %v2381
        %v2414 = vadd.f32 %v2249, %v2382
        %2415 = vrot.lane.b32.xlu0 %v962, 113
        %v2416 = vpop.permute.xlu0 %2415
        %2417 = vrot.lane.b32.xlu0 %v964, 113
        %v2418 = vpop.permute.xlu0 %2417
        %2419 = vrot.lane.b32.xlu0 %v967, 113
        %v2420 = vpop.permute.xlu0 %2419
        %2421 = vrot.lane.b32.xlu0 %v969, 113
        %v2422 = vpop.permute.xlu0 %2421
        %2423 = vrot.lane.b32.xlu0 %v972, 113
        %v2424 = vpop.permute.xlu0 %2423
        %2425 = vrot.lane.b32.xlu0 %v974, 113
        %v2426 = vpop.permute.xlu0 %2425
        %2427 = vrot.lane.b32.xlu0 %v977, 113
        %v2428 = vpop.permute.xlu0 %2427
        %2429 = vrot.lane.b32.xlu0 %v979, 113
        %v2430 = vpop.permute.xlu0 %2429
        %2431 = vrot.lane.b32.xlu0 %v1151, 113
        %v2432 = vpop.permute.xlu0 %2431
        %2433 = vrot.lane.b32.xlu0 %v1153, 113
        %v2434 = vpop.permute.xlu0 %2433
        %2435 = vrot.lane.b32.xlu0 %v1156, 113
        %v2436 = vpop.permute.xlu0 %2435
        %2437 = vrot.lane.b32.xlu0 %v1158, 113
        %v2438 = vpop.permute.xlu0 %2437
        %2439 = vrot.lane.b32.xlu0 %v1161, 113
        %v2440 = vpop.permute.xlu0 %2439
        %2441 = vrot.lane.b32.xlu0 %v1163, 113
        %v2442 = vpop.permute.xlu0 %2441
        %2443 = vrot.lane.b32.xlu0 %v1166, 113
        %v2444 = vpop.permute.xlu0 %2443
        %2445 = vrot.lane.b32.xlu0 %v1168, 113
        %v2446 = vpop.permute.xlu0 %2445
        %2447 = vrot.lane.b32.xlu0 %v1340, 113
        %v2448 = vpop.permute.xlu0 %2447
        %2449 = vrot.lane.b32.xlu0 %v1342, 113
        %v2450 = vpop.permute.xlu0 %2449
        %2451 = vrot.lane.b32.xlu0 %v1345, 113
        %v2452 = vpop.permute.xlu0 %2451
        %2453 = vrot.lane.b32.xlu0 %v1347, 113
        %v2454 = vpop.permute.xlu0 %2453
        %2455 = vrot.lane.b32.xlu0 %v1350, 113
        %v2456 = vpop.permute.xlu0 %2455
        %2457 = vrot.lane.b32.xlu0 %v1352, 113
        %v2458 = vpop.permute.xlu0 %2457
        %2459 = vrot.lane.b32.xlu0 %v1355, 113
        %v2460 = vpop.permute.xlu0 %2459
        %2461 = vrot.lane.b32.xlu0 %v1357, 113
        %v2462 = vpop.permute.xlu0 %2461
        %2463 = vrot.lane.b32.xlu0 %v1529, 113
        %v2464 = vpop.permute.xlu0 %2463
        %2465 = vrot.lane.b32.xlu0 %v1531, 113
        %v2466 = vpop.permute.xlu0 %2465
        %2467 = vrot.lane.b32.xlu0 %v1534, 113
        %v2468 = vpop.permute.xlu0 %2467
        %2469 = vrot.lane.b32.xlu0 %v1536, 113
        %v2470 = vpop.permute.xlu0 %2469
        %2471 = vrot.lane.b32.xlu0 %v1539, 113
        %v2472 = vpop.permute.xlu0 %2471
        %2473 = vrot.lane.b32.xlu0 %v1541, 113
        %v2474 = vpop.permute.xlu0 %2473
        %2475 = vrot.lane.b32.xlu0 %v1544, 113
        %v2476 = vpop.permute.xlu0 %2475
        %2477 = vrot.lane.b32.xlu0 %v1546, 113
        %v2478 = vpop.permute.xlu0 %2477
        %vm2479 = vcmp.lt.s32.totalorder %v1653, 113
        %v2480 = vsel %vm2479, %v2448, %v2464
        %v2481 = vsel %vm2479, %v2450, %v2466
        %v2482 = vsel %vm2479, %v2452, %v2468
        %v2483 = vsel %vm2479, %v2454, %v2470
        %v2484 = vsel %vm2479, %v2456, %v2472
        %v2485 = vsel %vm2479, %v2458, %v2474
        %v2486 = vsel %vm2479, %v2460, %v2476
        %v2487 = vsel %vm2479, %v2462, %v2478
        %v2488 = vsel %vm2479, %v2432, %v2448
        %v2489 = vsel %vm2479, %v2434, %v2450
        %v2490 = vsel %vm2479, %v2436, %v2452
        %v2491 = vsel %vm2479, %v2438, %v2454
        %v2492 = vsel %vm2479, %v2440, %v2456
        %v2493 = vsel %vm2479, %v2442, %v2458
        %v2494 = vsel %vm2479, %v2444, %v2460
        %v2495 = vsel %vm2479, %v2446, %v2462
        %v2496 = vsel %vm2479, %v2416, %v2432
        %v2497 = vsel %vm2479, %v2418, %v2434
        %v2498 = vsel %vm2479, %v2420, %v2436
        %v2499 = vsel %vm2479, %v2422, %v2438
        %v2500 = vsel %vm2479, %v2424, %v2440
        %v2501 = vsel %vm2479, %v2426, %v2442
        %v2502 = vsel %vm2479, %v2428, %v2444
        %v2503 = vsel %vm2479, %v2430, %v2446
        %v2504 = vsel %vm2479, %v2464, %v2416
        %v2505 = vsel %vm2479, %v2466, %v2418
        %v2506 = vsel %vm2479, %v2468, %v2420
        %v2507 = vsel %vm2479, %v2470, %v2422
        %v2508 = vsel %vm2479, %v2472, %v2424
        %v2509 = vsel %vm2479, %v2474, %v2426
        %v2510 = vsel %vm2479, %v2476, %v2428
        %v2511 = vsel %vm2479, %v2478, %v2430
        %v2512 = vperm.slane %v348, 5
        %v2513 = vperm.slane %v349, 5
        %v2514 = vperm.slane %v350, 5
        %v2515 = vperm.slane %v351, 5
        %v2516 = vmul.f32 %v2496, %v2512
        %v2517 = vmul.f32 %v2488, %v2513
        %v2518 = vmul.f32 %v2480, %v2514
        %v2519 = vmul.f32 %v2504, %v2515
        %v2520 = vmul.f32 %v2497, %v2512
        %v2521 = vmul.f32 %v2489, %v2513
        %v2522 = vmul.f32 %v2481, %v2514
        %v2523 = vmul.f32 %v2505, %v2515
        %v2524 = vmul.f32 %v2498, %v2512
        %v2525 = vmul.f32 %v2490, %v2513
        %v2526 = vmul.f32 %v2482, %v2514
        %v2527 = vmul.f32 %v2506, %v2515
        %v2528 = vmul.f32 %v2499, %v2512
        %v2529 = vmul.f32 %v2491, %v2513
        %v2530 = vmul.f32 %v2483, %v2514
        %v2531 = vmul.f32 %v2507, %v2515
        %v2532 = vmul.f32 %v2500, %v2512
        %v2533 = vmul.f32 %v2492, %v2513
        %v2534 = vmul.f32 %v2484, %v2514
        %v2535 = vmul.f32 %v2508, %v2515
        %v2536 = vmul.f32 %v2501, %v2512
        %v2537 = vmul.f32 %v2493, %v2513
        %v2538 = vmul.f32 %v2485, %v2514
        %v2539 = vmul.f32 %v2509, %v2515
        %v2540 = vmul.f32 %v2502, %v2512
        %v2541 = vmul.f32 %v2494, %v2513
        %v2542 = vmul.f32 %v2486, %v2514
        %v2543 = vmul.f32 %v2510, %v2515
        %v2544 = vmul.f32 %v2503, %v2512
        %v2545 = vmul.f32 %v2495, %v2513
        %v2546 = vmul.f32 %v2487, %v2514
        %v2547 = vmul.f32 %v2511, %v2515
        %v2548 = vadd.f32 %v2383, %v2516
        %v2549 = vadd.f32 %v2384, %v2517
        %v2550 = vadd.f32 %v2385, %v2518
        %v2551 = vadd.f32 %v2386, %v2519
        %v2552 = vadd.f32 %v2387, %v2520
        %v2553 = vadd.f32 %v2388, %v2521
        %v2554 = vadd.f32 %v2389, %v2522
        %v2555 = vadd.f32 %v2390, %v2523
        %v2556 = vadd.f32 %v2391, %v2524
        %v2557 = vadd.f32 %v2392, %v2525
        %v2558 = vadd.f32 %v2393, %v2526
        %v2559 = vadd.f32 %v2394, %v2527
        %v2560 = vadd.f32 %v2395, %v2528
        %v2561 = vadd.f32 %v2396, %v2529
        %v2562 = vadd.f32 %v2397, %v2530
        %v2563 = vadd.f32 %v2398, %v2531
        %v2564 = vadd.f32 %v2399, %v2532
        %v2565 = vadd.f32 %v2400, %v2533
        %v2566 = vadd.f32 %v2401, %v2534
        %v2567 = vadd.f32 %v2402, %v2535
        %v2568 = vadd.f32 %v2403, %v2536
        %v2569 = vadd.f32 %v2404, %v2537
        %v2570 = vadd.f32 %v2405, %v2538
        %v2571 = vadd.f32 %v2406, %v2539
        %v2572 = vadd.f32 %v2407, %v2540
        %v2573 = vadd.f32 %v2408, %v2541
        %v2574 = vadd.f32 %v2409, %v2542
        %v2575 = vadd.f32 %v2410, %v2543
        %v2576 = vadd.f32 %v2411, %v2544
        %v2577 = vadd.f32 %v2412, %v2545
        %v2578 = vadd.f32 %v2413, %v2546
        %v2579 = vadd.f32 %v2414, %v2547
        %2580 = vrot.lane.b32.xlu0 %v982, 112
        %v2581 = vpop.permute.xlu0 %2580
        %2582 = vrot.lane.b32.xlu0 %v984, 112
        %v2583 = vpop.permute.xlu0 %2582
        %2584 = vrot.lane.b32.xlu0 %v987, 112
        %v2585 = vpop.permute.xlu0 %2584
        %2586 = vrot.lane.b32.xlu0 %v989, 112
        %v2587 = vpop.permute.xlu0 %2586
        %2588 = vrot.lane.b32.xlu0 %v992, 112
        %v2589 = vpop.permute.xlu0 %2588
        %2590 = vrot.lane.b32.xlu0 %v994, 112
        %v2591 = vpop.permute.xlu0 %2590
        %2592 = vrot.lane.b32.xlu0 %v997, 112
        %v2593 = vpop.permute.xlu0 %2592
        %2594 = vrot.lane.b32.xlu0 %v999, 112
        %v2595 = vpop.permute.xlu0 %2594
        %2596 = vrot.lane.b32.xlu0 %v1171, 112
        %v2597 = vpop.permute.xlu0 %2596
        %2598 = vrot.lane.b32.xlu0 %v1173, 112
        %v2599 = vpop.permute.xlu0 %2598
        %2600 = vrot.lane.b32.xlu0 %v1176, 112
        %v2601 = vpop.permute.xlu0 %2600
        %2602 = vrot.lane.b32.xlu0 %v1178, 112
        %v2603 = vpop.permute.xlu0 %2602
        %2604 = vrot.lane.b32.xlu0 %v1181, 112
        %v2605 = vpop.permute.xlu0 %2604
        %2606 = vrot.lane.b32.xlu0 %v1183, 112
        %v2607 = vpop.permute.xlu0 %2606
        %2608 = vrot.lane.b32.xlu0 %v1186, 112
        %v2609 = vpop.permute.xlu0 %2608
        %2610 = vrot.lane.b32.xlu0 %v1188, 112
        %v2611 = vpop.permute.xlu0 %2610
        %2612 = vrot.lane.b32.xlu0 %v1360, 112
        %v2613 = vpop.permute.xlu0 %2612
        %2614 = vrot.lane.b32.xlu0 %v1362, 112
        %v2615 = vpop.permute.xlu0 %2614
        %2616 = vrot.lane.b32.xlu0 %v1365, 112
        %v2617 = vpop.permute.xlu0 %2616
        %2618 = vrot.lane.b32.xlu0 %v1367, 112
        %v2619 = vpop.permute.xlu0 %2618
        %2620 = vrot.lane.b32.xlu0 %v1370, 112
        %v2621 = vpop.permute.xlu0 %2620
        %2622 = vrot.lane.b32.xlu0 %v1372, 112
        %v2623 = vpop.permute.xlu0 %2622
        %2624 = vrot.lane.b32.xlu0 %v1375, 112
        %v2625 = vpop.permute.xlu0 %2624
        %2626 = vrot.lane.b32.xlu0 %v1377, 112
        %v2627 = vpop.permute.xlu0 %2626
        %2628 = vrot.lane.b32.xlu0 %v1549, 112
        %v2629 = vpop.permute.xlu0 %2628
        %2630 = vrot.lane.b32.xlu0 %v1551, 112
        %v2631 = vpop.permute.xlu0 %2630
        %2632 = vrot.lane.b32.xlu0 %v1554, 112
        %v2633 = vpop.permute.xlu0 %2632
        %2634 = vrot.lane.b32.xlu0 %v1556, 112
        %v2635 = vpop.permute.xlu0 %2634
        %2636 = vrot.lane.b32.xlu0 %v1559, 112
        %v2637 = vpop.permute.xlu0 %2636
        %2638 = vrot.lane.b32.xlu0 %v1561, 112
        %v2639 = vpop.permute.xlu0 %2638
        %2640 = vrot.lane.b32.xlu0 %v1564, 112
        %v2641 = vpop.permute.xlu0 %2640
        %2642 = vrot.lane.b32.xlu0 %v1566, 112
        %v2643 = vpop.permute.xlu0 %2642
        %vm2644 = vcmp.lt.s32.totalorder %v1653, 112
        %v2645 = vsel %vm2644, %v2613, %v2629
        %v2646 = vsel %vm2644, %v2615, %v2631
        %v2647 = vsel %vm2644, %v2617, %v2633
        %v2648 = vsel %vm2644, %v2619, %v2635
        %v2649 = vsel %vm2644, %v2621, %v2637
        %v2650 = vsel %vm2644, %v2623, %v2639
        %v2651 = vsel %vm2644, %v2625, %v2641
        %v2652 = vsel %vm2644, %v2627, %v2643
        %v2653 = vsel %vm2644, %v2597, %v2613
        %v2654 = vsel %vm2644, %v2599, %v2615
        %v2655 = vsel %vm2644, %v2601, %v2617
        %v2656 = vsel %vm2644, %v2603, %v2619
        %v2657 = vsel %vm2644, %v2605, %v2621
        %v2658 = vsel %vm2644, %v2607, %v2623
        %v2659 = vsel %vm2644, %v2609, %v2625
        %v2660 = vsel %vm2644, %v2611, %v2627
        %v2661 = vsel %vm2644, %v2581, %v2597
        %v2662 = vsel %vm2644, %v2583, %v2599
        %v2663 = vsel %vm2644, %v2585, %v2601
        %v2664 = vsel %vm2644, %v2587, %v2603
        %v2665 = vsel %vm2644, %v2589, %v2605
        %v2666 = vsel %vm2644, %v2591, %v2607
        %v2667 = vsel %vm2644, %v2593, %v2609
        %v2668 = vsel %vm2644, %v2595, %v2611
        %v2669 = vsel %vm2644, %v2629, %v2581
        %v2670 = vsel %vm2644, %v2631, %v2583
        %v2671 = vsel %vm2644, %v2633, %v2585
        %v2672 = vsel %vm2644, %v2635, %v2587
        %v2673 = vsel %vm2644, %v2637, %v2589
        %v2674 = vsel %vm2644, %v2639, %v2591
        %v2675 = vsel %vm2644, %v2641, %v2593
        %v2676 = vsel %vm2644, %v2643, %v2595
        %v2677 = vperm.slane %v348, 6
        %v2678 = vperm.slane %v349, 6
        %v2679 = vperm.slane %v350, 6
        %v2680 = vperm.slane %v351, 6
        %v2681 = vmul.f32 %v2661, %v2677
        %v2682 = vmul.f32 %v2653, %v2678
        %v2683 = vmul.f32 %v2645, %v2679
        %v2684 = vmul.f32 %v2669, %v2680
        %v2685 = vmul.f32 %v2662, %v2677
        %v2686 = vmul.f32 %v2654, %v2678
        %v2687 = vmul.f32 %v2646, %v2679
        %v2688 = vmul.f32 %v2670, %v2680
        %v2689 = vmul.f32 %v2663, %v2677
        %v2690 = vmul.f32 %v2655, %v2678
        %v2691 = vmul.f32 %v2647, %v2679
        %v2692 = vmul.f32 %v2671, %v2680
        %v2693 = vmul.f32 %v2664, %v2677
        %v2694 = vmul.f32 %v2656, %v2678
        %v2695 = vmul.f32 %v2648, %v2679
        %v2696 = vmul.f32 %v2672, %v2680
        %v2697 = vmul.f32 %v2665, %v2677
        %v2698 = vmul.f32 %v2657, %v2678
        %v2699 = vmul.f32 %v2649, %v2679
        %v2700 = vmul.f32 %v2673, %v2680
        %v2701 = vmul.f32 %v2666, %v2677
        %v2702 = vmul.f32 %v2658, %v2678
        %v2703 = vmul.f32 %v2650, %v2679
        %v2704 = vmul.f32 %v2674, %v2680
        %v2705 = vmul.f32 %v2667, %v2677
        %v2706 = vmul.f32 %v2659, %v2678
        %v2707 = vmul.f32 %v2651, %v2679
        %v2708 = vmul.f32 %v2675, %v2680
        %v2709 = vmul.f32 %v2668, %v2677
        %v2710 = vmul.f32 %v2660, %v2678
        %v2711 = vmul.f32 %v2652, %v2679
        %v2712 = vmul.f32 %v2676, %v2680
        %v2713 = vadd.f32 %v2548, %v2681
        %v2714 = vadd.f32 %v2549, %v2682
        %v2715 = vadd.f32 %v2550, %v2683
        %v2716 = vadd.f32 %v2551, %v2684
        %v2717 = vadd.f32 %v2552, %v2685
        %v2718 = vadd.f32 %v2553, %v2686
        %v2719 = vadd.f32 %v2554, %v2687
        %v2720 = vadd.f32 %v2555, %v2688
        %v2721 = vadd.f32 %v2556, %v2689
        %v2722 = vadd.f32 %v2557, %v2690
        %v2723 = vadd.f32 %v2558, %v2691
        %v2724 = vadd.f32 %v2559, %v2692
        %v2725 = vadd.f32 %v2560, %v2693
        %v2726 = vadd.f32 %v2561, %v2694
        %v2727 = vadd.f32 %v2562, %v2695
        %v2728 = vadd.f32 %v2563, %v2696
        %v2729 = vadd.f32 %v2564, %v2697
        %v2730 = vadd.f32 %v2565, %v2698
        %v2731 = vadd.f32 %v2566, %v2699
        %v2732 = vadd.f32 %v2567, %v2700
        %v2733 = vadd.f32 %v2568, %v2701
        %v2734 = vadd.f32 %v2569, %v2702
        %v2735 = vadd.f32 %v2570, %v2703
        %v2736 = vadd.f32 %v2571, %v2704
        %v2737 = vadd.f32 %v2572, %v2705
        %v2738 = vadd.f32 %v2573, %v2706
        %v2739 = vadd.f32 %v2574, %v2707
        %v2740 = vadd.f32 %v2575, %v2708
        %v2741 = vadd.f32 %v2576, %v2709
        %v2742 = vadd.f32 %v2577, %v2710
        %v2743 = vadd.f32 %v2578, %v2711
        %v2744 = vadd.f32 %v2579, %v2712
        %2745 = vrot.lane.b32.xlu0 %v1002, 111
        %v2746 = vpop.permute.xlu0 %2745
        %2747 = vrot.lane.b32.xlu0 %v1004, 111
        %v2748 = vpop.permute.xlu0 %2747
        %2749 = vrot.lane.b32.xlu0 %v1007, 111
        %v2750 = vpop.permute.xlu0 %2749
        %2751 = vrot.lane.b32.xlu0 %v1009, 111
        %v2752 = vpop.permute.xlu0 %2751
        %2753 = vrot.lane.b32.xlu0 %v1012, 111
        %v2754 = vpop.permute.xlu0 %2753
        %2755 = vrot.lane.b32.xlu0 %v1014, 111
        %v2756 = vpop.permute.xlu0 %2755
        %2757 = vrot.lane.b32.xlu0 %v1017, 111
        %v2758 = vpop.permute.xlu0 %2757
        %2759 = vrot.lane.b32.xlu0 %v1019, 111
        %v2760 = vpop.permute.xlu0 %2759
        %2761 = vrot.lane.b32.xlu0 %v1191, 111
        %v2762 = vpop.permute.xlu0 %2761
        %2763 = vrot.lane.b32.xlu0 %v1193, 111
        %v2764 = vpop.permute.xlu0 %2763
        %2765 = vrot.lane.b32.xlu0 %v1196, 111
        %v2766 = vpop.permute.xlu0 %2765
        %2767 = vrot.lane.b32.xlu0 %v1198, 111
        %v2768 = vpop.permute.xlu0 %2767
        %2769 = vrot.lane.b32.xlu0 %v1201, 111
        %v2770 = vpop.permute.xlu0 %2769
        %2771 = vrot.lane.b32.xlu0 %v1203, 111
        %v2772 = vpop.permute.xlu0 %2771
        %2773 = vrot.lane.b32.xlu0 %v1206, 111
        %v2774 = vpop.permute.xlu0 %2773
        %2775 = vrot.lane.b32.xlu0 %v1208, 111
        %v2776 = vpop.permute.xlu0 %2775
        %2777 = vrot.lane.b32.xlu0 %v1380, 111
        %v2778 = vpop.permute.xlu0 %2777
        %2779 = vrot.lane.b32.xlu0 %v1382, 111
        %v2780 = vpop.permute.xlu0 %2779
        %2781 = vrot.lane.b32.xlu0 %v1385, 111
        %v2782 = vpop.permute.xlu0 %2781
        %2783 = vrot.lane.b32.xlu0 %v1387, 111
        %v2784 = vpop.permute.xlu0 %2783
        %2785 = vrot.lane.b32.xlu0 %v1390, 111
        %v2786 = vpop.permute.xlu0 %2785
        %2787 = vrot.lane.b32.xlu0 %v1392, 111
        %v2788 = vpop.permute.xlu0 %2787
        %2789 = vrot.lane.b32.xlu0 %v1395, 111
        %v2790 = vpop.permute.xlu0 %2789
        %2791 = vrot.lane.b32.xlu0 %v1397, 111
        %v2792 = vpop.permute.xlu0 %2791
        %2793 = vrot.lane.b32.xlu0 %v1569, 111
        %v2794 = vpop.permute.xlu0 %2793
        %2795 = vrot.lane.b32.xlu0 %v1571, 111
        %v2796 = vpop.permute.xlu0 %2795
        %2797 = vrot.lane.b32.xlu0 %v1574, 111
        %v2798 = vpop.permute.xlu0 %2797
        %2799 = vrot.lane.b32.xlu0 %v1576, 111
        %v2800 = vpop.permute.xlu0 %2799
        %2801 = vrot.lane.b32.xlu0 %v1579, 111
        %v2802 = vpop.permute.xlu0 %2801
        %2803 = vrot.lane.b32.xlu0 %v1581, 111
        %v2804 = vpop.permute.xlu0 %2803
        %2805 = vrot.lane.b32.xlu0 %v1584, 111
        %v2806 = vpop.permute.xlu0 %2805
        %2807 = vrot.lane.b32.xlu0 %v1586, 111
        %v2808 = vpop.permute.xlu0 %2807
        %vm2809 = vcmp.lt.s32.totalorder %v1653, 111
        %v2810 = vsel %vm2809, %v2778, %v2794
        %v2811 = vsel %vm2809, %v2780, %v2796
        %v2812 = vsel %vm2809, %v2782, %v2798
        %v2813 = vsel %vm2809, %v2784, %v2800
        %v2814 = vsel %vm2809, %v2786, %v2802
        %v2815 = vsel %vm2809, %v2788, %v2804
        %v2816 = vsel %vm2809, %v2790, %v2806
        %v2817 = vsel %vm2809, %v2792, %v2808
        %v2818 = vsel %vm2809, %v2762, %v2778
        %v2819 = vsel %vm2809, %v2764, %v2780
        %v2820 = vsel %vm2809, %v2766, %v2782
        %v2821 = vsel %vm2809, %v2768, %v2784
        %v2822 = vsel %vm2809, %v2770, %v2786
        %v2823 = vsel %vm2809, %v2772, %v2788
        %v2824 = vsel %vm2809, %v2774, %v2790
        %v2825 = vsel %vm2809, %v2776, %v2792
        %v2826 = vsel %vm2809, %v2746, %v2762
        %v2827 = vsel %vm2809, %v2748, %v2764
        %v2828 = vsel %vm2809, %v2750, %v2766
        %v2829 = vsel %vm2809, %v2752, %v2768
        %v2830 = vsel %vm2809, %v2754, %v2770
        %v2831 = vsel %vm2809, %v2756, %v2772
        %v2832 = vsel %vm2809, %v2758, %v2774
        %v2833 = vsel %vm2809, %v2760, %v2776
        %v2834 = vsel %vm2809, %v2794, %v2746
        %v2835 = vsel %vm2809, %v2796, %v2748
        %v2836 = vsel %vm2809, %v2798, %v2750
        %v2837 = vsel %vm2809, %v2800, %v2752
        %v2838 = vsel %vm2809, %v2802, %v2754
        %v2839 = vsel %vm2809, %v2804, %v2756
        %v2840 = vsel %vm2809, %v2806, %v2758
        %v2841 = vsel %vm2809, %v2808, %v2760
        %v2842 = vperm.slane %v348, 7
        %v2843 = vperm.slane %v349, 7
        %v2844 = vperm.slane %v350, 7
        %v2845 = vperm.slane %v351, 7
        %v2846 = vmul.f32 %v2826, %v2842
        %v2847 = vmul.f32 %v2818, %v2843
        %v2848 = vmul.f32 %v2810, %v2844
        %v2849 = vmul.f32 %v2834, %v2845
        %v2850 = vmul.f32 %v2827, %v2842
        %v2851 = vmul.f32 %v2819, %v2843
        %v2852 = vmul.f32 %v2811, %v2844
        %v2853 = vmul.f32 %v2835, %v2845
        %v2854 = vmul.f32 %v2828, %v2842
        %v2855 = vmul.f32 %v2820, %v2843
        %v2856 = vmul.f32 %v2812, %v2844
        %v2857 = vmul.f32 %v2836, %v2845
        %v2858 = vmul.f32 %v2829, %v2842
        %v2859 = vmul.f32 %v2821, %v2843
        %v2860 = vmul.f32 %v2813, %v2844
        %v2861 = vmul.f32 %v2837, %v2845
        %v2862 = vmul.f32 %v2830, %v2842
        %v2863 = vmul.f32 %v2822, %v2843
        %v2864 = vmul.f32 %v2814, %v2844
        %v2865 = vmul.f32 %v2838, %v2845
        %v2866 = vmul.f32 %v2831, %v2842
        %v2867 = vmul.f32 %v2823, %v2843
        %v2868 = vmul.f32 %v2815, %v2844
        %v2869 = vmul.f32 %v2839, %v2845
        %v2870 = vmul.f32 %v2832, %v2842
        %v2871 = vmul.f32 %v2824, %v2843
        %v2872 = vmul.f32 %v2816, %v2844
        %v2873 = vmul.f32 %v2840, %v2845
        %v2874 = vmul.f32 %v2833, %v2842
        %v2875 = vmul.f32 %v2825, %v2843
        %v2876 = vmul.f32 %v2817, %v2844
        %v2877 = vmul.f32 %v2841, %v2845
        %v2878 = vadd.f32 %v2713, %v2846
        %v2879 = vadd.f32 %v2714, %v2847
        %v2880 = vadd.f32 %v2715, %v2848
        %v2881 = vadd.f32 %v2716, %v2849
        %v2882 = vadd.f32 %v2717, %v2850
        %v2883 = vadd.f32 %v2718, %v2851
        %v2884 = vadd.f32 %v2719, %v2852
        %v2885 = vadd.f32 %v2720, %v2853
        %v2886 = vadd.f32 %v2721, %v2854
        %v2887 = vadd.f32 %v2722, %v2855
        %v2888 = vadd.f32 %v2723, %v2856
        %v2889 = vadd.f32 %v2724, %v2857
        %v2890 = vadd.f32 %v2725, %v2858
        %v2891 = vadd.f32 %v2726, %v2859
        %v2892 = vadd.f32 %v2727, %v2860
        %v2893 = vadd.f32 %v2728, %v2861
        %v2894 = vadd.f32 %v2729, %v2862
        %v2895 = vadd.f32 %v2730, %v2863
        %v2896 = vadd.f32 %v2731, %v2864
        %v2897 = vadd.f32 %v2732, %v2865
        %v2898 = vadd.f32 %v2733, %v2866
        %v2899 = vadd.f32 %v2734, %v2867
        %v2900 = vadd.f32 %v2735, %v2868
        %v2901 = vadd.f32 %v2736, %v2869
        %v2902 = vadd.f32 %v2737, %v2870
        %v2903 = vadd.f32 %v2738, %v2871
        %v2904 = vadd.f32 %v2739, %v2872
        %v2905 = vadd.f32 %v2740, %v2873
        %v2906 = vadd.f32 %v2741, %v2874
        %v2907 = vadd.f32 %v2742, %v2875
        %v2908 = vadd.f32 %v2743, %v2876
        %v2909 = vadd.f32 %v2744, %v2877
        %v2910 = vld [vmem:[%s3] sm:$0xff]
        %v2911 = vld [vmem:[%s3 + $0x8] sm:$0xff]
        %v2912 = vld [vmem:[%s3 + $0x10] sm:$0xff]
        %v2913 = vld [vmem:[%s3 + $0x18] sm:$0xff]
        %v2914 = vld [vmem:[%s3 + $0x20] sm:$0xff]
        %v2915 = vld [vmem:[%s3 + $0x28] sm:$0xff]
        %v2916 = vld [vmem:[%s3 + $0x30] sm:$0xff]
        %v2917 = vld [vmem:[%s3 + $0x38] sm:$0xff]
        %2919 = vset.pattern.permute.xlu0 0
        %2920 = vperm.xlu0 %2919, %v2910
        %v2921 = vpop.permute.xlu0 %2920
        %2924 = vset.pattern.permute.xlu0 0
        %2925 = vperm.xlu0 %2924, %v2911
        %v2926 = vpop.permute.xlu0 %2925
        %2929 = vset.pattern.permute.xlu0 0
        %2930 = vperm.xlu0 %2929, %v2912
        %v2931 = vpop.permute.xlu0 %2930
        %2934 = vset.pattern.permute.xlu0 0
        %2935 = vperm.xlu0 %2934, %v2913
        %v2936 = vpop.permute.xlu0 %2935
        %2939 = vset.pattern.permute.xlu0 0
        %2940 = vperm.xlu0 %2939, %v2914
        %v2941 = vpop.permute.xlu0 %2940
        %2944 = vset.pattern.permute.xlu0 0
        %2945 = vperm.xlu0 %2944, %v2915
        %v2946 = vpop.permute.xlu0 %2945
        %2949 = vset.pattern.permute.xlu0 0
        %2950 = vperm.xlu0 %2949, %v2916
        %v2951 = vpop.permute.xlu0 %2950
        %2954 = vset.pattern.permute.xlu0 0
        %2955 = vperm.xlu0 %2954, %v2917
        %v2956 = vpop.permute.xlu0 %2955
        %v2958 = vadd.f32 %v2878, %v2921
        %v2959 = vadd.f32 %v2879, %v2921
        %v2960 = vadd.f32 %v2880, %v2921
        %v2961 = vadd.f32 %v2881, %v2921
        %v2962 = vadd.f32 %v2882, %v2926
        %v2963 = vadd.f32 %v2883, %v2926
        %v2964 = vadd.f32 %v2884, %v2926
        %v2965 = vadd.f32 %v2885, %v2926
        %v2966 = vadd.f32 %v2886, %v2931
        %v2967 = vadd.f32 %v2887, %v2931
        %v2968 = vadd.f32 %v2888, %v2931
        %v2969 = vadd.f32 %v2889, %v2931
        %v2970 = vadd.f32 %v2890, %v2936
        %v2971 = vadd.f32 %v2891, %v2936
        %v2972 = vadd.f32 %v2892, %v2936
        %v2973 = vadd.f32 %v2893, %v2936
        %v2974 = vadd.f32 %v2894, %v2941
        %v2975 = vadd.f32 %v2895, %v2941
        %v2976 = vadd.f32 %v2896, %v2941
        %v2977 = vadd.f32 %v2897, %v2941
        %v2978 = vadd.f32 %v2898, %v2946
        %v2979 = vadd.f32 %v2899, %v2946
        %v2980 = vadd.f32 %v2900, %v2946
        %v2981 = vadd.f32 %v2901, %v2946
        %v2982 = vadd.f32 %v2902, %v2951
        %v2983 = vadd.f32 %v2903, %v2951
        %v2984 = vadd.f32 %v2904, %v2951
        %v2985 = vadd.f32 %v2905, %v2951
        %v2986 = vadd.f32 %v2906, %v2956
        %v2987 = vadd.f32 %v2907, %v2956
        %v2988 = vadd.f32 %v2908, %v2956
        %v2989 = vadd.f32 %v2909, %v2956
        %v2990 = vxor.u32 %v2958, 2147483648
        %v2991 = vxor.u32 %v2959, 2147483648
        %v2992 = vxor.u32 %v2960, 2147483648
        %v2993 = vxor.u32 %v2961, 2147483648
        %v2994 = vxor.u32 %v2962, 2147483648
        %v2995 = vxor.u32 %v2963, 2147483648
        %v2996 = vxor.u32 %v2964, 2147483648
        %v2997 = vxor.u32 %v2965, 2147483648
        %v2998 = vxor.u32 %v2966, 2147483648
        %v2999 = vxor.u32 %v2967, 2147483648
        %v3000 = vxor.u32 %v2968, 2147483648
        %v3001 = vxor.u32 %v2969, 2147483648
        %v3002 = vxor.u32 %v2970, 2147483648
        %v3003 = vxor.u32 %v2971, 2147483648
        %v3004 = vxor.u32 %v2972, 2147483648
        %v3005 = vxor.u32 %v2973, 2147483648
        %v3006 = vxor.u32 %v2974, 2147483648
        %v3007 = vxor.u32 %v2975, 2147483648
        %v3008 = vxor.u32 %v2976, 2147483648
        %v3009 = vxor.u32 %v2977, 2147483648
        %v3010 = vxor.u32 %v2978, 2147483648
        %v3011 = vxor.u32 %v2979, 2147483648
        %v3012 = vxor.u32 %v2980, 2147483648
        %v3013 = vxor.u32 %v2981, 2147483648
        %v3014 = vxor.u32 %v2982, 2147483648
        %v3015 = vxor.u32 %v2983, 2147483648
        %v3016 = vxor.u32 %v2984, 2147483648
        %v3017 = vxor.u32 %v2985, 2147483648
        %v3018 = vxor.u32 %v2986, 2147483648
        %v3019 = vxor.u32 %v2987, 2147483648
        %v3020 = vxor.u32 %v2988, 2147483648
        %v3021 = vxor.u32 %v2989, 2147483648
        %v3022 = vmul.f32 %v2990, 1.442695
        %v3023 = vpow.pop %v3022
        %v3024 = vmul.f32 %v2991, 1.442695
        %v3025 = vpow.pop %v3024
        %v3026 = vmul.f32 %v2992, 1.442695
        %v3027 = vpow.pop %v3026
        %v3028 = vmul.f32 %v2993, 1.442695
        %v3029 = vpow.pop %v3028
        %v3030 = vmul.f32 %v2994, 1.442695
        %v3031 = vpow.pop %v3030
        %v3032 = vmul.f32 %v2995, 1.442695
        %v3033 = vpow.pop %v3032
        %v3034 = vmul.f32 %v2996, 1.442695
        %v3035 = vpow.pop %v3034
        %v3036 = vmul.f32 %v2997, 1.442695
        %v3037 = vpow.pop %v3036
        %v3038 = vmul.f32 %v2998, 1.442695
        %v3039 = vpow.pop %v3038
        %v3040 = vmul.f32 %v2999, 1.442695
        %v3041 = vpow.pop %v3040
        %v3042 = vmul.f32 %v3000, 1.442695
        %v3043 = vpow.pop %v3042
        %v3044 = vmul.f32 %v3001, 1.442695
        %v3045 = vpow.pop %v3044
        %v3046 = vmul.f32 %v3002, 1.442695
        %v3047 = vpow.pop %v3046
        %v3048 = vmul.f32 %v3003, 1.442695
        %v3049 = vpow.pop %v3048
        %v3050 = vmul.f32 %v3004, 1.442695
        %v3051 = vpow.pop %v3050
        %v3052 = vmul.f32 %v3005, 1.442695
        %v3053 = vpow.pop %v3052
        %v3054 = vmul.f32 %v3006, 1.442695
        %v3055 = vpow.pop %v3054
        %v3056 = vmul.f32 %v3007, 1.442695
        %v3057 = vpow.pop %v3056
        %v3058 = vmul.f32 %v3008, 1.442695
        %v3059 = vpow.pop %v3058
        %v3060 = vmul.f32 %v3009, 1.442695
        %v3061 = vpow.pop %v3060
        %v3062 = vmul.f32 %v3010, 1.442695
        %v3063 = vpow.pop %v3062
        %v3064 = vmul.f32 %v3011, 1.442695
        %v3065 = vpow.pop %v3064
        %v3066 = vmul.f32 %v3012, 1.442695
        %v3067 = vpow.pop %v3066
        %v3068 = vmul.f32 %v3013, 1.442695
        %v3069 = vpow.pop %v3068
        %v3070 = vmul.f32 %v3014, 1.442695
        %v3071 = vpow.pop %v3070
        %v3072 = vmul.f32 %v3015, 1.442695
        %v3073 = vpow.pop %v3072
        %v3074 = vmul.f32 %v3016, 1.442695
        %v3075 = vpow.pop %v3074
        %v3076 = vmul.f32 %v3017, 1.442695
        %v3077 = vpow.pop %v3076
        %v3078 = vmul.f32 %v3018, 1.442695
        %v3079 = vpow.pop %v3078
        %v3080 = vmul.f32 %v3019, 1.442695
        %v3081 = vpow.pop %v3080
        %v3082 = vmul.f32 %v3020, 1.442695
        %v3083 = vpow.pop %v3082
        %v3084 = vmul.f32 %v3021, 1.442695
        %v3085 = vpow.pop %v3084
        %v3086 = vadd.f32 %v3023, 1.0
        %v3087 = vadd.f32 %v3025, 1.0
        %v3088 = vadd.f32 %v3027, 1.0
        %v3089 = vadd.f32 %v3029, 1.0
        %v3090 = vadd.f32 %v3031, 1.0
        %v3091 = vadd.f32 %v3033, 1.0
        %v3092 = vadd.f32 %v3035, 1.0
        %v3093 = vadd.f32 %v3037, 1.0
        %v3094 = vadd.f32 %v3039, 1.0
        %v3095 = vadd.f32 %v3041, 1.0
        %v3096 = vadd.f32 %v3043, 1.0
        %v3097 = vadd.f32 %v3045, 1.0
        %v3098 = vadd.f32 %v3047, 1.0
        %v3099 = vadd.f32 %v3049, 1.0
        %v3100 = vadd.f32 %v3051, 1.0
        %v3101 = vadd.f32 %v3053, 1.0
        %v3102 = vadd.f32 %v3055, 1.0
        %v3103 = vadd.f32 %v3057, 1.0
        %v3104 = vadd.f32 %v3059, 1.0
        %v3105 = vadd.f32 %v3061, 1.0
        %v3106 = vadd.f32 %v3063, 1.0
        %v3107 = vadd.f32 %v3065, 1.0
        %v3108 = vadd.f32 %v3067, 1.0
        %v3109 = vadd.f32 %v3069, 1.0
        %v3110 = vadd.f32 %v3071, 1.0
        %v3111 = vadd.f32 %v3073, 1.0
        %v3112 = vadd.f32 %v3075, 1.0
        %v3113 = vadd.f32 %v3077, 1.0
        %v3114 = vadd.f32 %v3079, 1.0
        %v3115 = vadd.f32 %v3081, 1.0
        %v3116 = vadd.f32 %v3083, 1.0
        %v3117 = vadd.f32 %v3085, 1.0
        %v3118 = vrcp.pop %v3086
        %v3119 = vmul.f32 %v3086, %v3118
        %v3120 = vsub.f32 1.0, %v3119
        %v3121 = vmul.f32 %v3118, %v3120
        %v3122 = vadd.f32 %v3118, %v3121
        %vm3123 = vweird.f32 %v3086
        %vm3124 = vweird.f32 %v3118
        %vm3125 = vmor %vm3123, %vm3124
        %v3126 = vsel %vm3125, %v3118, %v3122
        %v3127 = vand.u32 2147483647, %v3086
        %vm3128 = vcmp.eq.f32.partialorder %v3127, 8.507059e+37
        %v3129 = vand.u32 %v3086, 2147483648
        %v3130 = vor.u32 1.1754944e-38, %v3129
        %v3131 = vsel %vm3128, %v3130, %v3126
        %v3132 = vmul.f32 1.0, %v3131
        %v3133 = vrcp.pop %v3087
        %v3134 = vmul.f32 %v3087, %v3133
        %v3135 = vsub.f32 1.0, %v3134
        %v3136 = vmul.f32 %v3133, %v3135
        %v3137 = vadd.f32 %v3133, %v3136
        %vm3138 = vweird.f32 %v3087
        %vm3139 = vweird.f32 %v3133
        %vm3140 = vmor %vm3138, %vm3139
        %v3141 = vsel %vm3140, %v3133, %v3137
        %v3142 = vand.u32 2147483647, %v3087
        %vm3143 = vcmp.eq.f32.partialorder %v3142, 8.507059e+37
        %v3144 = vand.u32 %v3087, 2147483648
        %v3145 = vor.u32 1.1754944e-38, %v3144
        %v3146 = vsel %vm3143, %v3145, %v3141
        %v3147 = vmul.f32 1.0, %v3146
        %v3148 = vrcp.pop %v3088
        %v3149 = vmul.f32 %v3088, %v3148
        %v3150 = vsub.f32 1.0, %v3149
        %v3151 = vmul.f32 %v3148, %v3150
        %v3152 = vadd.f32 %v3148, %v3151
        %vm3153 = vweird.f32 %v3088
        %vm3154 = vweird.f32 %v3148
        %vm3155 = vmor %vm3153, %vm3154
        %v3156 = vsel %vm3155, %v3148, %v3152
        %v3157 = vand.u32 2147483647, %v3088
        %vm3158 = vcmp.eq.f32.partialorder %v3157, 8.507059e+37
        %v3159 = vand.u32 %v3088, 2147483648
        %v3160 = vor.u32 1.1754944e-38, %v3159
        %v3161 = vsel %vm3158, %v3160, %v3156
        %v3162 = vmul.f32 1.0, %v3161
        %v3163 = vrcp.pop %v3089
        %v3164 = vmul.f32 %v3089, %v3163
        %v3165 = vsub.f32 1.0, %v3164
        %v3166 = vmul.f32 %v3163, %v3165
        %v3167 = vadd.f32 %v3163, %v3166
        %vm3168 = vweird.f32 %v3089
        %vm3169 = vweird.f32 %v3163
        %vm3170 = vmor %vm3168, %vm3169
        %v3171 = vsel %vm3170, %v3163, %v3167
        %v3172 = vand.u32 2147483647, %v3089
        %vm3173 = vcmp.eq.f32.partialorder %v3172, 8.507059e+37
        %v3174 = vand.u32 %v3089, 2147483648
        %v3175 = vor.u32 1.1754944e-38, %v3174
        %v3176 = vsel %vm3173, %v3175, %v3171
        %v3177 = vmul.f32 1.0, %v3176
        %v3178 = vrcp.pop %v3090
        %v3179 = vmul.f32 %v3090, %v3178
        %v3180 = vsub.f32 1.0, %v3179
        %v3181 = vmul.f32 %v3178, %v3180
        %v3182 = vadd.f32 %v3178, %v3181
        %vm3183 = vweird.f32 %v3090
        %vm3184 = vweird.f32 %v3178
        %vm3185 = vmor %vm3183, %vm3184
        %v3186 = vsel %vm3185, %v3178, %v3182
        %v3187 = vand.u32 2147483647, %v3090
        %vm3188 = vcmp.eq.f32.partialorder %v3187, 8.507059e+37
        %v3189 = vand.u32 %v3090, 2147483648
        %v3190 = vor.u32 1.1754944e-38, %v3189
        %v3191 = vsel %vm3188, %v3190, %v3186
        %v3192 = vmul.f32 1.0, %v3191
        %v3193 = vrcp.pop %v3091
        %v3194 = vmul.f32 %v3091, %v3193
        %v3195 = vsub.f32 1.0, %v3194
        %v3196 = vmul.f32 %v3193, %v3195
        %v3197 = vadd.f32 %v3193, %v3196
        %vm3198 = vweird.f32 %v3091
        %vm3199 = vweird.f32 %v3193
        %vm3200 = vmor %vm3198, %vm3199
        %v3201 = vsel %vm3200, %v3193, %v3197
        %v3202 = vand.u32 2147483647, %v3091
        %vm3203 = vcmp.eq.f32.partialorder %v3202, 8.507059e+37
        %v3204 = vand.u32 %v3091, 2147483648
        %v3205 = vor.u32 1.1754944e-38, %v3204
        %v3206 = vsel %vm3203, %v3205, %v3201
        %v3207 = vmul.f32 1.0, %v3206
        %v3208 = vrcp.pop %v3092
        %v3209 = vmul.f32 %v3092, %v3208
        %v3210 = vsub.f32 1.0, %v3209
        %v3211 = vmul.f32 %v3208, %v3210
        %v3212 = vadd.f32 %v3208, %v3211
        %vm3213 = vweird.f32 %v3092
        %vm3214 = vweird.f32 %v3208
        %vm3215 = vmor %vm3213, %vm3214
        %v3216 = vsel %vm3215, %v3208, %v3212
        %v3217 = vand.u32 2147483647, %v3092
        %vm3218 = vcmp.eq.f32.partialorder %v3217, 8.507059e+37
        %v3219 = vand.u32 %v3092, 2147483648
        %v3220 = vor.u32 1.1754944e-38, %v3219
        %v3221 = vsel %vm3218, %v3220, %v3216
        %v3222 = vmul.f32 1.0, %v3221
        %v3223 = vrcp.pop %v3093
        %v3224 = vmul.f32 %v3093, %v3223
        %v3225 = vsub.f32 1.0, %v3224
        %v3226 = vmul.f32 %v3223, %v3225
        %v3227 = vadd.f32 %v3223, %v3226
        %vm3228 = vweird.f32 %v3093
        %vm3229 = vweird.f32 %v3223
        %vm3230 = vmor %vm3228, %vm3229
        %v3231 = vsel %vm3230, %v3223, %v3227
        %v3232 = vand.u32 2147483647, %v3093
        %vm3233 = vcmp.eq.f32.partialorder %v3232, 8.507059e+37
        %v3234 = vand.u32 %v3093, 2147483648
        %v3235 = vor.u32 1.1754944e-38, %v3234
        %v3236 = vsel %vm3233, %v3235, %v3231
        %v3237 = vmul.f32 1.0, %v3236
        %v3238 = vrcp.pop %v3094
        %v3239 = vmul.f32 %v3094, %v3238
        %v3240 = vsub.f32 1.0, %v3239
        %v3241 = vmul.f32 %v3238, %v3240
        %v3242 = vadd.f32 %v3238, %v3241
        %vm3243 = vweird.f32 %v3094
        %vm3244 = vweird.f32 %v3238
        %vm3245 = vmor %vm3243, %vm3244
        %v3246 = vsel %vm3245, %v3238, %v3242
        %v3247 = vand.u32 2147483647, %v3094
        %vm3248 = vcmp.eq.f32.partialorder %v3247, 8.507059e+37
        %v3249 = vand.u32 %v3094, 2147483648
        %v3250 = vor.u32 1.1754944e-38, %v3249
        %v3251 = vsel %vm3248, %v3250, %v3246
        %v3252 = vmul.f32 1.0, %v3251
        %v3253 = vrcp.pop %v3095
        %v3254 = vmul.f32 %v3095, %v3253
        %v3255 = vsub.f32 1.0, %v3254
        %v3256 = vmul.f32 %v3253, %v3255
        %v3257 = vadd.f32 %v3253, %v3256
        %vm3258 = vweird.f32 %v3095
        %vm3259 = vweird.f32 %v3253
        %vm3260 = vmor %vm3258, %vm3259
        %v3261 = vsel %vm3260, %v3253, %v3257
        %v3262 = vand.u32 2147483647, %v3095
        %vm3263 = vcmp.eq.f32.partialorder %v3262, 8.507059e+37
        %v3264 = vand.u32 %v3095, 2147483648
        %v3265 = vor.u32 1.1754944e-38, %v3264
        %v3266 = vsel %vm3263, %v3265, %v3261
        %v3267 = vmul.f32 1.0, %v3266
        %v3268 = vrcp.pop %v3096
        %v3269 = vmul.f32 %v3096, %v3268
        %v3270 = vsub.f32 1.0, %v3269
        %v3271 = vmul.f32 %v3268, %v3270
        %v3272 = vadd.f32 %v3268, %v3271
        %vm3273 = vweird.f32 %v3096
        %vm3274 = vweird.f32 %v3268
        %vm3275 = vmor %vm3273, %vm3274
        %v3276 = vsel %vm3275, %v3268, %v3272
        %v3277 = vand.u32 2147483647, %v3096
        %vm3278 = vcmp.eq.f32.partialorder %v3277, 8.507059e+37
        %v3279 = vand.u32 %v3096, 2147483648
        %v3280 = vor.u32 1.1754944e-38, %v3279
        %v3281 = vsel %vm3278, %v3280, %v3276
        %v3282 = vmul.f32 1.0, %v3281
        %v3283 = vrcp.pop %v3097
        %v3284 = vmul.f32 %v3097, %v3283
        %v3285 = vsub.f32 1.0, %v3284
        %v3286 = vmul.f32 %v3283, %v3285
        %v3287 = vadd.f32 %v3283, %v3286
        %vm3288 = vweird.f32 %v3097
        %vm3289 = vweird.f32 %v3283
        %vm3290 = vmor %vm3288, %vm3289
        %v3291 = vsel %vm3290, %v3283, %v3287
        %v3292 = vand.u32 2147483647, %v3097
        %vm3293 = vcmp.eq.f32.partialorder %v3292, 8.507059e+37
        %v3294 = vand.u32 %v3097, 2147483648
        %v3295 = vor.u32 1.1754944e-38, %v3294
        %v3296 = vsel %vm3293, %v3295, %v3291
        %v3297 = vmul.f32 1.0, %v3296
        %v3298 = vrcp.pop %v3098
        %v3299 = vmul.f32 %v3098, %v3298
        %v3300 = vsub.f32 1.0, %v3299
        %v3301 = vmul.f32 %v3298, %v3300
        %v3302 = vadd.f32 %v3298, %v3301
        %vm3303 = vweird.f32 %v3098
        %vm3304 = vweird.f32 %v3298
        %vm3305 = vmor %vm3303, %vm3304
        %v3306 = vsel %vm3305, %v3298, %v3302
        %v3307 = vand.u32 2147483647, %v3098
        %vm3308 = vcmp.eq.f32.partialorder %v3307, 8.507059e+37
        %v3309 = vand.u32 %v3098, 2147483648
        %v3310 = vor.u32 1.1754944e-38, %v3309
        %v3311 = vsel %vm3308, %v3310, %v3306
        %v3312 = vmul.f32 1.0, %v3311
        %v3313 = vrcp.pop %v3099
        %v3314 = vmul.f32 %v3099, %v3313
        %v3315 = vsub.f32 1.0, %v3314
        %v3316 = vmul.f32 %v3313, %v3315
        %v3317 = vadd.f32 %v3313, %v3316
        %vm3318 = vweird.f32 %v3099
        %vm3319 = vweird.f32 %v3313
        %vm3320 = vmor %vm3318, %vm3319
        %v3321 = vsel %vm3320, %v3313, %v3317
        %v3322 = vand.u32 2147483647, %v3099
        %vm3323 = vcmp.eq.f32.partialorder %v3322, 8.507059e+37
        %v3324 = vand.u32 %v3099, 2147483648
        %v3325 = vor.u32 1.1754944e-38, %v3324
        %v3326 = vsel %vm3323, %v3325, %v3321
        %v3327 = vmul.f32 1.0, %v3326
        %v3328 = vrcp.pop %v3100
        %v3329 = vmul.f32 %v3100, %v3328
        %v3330 = vsub.f32 1.0, %v3329
        %v3331 = vmul.f32 %v3328, %v3330
        %v3332 = vadd.f32 %v3328, %v3331
        %vm3333 = vweird.f32 %v3100
        %vm3334 = vweird.f32 %v3328
        %vm3335 = vmor %vm3333, %vm3334
        %v3336 = vsel %vm3335, %v3328, %v3332
        %v3337 = vand.u32 2147483647, %v3100
        %vm3338 = vcmp.eq.f32.partialorder %v3337, 8.507059e+37
        %v3339 = vand.u32 %v3100, 2147483648
        %v3340 = vor.u32 1.1754944e-38, %v3339
        %v3341 = vsel %vm3338, %v3340, %v3336
        %v3342 = vmul.f32 1.0, %v3341
        %v3343 = vrcp.pop %v3101
        %v3344 = vmul.f32 %v3101, %v3343
        %v3345 = vsub.f32 1.0, %v3344
        %v3346 = vmul.f32 %v3343, %v3345
        %v3347 = vadd.f32 %v3343, %v3346
        %vm3348 = vweird.f32 %v3101
        %vm3349 = vweird.f32 %v3343
        %vm3350 = vmor %vm3348, %vm3349
        %v3351 = vsel %vm3350, %v3343, %v3347
        %v3352 = vand.u32 2147483647, %v3101
        %vm3353 = vcmp.eq.f32.partialorder %v3352, 8.507059e+37
        %v3354 = vand.u32 %v3101, 2147483648
        %v3355 = vor.u32 1.1754944e-38, %v3354
        %v3356 = vsel %vm3353, %v3355, %v3351
        %v3357 = vmul.f32 1.0, %v3356
        %v3358 = vrcp.pop %v3102
        %v3359 = vmul.f32 %v3102, %v3358
        %v3360 = vsub.f32 1.0, %v3359
        %v3361 = vmul.f32 %v3358, %v3360
        %v3362 = vadd.f32 %v3358, %v3361
        %vm3363 = vweird.f32 %v3102
        %vm3364 = vweird.f32 %v3358
        %vm3365 = vmor %vm3363, %vm3364
        %v3366 = vsel %vm3365, %v3358, %v3362
        %v3367 = vand.u32 2147483647, %v3102
        %vm3368 = vcmp.eq.f32.partialorder %v3367, 8.507059e+37
        %v3369 = vand.u32 %v3102, 2147483648
        %v3370 = vor.u32 1.1754944e-38, %v3369
        %v3371 = vsel %vm3368, %v3370, %v3366
        %v3372 = vmul.f32 1.0, %v3371
        %v3373 = vrcp.pop %v3103
        %v3374 = vmul.f32 %v3103, %v3373
        %v3375 = vsub.f32 1.0, %v3374
        %v3376 = vmul.f32 %v3373, %v3375
        %v3377 = vadd.f32 %v3373, %v3376
        %vm3378 = vweird.f32 %v3103
        %vm3379 = vweird.f32 %v3373
        %vm3380 = vmor %vm3378, %vm3379
        %v3381 = vsel %vm3380, %v3373, %v3377
        %v3382 = vand.u32 2147483647, %v3103
        %vm3383 = vcmp.eq.f32.partialorder %v3382, 8.507059e+37
        %v3384 = vand.u32 %v3103, 2147483648
        %v3385 = vor.u32 1.1754944e-38, %v3384
        %v3386 = vsel %vm3383, %v3385, %v3381
        %v3387 = vmul.f32 1.0, %v3386
        %v3388 = vrcp.pop %v3104
        %v3389 = vmul.f32 %v3104, %v3388
        %v3390 = vsub.f32 1.0, %v3389
        %v3391 = vmul.f32 %v3388, %v3390
        %v3392 = vadd.f32 %v3388, %v3391
        %vm3393 = vweird.f32 %v3104
        %vm3394 = vweird.f32 %v3388
        %vm3395 = vmor %vm3393, %vm3394
        %v3396 = vsel %vm3395, %v3388, %v3392
        %v3397 = vand.u32 2147483647, %v3104
        %vm3398 = vcmp.eq.f32.partialorder %v3397, 8.507059e+37
        %v3399 = vand.u32 %v3104, 2147483648
        %v3400 = vor.u32 1.1754944e-38, %v3399
        %v3401 = vsel %vm3398, %v3400, %v3396
        %v3402 = vmul.f32 1.0, %v3401
        %v3403 = vrcp.pop %v3105
        %v3404 = vmul.f32 %v3105, %v3403
        %v3405 = vsub.f32 1.0, %v3404
        %v3406 = vmul.f32 %v3403, %v3405
        %v3407 = vadd.f32 %v3403, %v3406
        %vm3408 = vweird.f32 %v3105
        %vm3409 = vweird.f32 %v3403
        %vm3410 = vmor %vm3408, %vm3409
        %v3411 = vsel %vm3410, %v3403, %v3407
        %v3412 = vand.u32 2147483647, %v3105
        %vm3413 = vcmp.eq.f32.partialorder %v3412, 8.507059e+37
        %v3414 = vand.u32 %v3105, 2147483648
        %v3415 = vor.u32 1.1754944e-38, %v3414
        %v3416 = vsel %vm3413, %v3415, %v3411
        %v3417 = vmul.f32 1.0, %v3416
        %v3418 = vrcp.pop %v3106
        %v3419 = vmul.f32 %v3106, %v3418
        %v3420 = vsub.f32 1.0, %v3419
        %v3421 = vmul.f32 %v3418, %v3420
        %v3422 = vadd.f32 %v3418, %v3421
        %vm3423 = vweird.f32 %v3106
        %vm3424 = vweird.f32 %v3418
        %vm3425 = vmor %vm3423, %vm3424
        %v3426 = vsel %vm3425, %v3418, %v3422
        %v3427 = vand.u32 2147483647, %v3106
        %vm3428 = vcmp.eq.f32.partialorder %v3427, 8.507059e+37
        %v3429 = vand.u32 %v3106, 2147483648
        %v3430 = vor.u32 1.1754944e-38, %v3429
        %v3431 = vsel %vm3428, %v3430, %v3426
        %v3432 = vmul.f32 1.0, %v3431
        %v3433 = vrcp.pop %v3107
        %v3434 = vmul.f32 %v3107, %v3433
        %v3435 = vsub.f32 1.0, %v3434
        %v3436 = vmul.f32 %v3433, %v3435
        %v3437 = vadd.f32 %v3433, %v3436
        %vm3438 = vweird.f32 %v3107
        %vm3439 = vweird.f32 %v3433
        %vm3440 = vmor %vm3438, %vm3439
        %v3441 = vsel %vm3440, %v3433, %v3437
        %v3442 = vand.u32 2147483647, %v3107
        %vm3443 = vcmp.eq.f32.partialorder %v3442, 8.507059e+37
        %v3444 = vand.u32 %v3107, 2147483648
        %v3445 = vor.u32 1.1754944e-38, %v3444
        %v3446 = vsel %vm3443, %v3445, %v3441
        %v3447 = vmul.f32 1.0, %v3446
        %v3448 = vrcp.pop %v3108
        %v3449 = vmul.f32 %v3108, %v3448
        %v3450 = vsub.f32 1.0, %v3449
        %v3451 = vmul.f32 %v3448, %v3450
        %v3452 = vadd.f32 %v3448, %v3451
        %vm3453 = vweird.f32 %v3108
        %vm3454 = vweird.f32 %v3448
        %vm3455 = vmor %vm3453, %vm3454
        %v3456 = vsel %vm3455, %v3448, %v3452
        %v3457 = vand.u32 2147483647, %v3108
        %vm3458 = vcmp.eq.f32.partialorder %v3457, 8.507059e+37
        %v3459 = vand.u32 %v3108, 2147483648
        %v3460 = vor.u32 1.1754944e-38, %v3459
        %v3461 = vsel %vm3458, %v3460, %v3456
        %v3462 = vmul.f32 1.0, %v3461
        %v3463 = vrcp.pop %v3109
        %v3464 = vmul.f32 %v3109, %v3463
        %v3465 = vsub.f32 1.0, %v3464
        %v3466 = vmul.f32 %v3463, %v3465
        %v3467 = vadd.f32 %v3463, %v3466
        %vm3468 = vweird.f32 %v3109
        %vm3469 = vweird.f32 %v3463
        %vm3470 = vmor %vm3468, %vm3469
        %v3471 = vsel %vm3470, %v3463, %v3467
        %v3472 = vand.u32 2147483647, %v3109
        %vm3473 = vcmp.eq.f32.partialorder %v3472, 8.507059e+37
        %v3474 = vand.u32 %v3109, 2147483648
        %v3475 = vor.u32 1.1754944e-38, %v3474
        %v3476 = vsel %vm3473, %v3475, %v3471
        %v3477 = vmul.f32 1.0, %v3476
        %v3478 = vrcp.pop %v3110
        %v3479 = vmul.f32 %v3110, %v3478
        %v3480 = vsub.f32 1.0, %v3479
        %v3481 = vmul.f32 %v3478, %v3480
        %v3482 = vadd.f32 %v3478, %v3481
        %vm3483 = vweird.f32 %v3110
        %vm3484 = vweird.f32 %v3478
        %vm3485 = vmor %vm3483, %vm3484
        %v3486 = vsel %vm3485, %v3478, %v3482
        %v3487 = vand.u32 2147483647, %v3110
        %vm3488 = vcmp.eq.f32.partialorder %v3487, 8.507059e+37
        %v3489 = vand.u32 %v3110, 2147483648
        %v3490 = vor.u32 1.1754944e-38, %v3489
        %v3491 = vsel %vm3488, %v3490, %v3486
        %v3492 = vmul.f32 1.0, %v3491
        %v3493 = vrcp.pop %v3111
        %v3494 = vmul.f32 %v3111, %v3493
        %v3495 = vsub.f32 1.0, %v3494
        %v3496 = vmul.f32 %v3493, %v3495
        %v3497 = vadd.f32 %v3493, %v3496
        %vm3498 = vweird.f32 %v3111
        %vm3499 = vweird.f32 %v3493
        %vm3500 = vmor %vm3498, %vm3499
        %v3501 = vsel %vm3500, %v3493, %v3497
        %v3502 = vand.u32 2147483647, %v3111
        %vm3503 = vcmp.eq.f32.partialorder %v3502, 8.507059e+37
        %v3504 = vand.u32 %v3111, 2147483648
        %v3505 = vor.u32 1.1754944e-38, %v3504
        %v3506 = vsel %vm3503, %v3505, %v3501
        %v3507 = vmul.f32 1.0, %v3506
        %v3508 = vrcp.pop %v3112
        %v3509 = vmul.f32 %v3112, %v3508
        %v3510 = vsub.f32 1.0, %v3509
        %v3511 = vmul.f32 %v3508, %v3510
        %v3512 = vadd.f32 %v3508, %v3511
        %vm3513 = vweird.f32 %v3112
        %vm3514 = vweird.f32 %v3508
        %vm3515 = vmor %vm3513, %vm3514
        %v3516 = vsel %vm3515, %v3508, %v3512
        %v3517 = vand.u32 2147483647, %v3112
        %vm3518 = vcmp.eq.f32.partialorder %v3517, 8.507059e+37
        %v3519 = vand.u32 %v3112, 2147483648
        %v3520 = vor.u32 1.1754944e-38, %v3519
        %v3521 = vsel %vm3518, %v3520, %v3516
        %v3522 = vmul.f32 1.0, %v3521
        %v3523 = vrcp.pop %v3113
        %v3524 = vmul.f32 %v3113, %v3523
        %v3525 = vsub.f32 1.0, %v3524
        %v3526 = vmul.f32 %v3523, %v3525
        %v3527 = vadd.f32 %v3523, %v3526
        %vm3528 = vweird.f32 %v3113
        %vm3529 = vweird.f32 %v3523
        %vm3530 = vmor %vm3528, %vm3529
        %v3531 = vsel %vm3530, %v3523, %v3527
        %v3532 = vand.u32 2147483647, %v3113
        %vm3533 = vcmp.eq.f32.partialorder %v3532, 8.507059e+37
        %v3534 = vand.u32 %v3113, 2147483648
        %v3535 = vor.u32 1.1754944e-38, %v3534
        %v3536 = vsel %vm3533, %v3535, %v3531
        %v3537 = vmul.f32 1.0, %v3536
        %v3538 = vrcp.pop %v3114
        %v3539 = vmul.f32 %v3114, %v3538
        %v3540 = vsub.f32 1.0, %v3539
        %v3541 = vmul.f32 %v3538, %v3540
        %v3542 = vadd.f32 %v3538, %v3541
        %vm3543 = vweird.f32 %v3114
        %vm3544 = vweird.f32 %v3538
        %vm3545 = vmor %vm3543, %vm3544
        %v3546 = vsel %vm3545, %v3538, %v3542
        %v3547 = vand.u32 2147483647, %v3114
        %vm3548 = vcmp.eq.f32.partialorder %v3547, 8.507059e+37
        %v3549 = vand.u32 %v3114, 2147483648
        %v3550 = vor.u32 1.1754944e-38, %v3549
        %v3551 = vsel %vm3548, %v3550, %v3546
        %v3552 = vmul.f32 1.0, %v3551
        %v3553 = vrcp.pop %v3115
        %v3554 = vmul.f32 %v3115, %v3553
        %v3555 = vsub.f32 1.0, %v3554
        %v3556 = vmul.f32 %v3553, %v3555
        %v3557 = vadd.f32 %v3553, %v3556
        %vm3558 = vweird.f32 %v3115
        %vm3559 = vweird.f32 %v3553
        %vm3560 = vmor %vm3558, %vm3559
        %v3561 = vsel %vm3560, %v3553, %v3557
        %v3562 = vand.u32 2147483647, %v3115
        %vm3563 = vcmp.eq.f32.partialorder %v3562, 8.507059e+37
        %v3564 = vand.u32 %v3115, 2147483648
        %v3565 = vor.u32 1.1754944e-38, %v3564
        %v3566 = vsel %vm3563, %v3565, %v3561
        %v3567 = vmul.f32 1.0, %v3566
        %v3568 = vrcp.pop %v3116
        %v3569 = vmul.f32 %v3116, %v3568
        %v3570 = vsub.f32 1.0, %v3569
        %v3571 = vmul.f32 %v3568, %v3570
        %v3572 = vadd.f32 %v3568, %v3571
        %vm3573 = vweird.f32 %v3116
        %vm3574 = vweird.f32 %v3568
        %vm3575 = vmor %vm3573, %vm3574
        %v3576 = vsel %vm3575, %v3568, %v3572
        %v3577 = vand.u32 2147483647, %v3116
        %vm3578 = vcmp.eq.f32.partialorder %v3577, 8.507059e+37
        %v3579 = vand.u32 %v3116, 2147483648
        %v3580 = vor.u32 1.1754944e-38, %v3579
        %v3581 = vsel %vm3578, %v3580, %v3576
        %v3582 = vmul.f32 1.0, %v3581
        %v3583 = vrcp.pop %v3117
        %v3584 = vmul.f32 %v3117, %v3583
        %v3585 = vsub.f32 1.0, %v3584
        %v3586 = vmul.f32 %v3583, %v3585
        %v3587 = vadd.f32 %v3583, %v3586
        %vm3588 = vweird.f32 %v3117
        %vm3589 = vweird.f32 %v3583
        %vm3590 = vmor %vm3588, %vm3589
        %v3591 = vsel %vm3590, %v3583, %v3587
        %v3592 = vand.u32 2147483647, %v3117
        %vm3593 = vcmp.eq.f32.partialorder %v3592, 8.507059e+37
        %v3594 = vand.u32 %v3117, 2147483648
        %v3595 = vor.u32 1.1754944e-38, %v3594
        %v3596 = vsel %vm3593, %v3595, %v3591
        %v3597 = vmul.f32 1.0, %v3596
        %v3598 = vmul.f32 %v2958, %v3132
        %v3599 = vmul.f32 %v2959, %v3147
        %v3600 = vmul.f32 %v2960, %v3162
        %v3601 = vmul.f32 %v2961, %v3177
        %v3602 = vmul.f32 %v2962, %v3192
        %v3603 = vmul.f32 %v2963, %v3207
        %v3604 = vmul.f32 %v2964, %v3222
        %v3605 = vmul.f32 %v2965, %v3237
        %v3606 = vmul.f32 %v2966, %v3252
        %v3607 = vmul.f32 %v2967, %v3267
        %v3608 = vmul.f32 %v2968, %v3282
        %v3609 = vmul.f32 %v2969, %v3297
        %v3610 = vmul.f32 %v2970, %v3312
        %v3611 = vmul.f32 %v2971, %v3327
        %v3612 = vmul.f32 %v2972, %v3342
        %v3613 = vmul.f32 %v2973, %v3357
        %v3614 = vmul.f32 %v2974, %v3372
        %v3615 = vmul.f32 %v2975, %v3387
        %v3616 = vmul.f32 %v2976, %v3402
        %v3617 = vmul.f32 %v2977, %v3417
        %v3618 = vmul.f32 %v2978, %v3432
        %v3619 = vmul.f32 %v2979, %v3447
        %v3620 = vmul.f32 %v2980, %v3462
        %v3621 = vmul.f32 %v2981, %v3477
        %v3622 = vmul.f32 %v2982, %v3492
        %v3623 = vmul.f32 %v2983, %v3507
        %v3624 = vmul.f32 %v2984, %v3522
        %v3625 = vmul.f32 %v2985, %v3537
        %v3626 = vmul.f32 %v2986, %v3552
        %v3627 = vmul.f32 %v2987, %v3567
        %v3628 = vmul.f32 %v2988, %v3582
        %v3629 = vmul.f32 %v2989, %v3597
        %v3630 = vpack.c.bf16 %v3602, %v3598
        %v3631 = vpack.c.bf16 %v3603, %v3599
        %v3632 = vpack.c.bf16 %v3604, %v3600
        %v3633 = vpack.c.bf16 %v3605, %v3601
        %v3634 = vpack.c.bf16 %v3610, %v3606
        %v3635 = vpack.c.bf16 %v3611, %v3607
        %v3636 = vpack.c.bf16 %v3612, %v3608
        %v3637 = vpack.c.bf16 %v3613, %v3609
        %v3638 = vpack.c.bf16 %v3618, %v3614
        %v3639 = vpack.c.bf16 %v3619, %v3615
        %v3640 = vpack.c.bf16 %v3620, %v3616
        %v3641 = vpack.c.bf16 %v3621, %v3617
        %v3642 = vpack.c.bf16 %v3626, %v3622
        %v3643 = vpack.c.bf16 %v3627, %v3623
        %v3644 = vpack.c.bf16 %v3628, %v3624
        %v3645 = vpack.c.bf16 %v3629, %v3625
        %v3646 = vld [vmem:[%s4] sm:$0xf]
        %v3647 = vld [vmem:[%s4 + $0x4] sm:$0xf]
        %v3648 = vld [vmem:[%s4 + $0x8] sm:$0xf]
        %v3649 = vld [vmem:[%s4 + $0xc] sm:$0xf]
        %v3650 = vld [vmem:[%s4 + $0x10] sm:$0xf]
        %v3651 = vld [vmem:[%s4 + $0x14] sm:$0xf]
        %v3652 = vld [vmem:[%s4 + $0x18] sm:$0xf]
        %v3653 = vld [vmem:[%s4 + $0x1c] sm:$0xf]
        %v3654 = vld [vmem:[%s4 + $0x20] sm:$0xf]
        %v3655 = vld [vmem:[%s4 + $0x24] sm:$0xf]
        %v3656 = vld [vmem:[%s4 + $0x28] sm:$0xf]
        %v3657 = vld [vmem:[%s4 + $0x2c] sm:$0xf]
        %v3658 = vld [vmem:[%s4 + $0x30] sm:$0xf]
        %v3659 = vld [vmem:[%s4 + $0x34] sm:$0xf]
        %v3660 = vld [vmem:[%s4 + $0x38] sm:$0xf]
        %v3661 = vld [vmem:[%s4 + $0x3c] sm:$0xf]
        %v3662 = vld [vmem:[%s4 + $0x40] sm:$0xf]
        %v3663 = vld [vmem:[%s4 + $0x44] sm:$0xf]
        %v3664 = vld [vmem:[%s4 + $0x48] sm:$0xf]
        %v3665 = vld [vmem:[%s4 + $0x4c] sm:$0xf]
        %v3666 = vld [vmem:[%s4 + $0x50] sm:$0xf]
        %v3667 = vld [vmem:[%s4 + $0x54] sm:$0xf]
        %v3668 = vld [vmem:[%s4 + $0x58] sm:$0xf]
        %v3669 = vld [vmem:[%s4 + $0x5c] sm:$0xf]
        %v3670 = vld [vmem:[%s4 + $0x60] sm:$0xf]
        %v3671 = vld [vmem:[%s4 + $0x64] sm:$0xf]
        %v3672 = vld [vmem:[%s4 + $0x68] sm:$0xf]
        %v3673 = vld [vmem:[%s4 + $0x6c] sm:$0xf]
        %v3674 = vld [vmem:[%s4 + $0x70] sm:$0xf]
        %v3675 = vld [vmem:[%s4 + $0x74] sm:$0xf]
        %v3676 = vld [vmem:[%s4 + $0x78] sm:$0xf]
        %v3677 = vld [vmem:[%s4 + $0x7c] sm:$0xf]
        %v3678 = vld [vmem:[%s4 + $0x80] sm:$0xf]
        %v3679 = vld [vmem:[%s4 + $0x84] sm:$0xf]
        %v3680 = vld [vmem:[%s4 + $0x88] sm:$0xf]
        %v3681 = vld [vmem:[%s4 + $0x8c] sm:$0xf]
        %v3718 = vunpack.c.l.b16 %v3646
        %v3719 = vunpack.c.l.b16 %v3647
        %v3720 = vunpack.c.l.b16 %v3648
        %v3721 = vunpack.c.l.b16 %v3649
        %v3722 = vunpack.c.l.b16 %v3650
        %v3723 = vunpack.c.l.b16 %v3651
        %v3724 = vunpack.c.l.b16 %v3652
        %v3725 = vunpack.c.l.b16 %v3653
        %v3726 = vunpack.c.l.b16 %v3654
        %v3727 = vunpack.c.l.b16 %v3655
        %v3728 = vunpack.c.l.b16 %v3656
        %v3729 = vunpack.c.l.b16 %v3657
        %v3730 = vunpack.c.l.b16 %v3658
        %v3731 = vunpack.c.l.b16 %v3659
        %v3732 = vunpack.c.l.b16 %v3660
        %v3733 = vunpack.c.l.b16 %v3661
        %v3734 = vunpack.c.l.b16 %v3662
        %v3735 = vunpack.c.l.b16 %v3663
        %v3736 = vunpack.c.l.b16 %v3664
        %v3737 = vunpack.c.l.b16 %v3665
        %v3738 = vunpack.c.l.b16 %v3666
        %v3739 = vunpack.c.l.b16 %v3667
        %v3740 = vunpack.c.l.b16 %v3668
        %v3741 = vunpack.c.l.b16 %v3669
        %v3742 = vunpack.c.l.b16 %v3670
        %v3743 = vunpack.c.l.b16 %v3671
        %v3744 = vunpack.c.l.b16 %v3672
        %v3745 = vunpack.c.l.b16 %v3673
        %v3746 = vunpack.c.l.b16 %v3674
        %v3747 = vunpack.c.l.b16 %v3675
        %v3748 = vunpack.c.l.b16 %v3676
        %v3749 = vunpack.c.l.b16 %v3677
        %v3750 = vunpack.c.l.b16 %v3678
        %v3751 = vunpack.c.l.b16 %v3679
        %v3752 = vunpack.c.l.b16 %v3680
        %v3753 = vunpack.c.l.b16 %v3681
        %v3754 = vpack.c.b16 %v3719, %v3718
        %v3755 = vpack.c.b16 %v3721, %v3720
        %v3756 = vpack.c.b16 %v3723, %v3722
        %v3757 = vpack.c.b16 %v3725, %v3724
        %v3758 = vpack.c.b16 %v3727, %v3726
        %v3759 = vpack.c.b16 %v3729, %v3728
        %v3760 = vpack.c.b16 %v3731, %v3730
        %v3761 = vpack.c.b16 %v3733, %v3732
        %v3762 = vpack.c.b16 %v3735, %v3734
        %v3763 = vpack.c.b16 %v3737, %v3736
        %v3764 = vpack.c.b16 %v3739, %v3738
        %v3765 = vpack.c.b16 %v3741, %v3740
        %v3766 = vpack.c.b16 %v3743, %v3742
        %v3767 = vpack.c.b16 %v3745, %v3744
        %v3768 = vpack.c.b16 %v3747, %v3746
        %v3769 = vpack.c.b16 %v3749, %v3748
        %v3770 = vpack.c.b16 %v3751, %v3750
        %v3771 = vpack.c.b16 %v3753, %v3752
        %vm3772 = vcmask 523264
        %v3774 = vsel %vm3772, %v3754, 0
        %v3777 = vsel %vm3772, %v3755, 0
        %v3780 = vsel %vm3772, %v3756, 0
        %v3783 = vsel %vm3772, %v3757, 0
        %v3786 = vsel %vm3772, %v3758, 0
        %v3789 = vsel %vm3772, %v3759, 0
        %v3792 = vsel %vm3772, %v3760, 0
        %v3795 = vsel %vm3772, %v3761, 0
        %v3798 = vsel %vm3772, %v3762, 0
        %v3801 = vsel %vm3772, %v3763, 0
        %v3804 = vsel %vm3772, %v3764, 0
        %v3807 = vsel %vm3772, %v3765, 0
        %v3810 = vsel %vm3772, %v3766, 0
        %v3813 = vsel %vm3772, %v3767, 0
        %v3816 = vsel %vm3772, %v3768, 0
        %v3819 = vsel %vm3772, %v3769, 0
        %v3822 = vsel %vm3772, %v3770, 0
        %v3825 = vsel %vm3772, %v3771, 0
        %3827 = vmatpush.bf16.msra.mxu0 0
        %3828 = vmatpush.bf16.msra.mxu0 0
        %3829 = vmatpush.bf16.msra.mxu0 0
        %3830 = vmatpush.bf16.msra.mxu0 0
        %3831 = vmatpush.bf16.msra.mxu0 %v3642
        %3832 = vmatpush.bf16.msra.mxu0 %v3638
        %3833 = vmatpush.bf16.msra.mxu0 %v3634
        %3834 = vmatpush.bf16.msra.mxu0 %v3630
        %3835 = vmatmul.bf16.gmra.mxu0 %v3774
        %v3836 = vpop.f32.mrf.mxu0
        %v3837 = vadd.f32 0.0, %v3836
        %v3838 = vpop.f32.mrf.mxu0
        %v3839 = vadd.f32 0.0, %v3838
        %3840 = vmatmul.bf16.gmra.mxu0 %v3777
        %v3841 = vpop.f32.mrf.mxu0
        %v3842 = vadd.f32 0.0, %v3841
        %v3843 = vpop.f32.mrf.mxu0
        %v3844 = vadd.f32 0.0, %v3843
        %3845 = vmatmul.bf16.gmra.mxu0 %v3780
        %v3846 = vpop.f32.mrf.mxu0
        %v3847 = vadd.f32 0.0, %v3846
        %v3848 = vpop.f32.mrf.mxu0
        %v3849 = vadd.f32 0.0, %v3848
        %3850 = vmatmul.bf16.gmra.mxu0 %v3783
        %v3851 = vpop.f32.mrf.mxu0
        %v3852 = vadd.f32 0.0, %v3851
        %v3853 = vpop.f32.mrf.mxu0
        %v3854 = vadd.f32 0.0, %v3853
        %3855 = vmatmul.bf16.gmra.mxu0 %v3786
        %v3856 = vpop.f32.mrf.mxu0
        %v3857 = vadd.f32 0.0, %v3856
        %v3858 = vpop.f32.mrf.mxu0
        %v3859 = vadd.f32 0.0, %v3858
        %3860 = vmatmul.bf16.gmra.mxu0 %v3789
        %v3861 = vpop.f32.mrf.mxu0
        %v3862 = vadd.f32 0.0, %v3861
        %v3863 = vpop.f32.mrf.mxu0
        %v3864 = vadd.f32 0.0, %v3863
        %3865 = vmatmul.bf16.gmra.mxu0 %v3792
        %v3866 = vpop.f32.mrf.mxu0
        %v3867 = vadd.f32 0.0, %v3866
        %v3868 = vpop.f32.mrf.mxu0
        %v3869 = vadd.f32 0.0, %v3868
        %3870 = vmatmul.bf16.gmra.mxu0 %v3795
        %v3871 = vpop.f32.mrf.mxu0
        %v3872 = vadd.f32 0.0, %v3871
        %v3873 = vpop.f32.mrf.mxu0
        %v3874 = vadd.f32 0.0, %v3873
        %3875 = vmatmul.bf16.gmra.mxu0 %v3798
        %v3876 = vpop.f32.mrf.mxu0
        %v3877 = vadd.f32 0.0, %v3876
        %v3878 = vpop.f32.mrf.mxu0
        %v3879 = vadd.f32 0.0, %v3878
        %3880 = vmatmul.bf16.gmra.mxu0 %v3801
        %v3881 = vpop.f32.mrf.mxu0
        %v3882 = vadd.f32 0.0, %v3881
        %v3883 = vpop.f32.mrf.mxu0
        %v3884 = vadd.f32 0.0, %v3883
        %3885 = vmatmul.bf16.gmra.mxu0 %v3804
        %v3886 = vpop.f32.mrf.mxu0
        %v3887 = vadd.f32 0.0, %v3886
        %v3888 = vpop.f32.mrf.mxu0
        %v3889 = vadd.f32 0.0, %v3888
        %3890 = vmatmul.bf16.gmra.mxu0 %v3807
        %v3891 = vpop.f32.mrf.mxu0
        %v3892 = vadd.f32 0.0, %v3891
        %v3893 = vpop.f32.mrf.mxu0
        %v3894 = vadd.f32 0.0, %v3893
        %3895 = vmatmul.bf16.gmra.mxu0 %v3810
        %v3896 = vpop.f32.mrf.mxu0
        %v3897 = vadd.f32 0.0, %v3896
        %v3898 = vpop.f32.mrf.mxu0
        %v3899 = vadd.f32 0.0, %v3898
        %3900 = vmatmul.bf16.gmra.mxu0 %v3813
        %v3901 = vpop.f32.mrf.mxu0
        %v3902 = vadd.f32 0.0, %v3901
        %v3903 = vpop.f32.mrf.mxu0
        %v3904 = vadd.f32 0.0, %v3903
        %3905 = vmatmul.bf16.gmra.mxu0 %v3816
        %v3906 = vpop.f32.mrf.mxu0
        %v3907 = vadd.f32 0.0, %v3906
        %v3908 = vpop.f32.mrf.mxu0
        %v3909 = vadd.f32 0.0, %v3908
        %3910 = vmatmul.bf16.gmra.mxu0 %v3819
        %v3911 = vpop.f32.mrf.mxu0
        %v3912 = vadd.f32 0.0, %v3911
        %v3913 = vpop.f32.mrf.mxu0
        %v3914 = vadd.f32 0.0, %v3913
        %3915 = vmatmul.bf16.gmra.mxu0 %v3822
        %v3916 = vpop.f32.mrf.mxu0
        %v3917 = vadd.f32 0.0, %v3916
        %v3918 = vpop.f32.mrf.mxu0
        %v3919 = vadd.f32 0.0, %v3918
        %3920 = vmatmul.bf16.gmra.mxu0 %v3825
        %v3921 = vpop.f32.mrf.mxu0
        %v3922 = vadd.f32 0.0, %v3921
        %v3923 = vpop.f32.mrf.mxu0
        %v3924 = vadd.f32 0.0, %v3923
        %3925 = vdwg.mxu0
        %3926 = vmatpush.bf16.msra.mxu0 0
        %3927 = vmatpush.bf16.msra.mxu0 0
        %3928 = vmatpush.bf16.msra.mxu0 0
        %3929 = vmatpush.bf16.msra.mxu0 0
        %3930 = vmatpush.bf16.msra.mxu0 %v3643
        %3931 = vmatpush.bf16.msra.mxu0 %v3639
        %3932 = vmatpush.bf16.msra.mxu0 %v3635
        %3933 = vmatpush.bf16.msra.mxu0 %v3631
        %3934 = vmatmul.bf16.gmra.mxu0 %v3774
        %v3935 = vpop.f32.mrf.mxu0
        %v3936 = vadd.f32 0.0, %v3935
        %v3937 = vpop.f32.mrf.mxu0
        %v3938 = vadd.f32 0.0, %v3937
        %3939 = vmatmul.bf16.gmra.mxu0 %v3777
        %v3940 = vpop.f32.mrf.mxu0
        %v3941 = vadd.f32 0.0, %v3940
        %v3942 = vpop.f32.mrf.mxu0
        %v3943 = vadd.f32 0.0, %v3942
        %3944 = vmatmul.bf16.gmra.mxu0 %v3780
        %v3945 = vpop.f32.mrf.mxu0
        %v3946 = vadd.f32 0.0, %v3945
        %v3947 = vpop.f32.mrf.mxu0
        %v3948 = vadd.f32 0.0, %v3947
        %3949 = vmatmul.bf16.gmra.mxu0 %v3783
        %v3950 = vpop.f32.mrf.mxu0
        %v3951 = vadd.f32 0.0, %v3950
        %v3952 = vpop.f32.mrf.mxu0
        %v3953 = vadd.f32 0.0, %v3952
        %3954 = vmatmul.bf16.gmra.mxu0 %v3786
        %v3955 = vpop.f32.mrf.mxu0
        %v3956 = vadd.f32 0.0, %v3955
        %v3957 = vpop.f32.mrf.mxu0
        %v3958 = vadd.f32 0.0, %v3957
        %3959 = vmatmul.bf16.gmra.mxu0 %v3789
        %v3960 = vpop.f32.mrf.mxu0
        %v3961 = vadd.f32 0.0, %v3960
        %v3962 = vpop.f32.mrf.mxu0
        %v3963 = vadd.f32 0.0, %v3962
        %3964 = vmatmul.bf16.gmra.mxu0 %v3792
        %v3965 = vpop.f32.mrf.mxu0
        %v3966 = vadd.f32 0.0, %v3965
        %v3967 = vpop.f32.mrf.mxu0
        %v3968 = vadd.f32 0.0, %v3967
        %3969 = vmatmul.bf16.gmra.mxu0 %v3795
        %v3970 = vpop.f32.mrf.mxu0
        %v3971 = vadd.f32 0.0, %v3970
        %v3972 = vpop.f32.mrf.mxu0
        %v3973 = vadd.f32 0.0, %v3972
        %3974 = vmatmul.bf16.gmra.mxu0 %v3798
        %v3975 = vpop.f32.mrf.mxu0
        %v3976 = vadd.f32 0.0, %v3975
        %v3977 = vpop.f32.mrf.mxu0
        %v3978 = vadd.f32 0.0, %v3977
        %3979 = vmatmul.bf16.gmra.mxu0 %v3801
        %v3980 = vpop.f32.mrf.mxu0
        %v3981 = vadd.f32 0.0, %v3980
        %v3982 = vpop.f32.mrf.mxu0
        %v3983 = vadd.f32 0.0, %v3982
        %3984 = vmatmul.bf16.gmra.mxu0 %v3804
        %v3985 = vpop.f32.mrf.mxu0
        %v3986 = vadd.f32 0.0, %v3985
        %v3987 = vpop.f32.mrf.mxu0
        %v3988 = vadd.f32 0.0, %v3987
        %3989 = vmatmul.bf16.gmra.mxu0 %v3807
        %v3990 = vpop.f32.mrf.mxu0
        %v3991 = vadd.f32 0.0, %v3990
        %v3992 = vpop.f32.mrf.mxu0
        %v3993 = vadd.f32 0.0, %v3992
        %3994 = vmatmul.bf16.gmra.mxu0 %v3810
        %v3995 = vpop.f32.mrf.mxu0
        %v3996 = vadd.f32 0.0, %v3995
        %v3997 = vpop.f32.mrf.mxu0
        %v3998 = vadd.f32 0.0, %v3997
        %3999 = vmatmul.bf16.gmra.mxu0 %v3813
        %v4000 = vpop.f32.mrf.mxu0
        %v4001 = vadd.f32 0.0, %v4000
        %v4002 = vpop.f32.mrf.mxu0
        %v4003 = vadd.f32 0.0, %v4002
        %4004 = vmatmul.bf16.gmra.mxu0 %v3816
        %v4005 = vpop.f32.mrf.mxu0
        %v4006 = vadd.f32 0.0, %v4005
        %v4007 = vpop.f32.mrf.mxu0
        %v4008 = vadd.f32 0.0, %v4007
        %4009 = vmatmul.bf16.gmra.mxu0 %v3819
        %v4010 = vpop.f32.mrf.mxu0
        %v4011 = vadd.f32 0.0, %v4010
        %v4012 = vpop.f32.mrf.mxu0
        %v4013 = vadd.f32 0.0, %v4012
        %4014 = vmatmul.bf16.gmra.mxu0 %v3822
        %v4015 = vpop.f32.mrf.mxu0
        %v4016 = vadd.f32 0.0, %v4015
        %v4017 = vpop.f32.mrf.mxu0
        %v4018 = vadd.f32 0.0, %v4017
        %4019 = vmatmul.bf16.gmra.mxu0 %v3825
        %v4020 = vpop.f32.mrf.mxu0
        %v4021 = vadd.f32 0.0, %v4020
        %v4022 = vpop.f32.mrf.mxu0
        %v4023 = vadd.f32 0.0, %v4022
        %4024 = vdwg.mxu0
        %4025 = vmatpush.bf16.msra.mxu0 0
        %4026 = vmatpush.bf16.msra.mxu0 0
        %4027 = vmatpush.bf16.msra.mxu0 0
        %4028 = vmatpush.bf16.msra.mxu0 0
        %4029 = vmatpush.bf16.msra.mxu0 %v3644
        %4030 = vmatpush.bf16.msra.mxu0 %v3640
        %4031 = vmatpush.bf16.msra.mxu0 %v3636
        %4032 = vmatpush.bf16.msra.mxu0 %v3632
        %4033 = vmatmul.bf16.gmra.mxu0 %v3774
        %v4034 = vpop.f32.mrf.mxu0
        %v4035 = vadd.f32 0.0, %v4034
        %v4036 = vpop.f32.mrf.mxu0
        %v4037 = vadd.f32 0.0, %v4036
        %4038 = vmatmul.bf16.gmra.mxu0 %v3777
        %v4039 = vpop.f32.mrf.mxu0
        %v4040 = vadd.f32 0.0, %v4039
        %v4041 = vpop.f32.mrf.mxu0
        %v4042 = vadd.f32 0.0, %v4041
        %4043 = vmatmul.bf16.gmra.mxu0 %v3780
        %v4044 = vpop.f32.mrf.mxu0
        %v4045 = vadd.f32 0.0, %v4044
        %v4046 = vpop.f32.mrf.mxu0
        %v4047 = vadd.f32 0.0, %v4046
        %4048 = vmatmul.bf16.gmra.mxu0 %v3783
        %v4049 = vpop.f32.mrf.mxu0
        %v4050 = vadd.f32 0.0, %v4049
        %v4051 = vpop.f32.mrf.mxu0
        %v4052 = vadd.f32 0.0, %v4051
        %4053 = vmatmul.bf16.gmra.mxu0 %v3786
        %v4054 = vpop.f32.mrf.mxu0
        %v4055 = vadd.f32 0.0, %v4054
        %v4056 = vpop.f32.mrf.mxu0
        %v4057 = vadd.f32 0.0, %v4056
        %4058 = vmatmul.bf16.gmra.mxu0 %v3789
        %v4059 = vpop.f32.mrf.mxu0
        %v4060 = vadd.f32 0.0, %v4059
        %v4061 = vpop.f32.mrf.mxu0
        %v4062 = vadd.f32 0.0, %v4061
        %4063 = vmatmul.bf16.gmra.mxu0 %v3792
        %v4064 = vpop.f32.mrf.mxu0
        %v4065 = vadd.f32 0.0, %v4064
        %v4066 = vpop.f32.mrf.mxu0
        %v4067 = vadd.f32 0.0, %v4066
        %4068 = vmatmul.bf16.gmra.mxu0 %v3795
        %v4069 = vpop.f32.mrf.mxu0
        %v4070 = vadd.f32 0.0, %v4069
        %v4071 = vpop.f32.mrf.mxu0
        %v4072 = vadd.f32 0.0, %v4071
        %4073 = vmatmul.bf16.gmra.mxu0 %v3798
        %v4074 = vpop.f32.mrf.mxu0
        %v4075 = vadd.f32 0.0, %v4074
        %v4076 = vpop.f32.mrf.mxu0
        %v4077 = vadd.f32 0.0, %v4076
        %4078 = vmatmul.bf16.gmra.mxu0 %v3801
        %v4079 = vpop.f32.mrf.mxu0
        %v4080 = vadd.f32 0.0, %v4079
        %v4081 = vpop.f32.mrf.mxu0
        %v4082 = vadd.f32 0.0, %v4081
        %4083 = vmatmul.bf16.gmra.mxu0 %v3804
        %v4084 = vpop.f32.mrf.mxu0
        %v4085 = vadd.f32 0.0, %v4084
        %v4086 = vpop.f32.mrf.mxu0
        %v4087 = vadd.f32 0.0, %v4086
        %4088 = vmatmul.bf16.gmra.mxu0 %v3807
        %v4089 = vpop.f32.mrf.mxu0
        %v4090 = vadd.f32 0.0, %v4089
        %v4091 = vpop.f32.mrf.mxu0
        %v4092 = vadd.f32 0.0, %v4091
        %4093 = vmatmul.bf16.gmra.mxu0 %v3810
        %v4094 = vpop.f32.mrf.mxu0
        %v4095 = vadd.f32 0.0, %v4094
        %v4096 = vpop.f32.mrf.mxu0
        %v4097 = vadd.f32 0.0, %v4096
        %4098 = vmatmul.bf16.gmra.mxu0 %v3813
        %v4099 = vpop.f32.mrf.mxu0
        %v4100 = vadd.f32 0.0, %v4099
        %v4101 = vpop.f32.mrf.mxu0
        %v4102 = vadd.f32 0.0, %v4101
        %4103 = vmatmul.bf16.gmra.mxu0 %v3816
        %v4104 = vpop.f32.mrf.mxu0
        %v4105 = vadd.f32 0.0, %v4104
        %v4106 = vpop.f32.mrf.mxu0
        %v4107 = vadd.f32 0.0, %v4106
        %4108 = vmatmul.bf16.gmra.mxu0 %v3819
        %v4109 = vpop.f32.mrf.mxu0
        %v4110 = vadd.f32 0.0, %v4109
        %v4111 = vpop.f32.mrf.mxu0
        %v4112 = vadd.f32 0.0, %v4111
        %4113 = vmatmul.bf16.gmra.mxu0 %v3822
        %v4114 = vpop.f32.mrf.mxu0
        %v4115 = vadd.f32 0.0, %v4114
        %v4116 = vpop.f32.mrf.mxu0
        %v4117 = vadd.f32 0.0, %v4116
        %4118 = vmatmul.bf16.gmra.mxu0 %v3825
        %v4119 = vpop.f32.mrf.mxu0
        %v4120 = vadd.f32 0.0, %v4119
        %v4121 = vpop.f32.mrf.mxu0
        %v4122 = vadd.f32 0.0, %v4121
        %4123 = vdwg.mxu0
        %4124 = vmatpush.bf16.msra.mxu0 0
        %4125 = vmatpush.bf16.msra.mxu0 0
        %4126 = vmatpush.bf16.msra.mxu0 0
        %4127 = vmatpush.bf16.msra.mxu0 0
        %4128 = vmatpush.bf16.msra.mxu0 %v3645
        %4129 = vmatpush.bf16.msra.mxu0 %v3641
        %4130 = vmatpush.bf16.msra.mxu0 %v3637
        %4131 = vmatpush.bf16.msra.mxu0 %v3633
        %4132 = vmatmul.bf16.gmra.mxu0 %v3774
        %v4133 = vpop.f32.mrf.mxu0
        %v4134 = vadd.f32 0.0, %v4133
        %v4135 = vpop.f32.mrf.mxu0
        %v4136 = vadd.f32 0.0, %v4135
        %4137 = vmatmul.bf16.gmra.mxu0 %v3777
        %v4138 = vpop.f32.mrf.mxu0
        %v4139 = vadd.f32 0.0, %v4138
        %v4140 = vpop.f32.mrf.mxu0
        %v4141 = vadd.f32 0.0, %v4140
        %4142 = vmatmul.bf16.gmra.mxu0 %v3780
        %v4143 = vpop.f32.mrf.mxu0
        %v4144 = vadd.f32 0.0, %v4143
        %v4145 = vpop.f32.mrf.mxu0
        %v4146 = vadd.f32 0.0, %v4145
        %4147 = vmatmul.bf16.gmra.mxu0 %v3783
        %v4148 = vpop.f32.mrf.mxu0
        %v4149 = vadd.f32 0.0, %v4148
        %v4150 = vpop.f32.mrf.mxu0
        %v4151 = vadd.f32 0.0, %v4150
        %4152 = vmatmul.bf16.gmra.mxu0 %v3786
        %v4153 = vpop.f32.mrf.mxu0
        %v4154 = vadd.f32 0.0, %v4153
        %v4155 = vpop.f32.mrf.mxu0
        %v4156 = vadd.f32 0.0, %v4155
        %4157 = vmatmul.bf16.gmra.mxu0 %v3789
        %v4158 = vpop.f32.mrf.mxu0
        %v4159 = vadd.f32 0.0, %v4158
        %v4160 = vpop.f32.mrf.mxu0
        %v4161 = vadd.f32 0.0, %v4160
        %4162 = vmatmul.bf16.gmra.mxu0 %v3792
        %v4163 = vpop.f32.mrf.mxu0
        %v4164 = vadd.f32 0.0, %v4163
        %v4165 = vpop.f32.mrf.mxu0
        %v4166 = vadd.f32 0.0, %v4165
        %4167 = vmatmul.bf16.gmra.mxu0 %v3795
        %v4168 = vpop.f32.mrf.mxu0
        %v4169 = vadd.f32 0.0, %v4168
        %v4170 = vpop.f32.mrf.mxu0
        %v4171 = vadd.f32 0.0, %v4170
        %4172 = vmatmul.bf16.gmra.mxu0 %v3798
        %v4173 = vpop.f32.mrf.mxu0
        %v4174 = vadd.f32 0.0, %v4173
        %v4175 = vpop.f32.mrf.mxu0
        %v4176 = vadd.f32 0.0, %v4175
        %4177 = vmatmul.bf16.gmra.mxu0 %v3801
        %v4178 = vpop.f32.mrf.mxu0
        %v4179 = vadd.f32 0.0, %v4178
        %v4180 = vpop.f32.mrf.mxu0
        %v4181 = vadd.f32 0.0, %v4180
        %4182 = vmatmul.bf16.gmra.mxu0 %v3804
        %v4183 = vpop.f32.mrf.mxu0
        %v4184 = vadd.f32 0.0, %v4183
        %v4185 = vpop.f32.mrf.mxu0
        %v4186 = vadd.f32 0.0, %v4185
        %4187 = vmatmul.bf16.gmra.mxu0 %v3807
        %v4188 = vpop.f32.mrf.mxu0
        %v4189 = vadd.f32 0.0, %v4188
        %v4190 = vpop.f32.mrf.mxu0
        %v4191 = vadd.f32 0.0, %v4190
        %4192 = vmatmul.bf16.gmra.mxu0 %v3810
        %v4193 = vpop.f32.mrf.mxu0
        %v4194 = vadd.f32 0.0, %v4193
        %v4195 = vpop.f32.mrf.mxu0
        %v4196 = vadd.f32 0.0, %v4195
        %4197 = vmatmul.bf16.gmra.mxu0 %v3813
        %v4198 = vpop.f32.mrf.mxu0
        %v4199 = vadd.f32 0.0, %v4198
        %v4200 = vpop.f32.mrf.mxu0
        %v4201 = vadd.f32 0.0, %v4200
        %4202 = vmatmul.bf16.gmra.mxu0 %v3816
        %v4203 = vpop.f32.mrf.mxu0
        %v4204 = vadd.f32 0.0, %v4203
        %v4205 = vpop.f32.mrf.mxu0
        %v4206 = vadd.f32 0.0, %v4205
        %4207 = vmatmul.bf16.gmra.mxu0 %v3819
        %v4208 = vpop.f32.mrf.mxu0
        %v4209 = vadd.f32 0.0, %v4208
        %v4210 = vpop.f32.mrf.mxu0
        %v4211 = vadd.f32 0.0, %v4210
        %4212 = vmatmul.bf16.gmra.mxu0 %v3822
        %v4213 = vpop.f32.mrf.mxu0
        %v4214 = vadd.f32 0.0, %v4213
        %v4215 = vpop.f32.mrf.mxu0
        %v4216 = vadd.f32 0.0, %v4215
        %4217 = vmatmul.bf16.gmra.mxu0 %v3825
        %v4218 = vpop.f32.mrf.mxu0
        %v4219 = vadd.f32 0.0, %v4218
        %v4220 = vpop.f32.mrf.mxu0
        %v4221 = vadd.f32 0.0, %v4220
        %4222 = vdwg.mxu0
        %4223 = vrot.lane.b32.xlu0 %v3837, 17
        %v4224 = vpop.permute.xlu0 %4223
        %4225 = vrot.lane.b32.xlu0 %v3839, 17
        %v4226 = vpop.permute.xlu0 %4225
        %4227 = vrot.lane.b32.xlu0 %v3842, 17
        %v4228 = vpop.permute.xlu0 %4227
        %4229 = vrot.lane.b32.xlu0 %v3844, 17
        %v4230 = vpop.permute.xlu0 %4229
        %4231 = vrot.lane.b32.xlu0 %v3936, 17
        %v4232 = vpop.permute.xlu0 %4231
        %4233 = vrot.lane.b32.xlu0 %v3938, 17
        %v4234 = vpop.permute.xlu0 %4233
        %4235 = vrot.lane.b32.xlu0 %v3941, 17
        %v4236 = vpop.permute.xlu0 %4235
        %4237 = vrot.lane.b32.xlu0 %v3943, 17
        %v4238 = vpop.permute.xlu0 %4237
        %4239 = vrot.lane.b32.xlu0 %v4035, 17
        %v4240 = vpop.permute.xlu0 %4239
        %4241 = vrot.lane.b32.xlu0 %v4037, 17
        %v4242 = vpop.permute.xlu0 %4241
        %4243 = vrot.lane.b32.xlu0 %v4040, 17
        %v4244 = vpop.permute.xlu0 %4243
        %4245 = vrot.lane.b32.xlu0 %v4042, 17
        %v4246 = vpop.permute.xlu0 %4245
        %4247 = vrot.lane.b32.xlu0 %v4134, 17
        %v4248 = vpop.permute.xlu0 %4247
        %4249 = vrot.lane.b32.xlu0 %v4136, 17
        %v4250 = vpop.permute.xlu0 %4249
        %4251 = vrot.lane.b32.xlu0 %v4139, 17
        %v4252 = vpop.permute.xlu0 %4251
        %4253 = vrot.lane.b32.xlu0 %v4141, 17
        %v4254 = vpop.permute.xlu0 %4253
        %v4255 = vsel %vm1654, %v4240, %v4248
        %v4256 = vsel %vm1654, %v4242, %v4250
        %v4257 = vsel %vm1654, %v4244, %v4252
        %v4258 = vsel %vm1654, %v4246, %v4254
        %v4259 = vsel %vm1654, %v4232, %v4240
        %v4260 = vsel %vm1654, %v4234, %v4242
        %v4261 = vsel %vm1654, %v4236, %v4244
        %v4262 = vsel %vm1654, %v4238, %v4246
        %v4263 = vsel %vm1654, %v4224, %v4232
        %v4264 = vsel %vm1654, %v4226, %v4234
        %v4265 = vsel %vm1654, %v4228, %v4236
        %v4266 = vsel %vm1654, %v4230, %v4238
        %v4267 = vsel %vm1654, %v4248, %v4224
        %v4268 = vsel %vm1654, %v4250, %v4226
        %v4269 = vsel %vm1654, %v4252, %v4228
        %v4270 = vsel %vm1654, %v4254, %v4230
        %v4271 = vmul.f32 %v4267, %v1687
        %v4272 = vmul.f32 %v4263, %v1688
        %v4273 = vmul.f32 %v4259, %v1689
        %v4274 = vmul.f32 %v4255, %v1690
        %v4275 = vmul.f32 %v4268, %v1687
        %v4276 = vmul.f32 %v4264, %v1688
        %v4277 = vmul.f32 %v4260, %v1689
        %v4278 = vmul.f32 %v4256, %v1690
        %v4279 = vmul.f32 %v4269, %v1687
        %v4280 = vmul.f32 %v4265, %v1688
        %v4281 = vmul.f32 %v4261, %v1689
        %v4282 = vmul.f32 %v4257, %v1690
        %v4283 = vmul.f32 %v4270, %v1687
        %v4284 = vmul.f32 %v4266, %v1688
        %v4285 = vmul.f32 %v4262, %v1689
        %v4286 = vmul.f32 %v4258, %v1690
        %4287 = vrot.lane.b32.xlu0 %v3847, 16
        %v4288 = vpop.permute.xlu0 %4287
        %4289 = vrot.lane.b32.xlu0 %v3849, 16
        %v4290 = vpop.permute.xlu0 %4289
        %4291 = vrot.lane.b32.xlu0 %v3852, 16
        %v4292 = vpop.permute.xlu0 %4291
        %4293 = vrot.lane.b32.xlu0 %v3854, 16
        %v4294 = vpop.permute.xlu0 %4293
        %4295 = vrot.lane.b32.xlu0 %v3946, 16
        %v4296 = vpop.permute.xlu0 %4295
        %4297 = vrot.lane.b32.xlu0 %v3948, 16
        %v4298 = vpop.permute.xlu0 %4297
        %4299 = vrot.lane.b32.xlu0 %v3951, 16
        %v4300 = vpop.permute.xlu0 %4299
        %4301 = vrot.lane.b32.xlu0 %v3953, 16
        %v4302 = vpop.permute.xlu0 %4301
        %4303 = vrot.lane.b32.xlu0 %v4045, 16
        %v4304 = vpop.permute.xlu0 %4303
        %4305 = vrot.lane.b32.xlu0 %v4047, 16
        %v4306 = vpop.permute.xlu0 %4305
        %4307 = vrot.lane.b32.xlu0 %v4050, 16
        %v4308 = vpop.permute.xlu0 %4307
        %4309 = vrot.lane.b32.xlu0 %v4052, 16
        %v4310 = vpop.permute.xlu0 %4309
        %4311 = vrot.lane.b32.xlu0 %v4144, 16
        %v4312 = vpop.permute.xlu0 %4311
        %4313 = vrot.lane.b32.xlu0 %v4146, 16
        %v4314 = vpop.permute.xlu0 %4313
        %4315 = vrot.lane.b32.xlu0 %v4149, 16
        %v4316 = vpop.permute.xlu0 %4315
        %4317 = vrot.lane.b32.xlu0 %v4151, 16
        %v4318 = vpop.permute.xlu0 %4317
        %v4319 = vsel %vm1787, %v4304, %v4312
        %v4320 = vsel %vm1787, %v4306, %v4314
        %v4321 = vsel %vm1787, %v4308, %v4316
        %v4322 = vsel %vm1787, %v4310, %v4318
        %v4323 = vsel %vm1787, %v4296, %v4304
        %v4324 = vsel %vm1787, %v4298, %v4306
        %v4325 = vsel %vm1787, %v4300, %v4308
        %v4326 = vsel %vm1787, %v4302, %v4310
        %v4327 = vsel %vm1787, %v4288, %v4296
        %v4328 = vsel %vm1787, %v4290, %v4298
        %v4329 = vsel %vm1787, %v4292, %v4300
        %v4330 = vsel %vm1787, %v4294, %v4302
        %v4331 = vsel %vm1787, %v4312, %v4288
        %v4332 = vsel %vm1787, %v4314, %v4290
        %v4333 = vsel %vm1787, %v4316, %v4292
        %v4334 = vsel %vm1787, %v4318, %v4294
        %v4335 = vmul.f32 %v4331, %v1820
        %v4336 = vmul.f32 %v4327, %v1821
        %v4337 = vmul.f32 %v4323, %v1822
        %v4338 = vmul.f32 %v4319, %v1823
        %v4339 = vmul.f32 %v4332, %v1820
        %v4340 = vmul.f32 %v4328, %v1821
        %v4341 = vmul.f32 %v4324, %v1822
        %v4342 = vmul.f32 %v4320, %v1823
        %v4343 = vmul.f32 %v4333, %v1820
        %v4344 = vmul.f32 %v4329, %v1821
        %v4345 = vmul.f32 %v4325, %v1822
        %v4346 = vmul.f32 %v4321, %v1823
        %v4347 = vmul.f32 %v4334, %v1820
        %v4348 = vmul.f32 %v4330, %v1821
        %v4349 = vmul.f32 %v4326, %v1822
        %v4350 = vmul.f32 %v4322, %v1823
        %v4351 = vadd.f32 %v4271, %v4335
        %v4352 = vadd.f32 %v4272, %v4336
        %v4353 = vadd.f32 %v4273, %v4337
        %v4354 = vadd.f32 %v4274, %v4338
        %v4355 = vadd.f32 %v4275, %v4339
        %v4356 = vadd.f32 %v4276, %v4340
        %v4357 = vadd.f32 %v4277, %v4341
        %v4358 = vadd.f32 %v4278, %v4342
        %v4359 = vadd.f32 %v4279, %v4343
        %v4360 = vadd.f32 %v4280, %v4344
        %v4361 = vadd.f32 %v4281, %v4345
        %v4362 = vadd.f32 %v4282, %v4346
        %v4363 = vadd.f32 %v4283, %v4347
        %v4364 = vadd.f32 %v4284, %v4348
        %v4365 = vadd.f32 %v4285, %v4349
        %v4366 = vadd.f32 %v4286, %v4350
        %4367 = vrot.lane.b32.xlu0 %v3857, 15
        %v4368 = vpop.permute.xlu0 %4367
        %4369 = vrot.lane.b32.xlu0 %v3859, 15
        %v4370 = vpop.permute.xlu0 %4369
        %4371 = vrot.lane.b32.xlu0 %v3862, 15
        %v4372 = vpop.permute.xlu0 %4371
        %4373 = vrot.lane.b32.xlu0 %v3864, 15
        %v4374 = vpop.permute.xlu0 %4373
        %4375 = vrot.lane.b32.xlu0 %v3956, 15
        %v4376 = vpop.permute.xlu0 %4375
        %4377 = vrot.lane.b32.xlu0 %v3958, 15
        %v4378 = vpop.permute.xlu0 %4377
        %4379 = vrot.lane.b32.xlu0 %v3961, 15
        %v4380 = vpop.permute.xlu0 %4379
        %4381 = vrot.lane.b32.xlu0 %v3963, 15
        %v4382 = vpop.permute.xlu0 %4381
        %4383 = vrot.lane.b32.xlu0 %v4055, 15
        %v4384 = vpop.permute.xlu0 %4383
        %4385 = vrot.lane.b32.xlu0 %v4057, 15
        %v4386 = vpop.permute.xlu0 %4385
        %4387 = vrot.lane.b32.xlu0 %v4060, 15
        %v4388 = vpop.permute.xlu0 %4387
        %4389 = vrot.lane.b32.xlu0 %v4062, 15
        %v4390 = vpop.permute.xlu0 %4389
        %4391 = vrot.lane.b32.xlu0 %v4154, 15
        %v4392 = vpop.permute.xlu0 %4391
        %4393 = vrot.lane.b32.xlu0 %v4156, 15
        %v4394 = vpop.permute.xlu0 %4393
        %4395 = vrot.lane.b32.xlu0 %v4159, 15
        %v4396 = vpop.permute.xlu0 %4395
        %4397 = vrot.lane.b32.xlu0 %v4161, 15
        %v4398 = vpop.permute.xlu0 %4397
        %v4399 = vsel %vm1952, %v4384, %v4392
        %v4400 = vsel %vm1952, %v4386, %v4394
        %v4401 = vsel %vm1952, %v4388, %v4396
        %v4402 = vsel %vm1952, %v4390, %v4398
        %v4403 = vsel %vm1952, %v4376, %v4384
        %v4404 = vsel %vm1952, %v4378, %v4386
        %v4405 = vsel %vm1952, %v4380, %v4388
        %v4406 = vsel %vm1952, %v4382, %v4390
        %v4407 = vsel %vm1952, %v4368, %v4376
        %v4408 = vsel %vm1952, %v4370, %v4378
        %v4409 = vsel %vm1952, %v4372, %v4380
        %v4410 = vsel %vm1952, %v4374, %v4382
        %v4411 = vsel %vm1952, %v4392, %v4368
        %v4412 = vsel %vm1952, %v4394, %v4370
        %v4413 = vsel %vm1952, %v4396, %v4372
        %v4414 = vsel %vm1952, %v4398, %v4374
        %v4415 = vmul.f32 %v4411, %v1985
        %v4416 = vmul.f32 %v4407, %v1986
        %v4417 = vmul.f32 %v4403, %v1987
        %v4418 = vmul.f32 %v4399, %v1988
        %v4419 = vmul.f32 %v4412, %v1985
        %v4420 = vmul.f32 %v4408, %v1986
        %v4421 = vmul.f32 %v4404, %v1987
        %v4422 = vmul.f32 %v4400, %v1988
        %v4423 = vmul.f32 %v4413, %v1985
        %v4424 = vmul.f32 %v4409, %v1986
        %v4425 = vmul.f32 %v4405, %v1987
        %v4426 = vmul.f32 %v4401, %v1988
        %v4427 = vmul.f32 %v4414, %v1985
        %v4428 = vmul.f32 %v4410, %v1986
        %v4429 = vmul.f32 %v4406, %v1987
        %v4430 = vmul.f32 %v4402, %v1988
        %v4431 = vadd.f32 %v4351, %v4415
        %v4432 = vadd.f32 %v4352, %v4416
        %v4433 = vadd.f32 %v4353, %v4417
        %v4434 = vadd.f32 %v4354, %v4418
        %v4435 = vadd.f32 %v4355, %v4419
        %v4436 = vadd.f32 %v4356, %v4420
        %v4437 = vadd.f32 %v4357, %v4421
        %v4438 = vadd.f32 %v4358, %v4422
        %v4439 = vadd.f32 %v4359, %v4423
        %v4440 = vadd.f32 %v4360, %v4424
        %v4441 = vadd.f32 %v4361, %v4425
        %v4442 = vadd.f32 %v4362, %v4426
        %v4443 = vadd.f32 %v4363, %v4427
        %v4444 = vadd.f32 %v4364, %v4428
        %v4445 = vadd.f32 %v4365, %v4429
        %v4446 = vadd.f32 %v4366, %v4430
        %4447 = vrot.lane.b32.xlu0 %v3867, 1
        %v4448 = vpop.permute.xlu0 %4447
        %4449 = vrot.lane.b32.xlu0 %v3869, 1
        %v4450 = vpop.permute.xlu0 %4449
        %4451 = vrot.lane.b32.xlu0 %v3872, 1
        %v4452 = vpop.permute.xlu0 %4451
        %4453 = vrot.lane.b32.xlu0 %v3874, 1
        %v4454 = vpop.permute.xlu0 %4453
        %4455 = vrot.lane.b32.xlu0 %v3966, 1
        %v4456 = vpop.permute.xlu0 %4455
        %4457 = vrot.lane.b32.xlu0 %v3968, 1
        %v4458 = vpop.permute.xlu0 %4457
        %4459 = vrot.lane.b32.xlu0 %v3971, 1
        %v4460 = vpop.permute.xlu0 %4459
        %4461 = vrot.lane.b32.xlu0 %v3973, 1
        %v4462 = vpop.permute.xlu0 %4461
        %4463 = vrot.lane.b32.xlu0 %v4065, 1
        %v4464 = vpop.permute.xlu0 %4463
        %4465 = vrot.lane.b32.xlu0 %v4067, 1
        %v4466 = vpop.permute.xlu0 %4465
        %4467 = vrot.lane.b32.xlu0 %v4070, 1
        %v4468 = vpop.permute.xlu0 %4467
        %4469 = vrot.lane.b32.xlu0 %v4072, 1
        %v4470 = vpop.permute.xlu0 %4469
        %4471 = vrot.lane.b32.xlu0 %v4164, 1
        %v4472 = vpop.permute.xlu0 %4471
        %4473 = vrot.lane.b32.xlu0 %v4166, 1
        %v4474 = vpop.permute.xlu0 %4473
        %4475 = vrot.lane.b32.xlu0 %v4169, 1
        %v4476 = vpop.permute.xlu0 %4475
        %4477 = vrot.lane.b32.xlu0 %v4171, 1
        %v4478 = vpop.permute.xlu0 %4477
        %v4479 = vsel %vm2117, %v4464, %v4472
        %v4480 = vsel %vm2117, %v4466, %v4474
        %v4481 = vsel %vm2117, %v4468, %v4476
        %v4482 = vsel %vm2117, %v4470, %v4478
        %v4483 = vsel %vm2117, %v4456, %v4464
        %v4484 = vsel %vm2117, %v4458, %v4466
        %v4485 = vsel %vm2117, %v4460, %v4468
        %v4486 = vsel %vm2117, %v4462, %v4470
        %v4487 = vsel %vm2117, %v4448, %v4456
        %v4488 = vsel %vm2117, %v4450, %v4458
        %v4489 = vsel %vm2117, %v4452, %v4460
        %v4490 = vsel %vm2117, %v4454, %v4462
        %v4491 = vsel %vm2117, %v4472, %v4448
        %v4492 = vsel %vm2117, %v4474, %v4450
        %v4493 = vsel %vm2117, %v4476, %v4452
        %v4494 = vsel %vm2117, %v4478, %v4454
        %v4495 = vmul.f32 %v4491, %v2150
        %v4496 = vmul.f32 %v4487, %v2151
        %v4497 = vmul.f32 %v4483, %v2152
        %v4498 = vmul.f32 %v4479, %v2153
        %v4499 = vmul.f32 %v4492, %v2150
        %v4500 = vmul.f32 %v4488, %v2151
        %v4501 = vmul.f32 %v4484, %v2152
        %v4502 = vmul.f32 %v4480, %v2153
        %v4503 = vmul.f32 %v4493, %v2150
        %v4504 = vmul.f32 %v4489, %v2151
        %v4505 = vmul.f32 %v4485, %v2152
        %v4506 = vmul.f32 %v4481, %v2153
        %v4507 = vmul.f32 %v4494, %v2150
        %v4508 = vmul.f32 %v4490, %v2151
        %v4509 = vmul.f32 %v4486, %v2152
        %v4510 = vmul.f32 %v4482, %v2153
        %v4511 = vadd.f32 %v4431, %v4495
        %v4512 = vadd.f32 %v4432, %v4496
        %v4513 = vadd.f32 %v4433, %v4497
        %v4514 = vadd.f32 %v4434, %v4498
        %v4515 = vadd.f32 %v4435, %v4499
        %v4516 = vadd.f32 %v4436, %v4500
        %v4517 = vadd.f32 %v4437, %v4501
        %v4518 = vadd.f32 %v4438, %v4502
        %v4519 = vadd.f32 %v4439, %v4503
        %v4520 = vadd.f32 %v4440, %v4504
        %v4521 = vadd.f32 %v4441, %v4505
        %v4522 = vadd.f32 %v4442, %v4506
        %v4523 = vadd.f32 %v4443, %v4507
        %v4524 = vadd.f32 %v4444, %v4508
        %v4525 = vadd.f32 %v4445, %v4509
        %v4526 = vadd.f32 %v4446, %v4510
        %v4527 = vadd.f32 %v4511, %v3877
        %v4528 = vadd.f32 %v4512, %v3976
        %v4529 = vadd.f32 %v4513, %v4075
        %v4530 = vadd.f32 %v4514, %v4174
        %v4531 = vadd.f32 %v4515, %v3879
        %v4532 = vadd.f32 %v4516, %v3978
        %v4533 = vadd.f32 %v4517, %v4077
        %v4534 = vadd.f32 %v4518, %v4176
        %v4535 = vadd.f32 %v4519, %v3882
        %v4536 = vadd.f32 %v4520, %v3981
        %v4537 = vadd.f32 %v4521, %v4080
        %v4538 = vadd.f32 %v4522, %v4179
        %v4539 = vadd.f32 %v4523, %v3884
        %v4540 = vadd.f32 %v4524, %v3983
        %v4541 = vadd.f32 %v4525, %v4082
        %v4542 = vadd.f32 %v4526, %v4181
        %4543 = vrot.lane.b32.xlu0 %v3887, 127
        %v4544 = vpop.permute.xlu0 %4543
        %4545 = vrot.lane.b32.xlu0 %v3889, 127
        %v4546 = vpop.permute.xlu0 %4545
        %4547 = vrot.lane.b32.xlu0 %v3892, 127
        %v4548 = vpop.permute.xlu0 %4547
        %4549 = vrot.lane.b32.xlu0 %v3894, 127
        %v4550 = vpop.permute.xlu0 %4549
        %4551 = vrot.lane.b32.xlu0 %v3986, 127
        %v4552 = vpop.permute.xlu0 %4551
        %4553 = vrot.lane.b32.xlu0 %v3988, 127
        %v4554 = vpop.permute.xlu0 %4553
        %4555 = vrot.lane.b32.xlu0 %v3991, 127
        %v4556 = vpop.permute.xlu0 %4555
        %4557 = vrot.lane.b32.xlu0 %v3993, 127
        %v4558 = vpop.permute.xlu0 %4557
        %4559 = vrot.lane.b32.xlu0 %v4085, 127
        %v4560 = vpop.permute.xlu0 %4559
        %4561 = vrot.lane.b32.xlu0 %v4087, 127
        %v4562 = vpop.permute.xlu0 %4561
        %4563 = vrot.lane.b32.xlu0 %v4090, 127
        %v4564 = vpop.permute.xlu0 %4563
        %4565 = vrot.lane.b32.xlu0 %v4092, 127
        %v4566 = vpop.permute.xlu0 %4565
        %4567 = vrot.lane.b32.xlu0 %v4184, 127
        %v4568 = vpop.permute.xlu0 %4567
        %4569 = vrot.lane.b32.xlu0 %v4186, 127
        %v4570 = vpop.permute.xlu0 %4569
        %4571 = vrot.lane.b32.xlu0 %v4189, 127
        %v4572 = vpop.permute.xlu0 %4571
        %4573 = vrot.lane.b32.xlu0 %v4191, 127
        %v4574 = vpop.permute.xlu0 %4573
        %v4575 = vsel %vm2314, %v4560, %v4568
        %v4576 = vsel %vm2314, %v4562, %v4570
        %v4577 = vsel %vm2314, %v4564, %v4572
        %v4578 = vsel %vm2314, %v4566, %v4574
        %v4579 = vsel %vm2314, %v4552, %v4560
        %v4580 = vsel %vm2314, %v4554, %v4562
        %v4581 = vsel %vm2314, %v4556, %v4564
        %v4582 = vsel %vm2314, %v4558, %v4566
        %v4583 = vsel %vm2314, %v4544, %v4552
        %v4584 = vsel %vm2314, %v4546, %v4554
        %v4585 = vsel %vm2314, %v4548, %v4556
        %v4586 = vsel %vm2314, %v4550, %v4558
        %v4587 = vsel %vm2314, %v4568, %v4544
        %v4588 = vsel %vm2314, %v4570, %v4546
        %v4589 = vsel %vm2314, %v4572, %v4548
        %v4590 = vsel %vm2314, %v4574, %v4550
        %v4591 = vmul.f32 %v4583, %v2347
        %v4592 = vmul.f32 %v4579, %v2348
        %v4593 = vmul.f32 %v4575, %v2349
        %v4594 = vmul.f32 %v4587, %v2350
        %v4595 = vmul.f32 %v4584, %v2347
        %v4596 = vmul.f32 %v4580, %v2348
        %v4597 = vmul.f32 %v4576, %v2349
        %v4598 = vmul.f32 %v4588, %v2350
        %v4599 = vmul.f32 %v4585, %v2347
        %v4600 = vmul.f32 %v4581, %v2348
        %v4601 = vmul.f32 %v4577, %v2349
        %v4602 = vmul.f32 %v4589, %v2350
        %v4603 = vmul.f32 %v4586, %v2347
        %v4604 = vmul.f32 %v4582, %v2348
        %v4605 = vmul.f32 %v4578, %v2349
        %v4606 = vmul.f32 %v4590, %v2350
        %v4607 = vadd.f32 %v4527, %v4591
        %v4608 = vadd.f32 %v4528, %v4592
        %v4609 = vadd.f32 %v4529, %v4593
        %v4610 = vadd.f32 %v4530, %v4594
        %v4611 = vadd.f32 %v4531, %v4595
        %v4612 = vadd.f32 %v4532, %v4596
        %v4613 = vadd.f32 %v4533, %v4597
        %v4614 = vadd.f32 %v4534, %v4598
        %v4615 = vadd.f32 %v4535, %v4599
        %v4616 = vadd.f32 %v4536, %v4600
        %v4617 = vadd.f32 %v4537, %v4601
        %v4618 = vadd.f32 %v4538, %v4602
        %v4619 = vadd.f32 %v4539, %v4603
        %v4620 = vadd.f32 %v4540, %v4604
        %v4621 = vadd.f32 %v4541, %v4605
        %v4622 = vadd.f32 %v4542, %v4606
        %4623 = vrot.lane.b32.xlu0 %v3897, 113
        %v4624 = vpop.permute.xlu0 %4623
        %4625 = vrot.lane.b32.xlu0 %v3899, 113
        %v4626 = vpop.permute.xlu0 %4625
        %4627 = vrot.lane.b32.xlu0 %v3902, 113
        %v4628 = vpop.permute.xlu0 %4627
        %4629 = vrot.lane.b32.xlu0 %v3904, 113
        %v4630 = vpop.permute.xlu0 %4629
        %4631 = vrot.lane.b32.xlu0 %v3996, 113
        %v4632 = vpop.permute.xlu0 %4631
        %4633 = vrot.lane.b32.xlu0 %v3998, 113
        %v4634 = vpop.permute.xlu0 %4633
        %4635 = vrot.lane.b32.xlu0 %v4001, 113
        %v4636 = vpop.permute.xlu0 %4635
        %4637 = vrot.lane.b32.xlu0 %v4003, 113
        %v4638 = vpop.permute.xlu0 %4637
        %4639 = vrot.lane.b32.xlu0 %v4095, 113
        %v4640 = vpop.permute.xlu0 %4639
        %4641 = vrot.lane.b32.xlu0 %v4097, 113
        %v4642 = vpop.permute.xlu0 %4641
        %4643 = vrot.lane.b32.xlu0 %v4100, 113
        %v4644 = vpop.permute.xlu0 %4643
        %4645 = vrot.lane.b32.xlu0 %v4102, 113
        %v4646 = vpop.permute.xlu0 %4645
        %4647 = vrot.lane.b32.xlu0 %v4194, 113
        %v4648 = vpop.permute.xlu0 %4647
        %4649 = vrot.lane.b32.xlu0 %v4196, 113
        %v4650 = vpop.permute.xlu0 %4649
        %4651 = vrot.lane.b32.xlu0 %v4199, 113
        %v4652 = vpop.permute.xlu0 %4651
        %4653 = vrot.lane.b32.xlu0 %v4201, 113
        %v4654 = vpop.permute.xlu0 %4653
        %v4655 = vsel %vm2479, %v4640, %v4648
        %v4656 = vsel %vm2479, %v4642, %v4650
        %v4657 = vsel %vm2479, %v4644, %v4652
        %v4658 = vsel %vm2479, %v4646, %v4654
        %v4659 = vsel %vm2479, %v4632, %v4640
        %v4660 = vsel %vm2479, %v4634, %v4642
        %v4661 = vsel %vm2479, %v4636, %v4644
        %v4662 = vsel %vm2479, %v4638, %v4646
        %v4663 = vsel %vm2479, %v4624, %v4632
        %v4664 = vsel %vm2479, %v4626, %v4634
        %v4665 = vsel %vm2479, %v4628, %v4636
        %v4666 = vsel %vm2479, %v4630, %v4638
        %v4667 = vsel %vm2479, %v4648, %v4624
        %v4668 = vsel %vm2479, %v4650, %v4626
        %v4669 = vsel %vm2479, %v4652, %v4628
        %v4670 = vsel %vm2479, %v4654, %v4630
        %v4671 = vmul.f32 %v4663, %v2512
        %v4672 = vmul.f32 %v4659, %v2513
        %v4673 = vmul.f32 %v4655, %v2514
        %v4674 = vmul.f32 %v4667, %v2515
        %v4675 = vmul.f32 %v4664, %v2512
        %v4676 = vmul.f32 %v4660, %v2513
        %v4677 = vmul.f32 %v4656, %v2514
        %v4678 = vmul.f32 %v4668, %v2515
        %v4679 = vmul.f32 %v4665, %v2512
        %v4680 = vmul.f32 %v4661, %v2513
        %v4681 = vmul.f32 %v4657, %v2514
        %v4682 = vmul.f32 %v4669, %v2515
        %v4683 = vmul.f32 %v4666, %v2512
        %v4684 = vmul.f32 %v4662, %v2513
        %v4685 = vmul.f32 %v4658, %v2514
        %v4686 = vmul.f32 %v4670, %v2515
        %v4687 = vadd.f32 %v4607, %v4671
        %v4688 = vadd.f32 %v4608, %v4672
        %v4689 = vadd.f32 %v4609, %v4673
        %v4690 = vadd.f32 %v4610, %v4674
        %v4691 = vadd.f32 %v4611, %v4675
        %v4692 = vadd.f32 %v4612, %v4676
        %v4693 = vadd.f32 %v4613, %v4677
        %v4694 = vadd.f32 %v4614, %v4678
        %v4695 = vadd.f32 %v4615, %v4679
        %v4696 = vadd.f32 %v4616, %v4680
        %v4697 = vadd.f32 %v4617, %v4681
        %v4698 = vadd.f32 %v4618, %v4682
        %v4699 = vadd.f32 %v4619, %v4683
        %v4700 = vadd.f32 %v4620, %v4684
        %v4701 = vadd.f32 %v4621, %v4685
        %v4702 = vadd.f32 %v4622, %v4686
        %4703 = vrot.lane.b32.xlu0 %v3907, 112
        %v4704 = vpop.permute.xlu0 %4703
        %4705 = vrot.lane.b32.xlu0 %v3909, 112
        %v4706 = vpop.permute.xlu0 %4705
        %4707 = vrot.lane.b32.xlu0 %v3912, 112
        %v4708 = vpop.permute.xlu0 %4707
        %4709 = vrot.lane.b32.xlu0 %v3914, 112
        %v4710 = vpop.permute.xlu0 %4709
        %4711 = vrot.lane.b32.xlu0 %v4006, 112
        %v4712 = vpop.permute.xlu0 %4711
        %4713 = vrot.lane.b32.xlu0 %v4008, 112
        %v4714 = vpop.permute.xlu0 %4713
        %4715 = vrot.lane.b32.xlu0 %v4011, 112
        %v4716 = vpop.permute.xlu0 %4715
        %4717 = vrot.lane.b32.xlu0 %v4013, 112
        %v4718 = vpop.permute.xlu0 %4717
        %4719 = vrot.lane.b32.xlu0 %v4105, 112
        %v4720 = vpop.permute.xlu0 %4719
        %4721 = vrot.lane.b32.xlu0 %v4107, 112
        %v4722 = vpop.permute.xlu0 %4721
        %4723 = vrot.lane.b32.xlu0 %v4110, 112
        %v4724 = vpop.permute.xlu0 %4723
        %4725 = vrot.lane.b32.xlu0 %v4112, 112
        %v4726 = vpop.permute.xlu0 %4725
        %4727 = vrot.lane.b32.xlu0 %v4204, 112
        %v4728 = vpop.permute.xlu0 %4727
        %4729 = vrot.lane.b32.xlu0 %v4206, 112
        %v4730 = vpop.permute.xlu0 %4729
        %4731 = vrot.lane.b32.xlu0 %v4209, 112
        %v4732 = vpop.permute.xlu0 %4731
        %4733 = vrot.lane.b32.xlu0 %v4211, 112
        %v4734 = vpop.permute.xlu0 %4733
        %v4735 = vsel %vm2644, %v4720, %v4728
        %v4736 = vsel %vm2644, %v4722, %v4730
        %v4737 = vsel %vm2644, %v4724, %v4732
        %v4738 = vsel %vm2644, %v4726, %v4734
        %v4739 = vsel %vm2644, %v4712, %v4720
        %v4740 = vsel %vm2644, %v4714, %v4722
        %v4741 = vsel %vm2644, %v4716, %v4724
        %v4742 = vsel %vm2644, %v4718, %v4726
        %v4743 = vsel %vm2644, %v4704, %v4712
        %v4744 = vsel %vm2644, %v4706, %v4714
        %v4745 = vsel %vm2644, %v4708, %v4716
        %v4746 = vsel %vm2644, %v4710, %v4718
        %v4747 = vsel %vm2644, %v4728, %v4704
        %v4748 = vsel %vm2644, %v4730, %v4706
        %v4749 = vsel %vm2644, %v4732, %v4708
        %v4750 = vsel %vm2644, %v4734, %v4710
        %v4751 = vmul.f32 %v4743, %v2677
        %v4752 = vmul.f32 %v4739, %v2678
        %v4753 = vmul.f32 %v4735, %v2679
        %v4754 = vmul.f32 %v4747, %v2680
        %v4755 = vmul.f32 %v4744, %v2677
        %v4756 = vmul.f32 %v4740, %v2678
        %v4757 = vmul.f32 %v4736, %v2679
        %v4758 = vmul.f32 %v4748, %v2680
        %v4759 = vmul.f32 %v4745, %v2677
        %v4760 = vmul.f32 %v4741, %v2678
        %v4761 = vmul.f32 %v4737, %v2679
        %v4762 = vmul.f32 %v4749, %v2680
        %v4763 = vmul.f32 %v4746, %v2677
        %v4764 = vmul.f32 %v4742, %v2678
        %v4765 = vmul.f32 %v4738, %v2679
        %v4766 = vmul.f32 %v4750, %v2680
        %v4767 = vadd.f32 %v4687, %v4751
        %v4768 = vadd.f32 %v4688, %v4752
        %v4769 = vadd.f32 %v4689, %v4753
        %v4770 = vadd.f32 %v4690, %v4754
        %v4771 = vadd.f32 %v4691, %v4755
        %v4772 = vadd.f32 %v4692, %v4756
        %v4773 = vadd.f32 %v4693, %v4757
        %v4774 = vadd.f32 %v4694, %v4758
        %v4775 = vadd.f32 %v4695, %v4759
        %v4776 = vadd.f32 %v4696, %v4760
        %v4777 = vadd.f32 %v4697, %v4761
        %v4778 = vadd.f32 %v4698, %v4762
        %v4779 = vadd.f32 %v4699, %v4763
        %v4780 = vadd.f32 %v4700, %v4764
        %v4781 = vadd.f32 %v4701, %v4765
        %v4782 = vadd.f32 %v4702, %v4766
        %4783 = vrot.lane.b32.xlu0 %v3917, 111
        %v4784 = vpop.permute.xlu0 %4783
        %4785 = vrot.lane.b32.xlu0 %v3919, 111
        %v4786 = vpop.permute.xlu0 %4785
        %4787 = vrot.lane.b32.xlu0 %v3922, 111
        %v4788 = vpop.permute.xlu0 %4787
        %4789 = vrot.lane.b32.xlu0 %v3924, 111
        %v4790 = vpop.permute.xlu0 %4789
        %4791 = vrot.lane.b32.xlu0 %v4016, 111
        %v4792 = vpop.permute.xlu0 %4791
        %4793 = vrot.lane.b32.xlu0 %v4018, 111
        %v4794 = vpop.permute.xlu0 %4793
        %4795 = vrot.lane.b32.xlu0 %v4021, 111
        %v4796 = vpop.permute.xlu0 %4795
        %4797 = vrot.lane.b32.xlu0 %v4023, 111
        %v4798 = vpop.permute.xlu0 %4797
        %4799 = vrot.lane.b32.xlu0 %v4115, 111
        %v4800 = vpop.permute.xlu0 %4799
        %4801 = vrot.lane.b32.xlu0 %v4117, 111
        %v4802 = vpop.permute.xlu0 %4801
        %4803 = vrot.lane.b32.xlu0 %v4120, 111
        %v4804 = vpop.permute.xlu0 %4803
        %4805 = vrot.lane.b32.xlu0 %v4122, 111
        %v4806 = vpop.permute.xlu0 %4805
        %4807 = vrot.lane.b32.xlu0 %v4214, 111
        %v4808 = vpop.permute.xlu0 %4807
        %4809 = vrot.lane.b32.xlu0 %v4216, 111
        %v4810 = vpop.permute.xlu0 %4809
        %4811 = vrot.lane.b32.xlu0 %v4219, 111
        %v4812 = vpop.permute.xlu0 %4811
        %4813 = vrot.lane.b32.xlu0 %v4221, 111
        %v4814 = vpop.permute.xlu0 %4813
        %v4815 = vsel %vm2809, %v4800, %v4808
        %v4816 = vsel %vm2809, %v4802, %v4810
        %v4817 = vsel %vm2809, %v4804, %v4812
        %v4818 = vsel %vm2809, %v4806, %v4814
        %v4819 = vsel %vm2809, %v4792, %v4800
        %v4820 = vsel %vm2809, %v4794, %v4802
        %v4821 = vsel %vm2809, %v4796, %v4804
        %v4822 = vsel %vm2809, %v4798, %v4806
        %v4823 = vsel %vm2809, %v4784, %v4792
        %v4824 = vsel %vm2809, %v4786, %v4794
        %v4825 = vsel %vm2809, %v4788, %v4796
        %v4826 = vsel %vm2809, %v4790, %v4798
        %v4827 = vsel %vm2809, %v4808, %v4784
        %v4828 = vsel %vm2809, %v4810, %v4786
        %v4829 = vsel %vm2809, %v4812, %v4788
        %v4830 = vsel %vm2809, %v4814, %v4790
        %v4831 = vmul.f32 %v4823, %v2842
        %v4832 = vmul.f32 %v4819, %v2843
        %v4833 = vmul.f32 %v4815, %v2844
        %v4834 = vmul.f32 %v4827, %v2845
        %v4835 = vmul.f32 %v4824, %v2842
        %v4836 = vmul.f32 %v4820, %v2843
        %v4837 = vmul.f32 %v4816, %v2844
        %v4838 = vmul.f32 %v4828, %v2845
        %v4839 = vmul.f32 %v4825, %v2842
        %v4840 = vmul.f32 %v4821, %v2843
        %v4841 = vmul.f32 %v4817, %v2844
        %v4842 = vmul.f32 %v4829, %v2845
        %v4843 = vmul.f32 %v4826, %v2842
        %v4844 = vmul.f32 %v4822, %v2843
        %v4845 = vmul.f32 %v4818, %v2844
        %v4846 = vmul.f32 %v4830, %v2845
        %v4847 = vadd.f32 %v4767, %v4831
        %v4848 = vadd.f32 %v4768, %v4832
        %v4849 = vadd.f32 %v4769, %v4833
        %v4850 = vadd.f32 %v4770, %v4834
        %v4851 = vadd.f32 %v4771, %v4835
        %v4852 = vadd.f32 %v4772, %v4836
        %v4853 = vadd.f32 %v4773, %v4837
        %v4854 = vadd.f32 %v4774, %v4838
        %v4855 = vadd.f32 %v4775, %v4839
        %v4856 = vadd.f32 %v4776, %v4840
        %v4857 = vadd.f32 %v4777, %v4841
        %v4858 = vadd.f32 %v4778, %v4842
        %v4859 = vadd.f32 %v4779, %v4843
        %v4860 = vadd.f32 %v4780, %v4844
        %v4861 = vadd.f32 %v4781, %v4845
        %v4862 = vadd.f32 %v4782, %v4846
        %v4863 = vld [vmem:[%s5] sm:$0xff]
        %v4864 = vld [vmem:[%s5 + $0x8] sm:$0xff]
        %v4865 = vld [vmem:[%s5 + $0x10] sm:$0xff]
        %v4866 = vld [vmem:[%s5 + $0x18] sm:$0xff]
        %4868 = vset.pattern.permute.xlu0 0
        %4869 = vperm.xlu0 %4868, %v4863
        %v4870 = vpop.permute.xlu0 %4869
        %4873 = vset.pattern.permute.xlu0 0
        %4874 = vperm.xlu0 %4873, %v4864
        %v4875 = vpop.permute.xlu0 %4874
        %4878 = vset.pattern.permute.xlu0 0
        %4879 = vperm.xlu0 %4878, %v4865
        %v4880 = vpop.permute.xlu0 %4879
        %4883 = vset.pattern.permute.xlu0 0
        %4884 = vperm.xlu0 %4883, %v4866
        %v4885 = vpop.permute.xlu0 %4884
        %v4887 = vadd.f32 %v4847, %v4870
        %v4888 = vadd.f32 %v4848, %v4870
        %v4889 = vadd.f32 %v4849, %v4870
        %v4890 = vadd.f32 %v4850, %v4870
        %v4891 = vadd.f32 %v4851, %v4875
        %v4892 = vadd.f32 %v4852, %v4875
        %v4893 = vadd.f32 %v4853, %v4875
        %v4894 = vadd.f32 %v4854, %v4875
        %v4895 = vadd.f32 %v4855, %v4880
        %v4896 = vadd.f32 %v4856, %v4880
        %v4897 = vadd.f32 %v4857, %v4880
        %v4898 = vadd.f32 %v4858, %v4880
        %v4899 = vadd.f32 %v4859, %v4885
        %v4900 = vadd.f32 %v4860, %v4885
        %v4901 = vadd.f32 %v4861, %v4885
        %v4902 = vadd.f32 %v4862, %v4885
        %v4903 = vxor.u32 %v4887, 2147483648
        %v4904 = vxor.u32 %v4888, 2147483648
        %v4905 = vxor.u32 %v4889, 2147483648
        %v4906 = vxor.u32 %v4890, 2147483648
        %v4907 = vxor.u32 %v4891, 2147483648
        %v4908 = vxor.u32 %v4892, 2147483648
        %v4909 = vxor.u32 %v4893, 2147483648
        %v4910 = vxor.u32 %v4894, 2147483648
        %v4911 = vxor.u32 %v4895, 2147483648
        %v4912 = vxor.u32 %v4896, 2147483648
        %v4913 = vxor.u32 %v4897, 2147483648
        %v4914 = vxor.u32 %v4898, 2147483648
        %v4915 = vxor.u32 %v4899, 2147483648
        %v4916 = vxor.u32 %v4900, 2147483648
        %v4917 = vxor.u32 %v4901, 2147483648
        %v4918 = vxor.u32 %v4902, 2147483648
        %v4919 = vmul.f32 %v4903, 1.442695
        %v4920 = vpow.pop %v4919
        %v4921 = vmul.f32 %v4904, 1.442695
        %v4922 = vpow.pop %v4921
        %v4923 = vmul.f32 %v4905, 1.442695
        %v4924 = vpow.pop %v4923
        %v4925 = vmul.f32 %v4906, 1.442695
        %v4926 = vpow.pop %v4925
        %v4927 = vmul.f32 %v4907, 1.442695
        %v4928 = vpow.pop %v4927
        %v4929 = vmul.f32 %v4908, 1.442695
        %v4930 = vpow.pop %v4929
        %v4931 = vmul.f32 %v4909, 1.442695
        %v4932 = vpow.pop %v4931
        %v4933 = vmul.f32 %v4910, 1.442695
        %v4934 = vpow.pop %v4933
        %v4935 = vmul.f32 %v4911, 1.442695
        %v4936 = vpow.pop %v4935
        %v4937 = vmul.f32 %v4912, 1.442695
        %v4938 = vpow.pop %v4937
        %v4939 = vmul.f32 %v4913, 1.442695
        %v4940 = vpow.pop %v4939
        %v4941 = vmul.f32 %v4914, 1.442695
        %v4942 = vpow.pop %v4941
        %v4943 = vmul.f32 %v4915, 1.442695
        %v4944 = vpow.pop %v4943
        %v4945 = vmul.f32 %v4916, 1.442695
        %v4946 = vpow.pop %v4945
        %v4947 = vmul.f32 %v4917, 1.442695
        %v4948 = vpow.pop %v4947
        %v4949 = vmul.f32 %v4918, 1.442695
        %v4950 = vpow.pop %v4949
        %v4951 = vadd.f32 %v4920, 1.0
        %v4952 = vadd.f32 %v4922, 1.0
        %v4953 = vadd.f32 %v4924, 1.0
        %v4954 = vadd.f32 %v4926, 1.0
        %v4955 = vadd.f32 %v4928, 1.0
        %v4956 = vadd.f32 %v4930, 1.0
        %v4957 = vadd.f32 %v4932, 1.0
        %v4958 = vadd.f32 %v4934, 1.0
        %v4959 = vadd.f32 %v4936, 1.0
        %v4960 = vadd.f32 %v4938, 1.0
        %v4961 = vadd.f32 %v4940, 1.0
        %v4962 = vadd.f32 %v4942, 1.0
        %v4963 = vadd.f32 %v4944, 1.0
        %v4964 = vadd.f32 %v4946, 1.0
        %v4965 = vadd.f32 %v4948, 1.0
        %v4966 = vadd.f32 %v4950, 1.0
        %v4967 = vrcp.pop %v4951
        %v4968 = vmul.f32 %v4951, %v4967
        %v4969 = vsub.f32 1.0, %v4968
        %v4970 = vmul.f32 %v4967, %v4969
        %v4971 = vadd.f32 %v4967, %v4970
        %vm4972 = vweird.f32 %v4951
        %vm4973 = vweird.f32 %v4967
        %vm4974 = vmor %vm4972, %vm4973
        %v4975 = vsel %vm4974, %v4967, %v4971
        %v4976 = vand.u32 2147483647, %v4951
        %vm4977 = vcmp.eq.f32.partialorder %v4976, 8.507059e+37
        %v4978 = vand.u32 %v4951, 2147483648
        %v4979 = vor.u32 1.1754944e-38, %v4978
        %v4980 = vsel %vm4977, %v4979, %v4975
        %v4981 = vmul.f32 1.0, %v4980
        %v4982 = vrcp.pop %v4952
        %v4983 = vmul.f32 %v4952, %v4982
        %v4984 = vsub.f32 1.0, %v4983
        %v4985 = vmul.f32 %v4982, %v4984
        %v4986 = vadd.f32 %v4982, %v4985
        %vm4987 = vweird.f32 %v4952
        %vm4988 = vweird.f32 %v4982
        %vm4989 = vmor %vm4987, %vm4988
        %v4990 = vsel %vm4989, %v4982, %v4986
        %v4991 = vand.u32 2147483647, %v4952
        %vm4992 = vcmp.eq.f32.partialorder %v4991, 8.507059e+37
        %v4993 = vand.u32 %v4952, 2147483648
        %v4994 = vor.u32 1.1754944e-38, %v4993
        %v4995 = vsel %vm4992, %v4994, %v4990
        %v4996 = vmul.f32 1.0, %v4995
        %v4997 = vrcp.pop %v4953
        %v4998 = vmul.f32 %v4953, %v4997
        %v4999 = vsub.f32 1.0, %v4998
        %v5000 = vmul.f32 %v4997, %v4999
        %v5001 = vadd.f32 %v4997, %v5000
        %vm5002 = vweird.f32 %v4953
        %vm5003 = vweird.f32 %v4997
        %vm5004 = vmor %vm5002, %vm5003
        %v5005 = vsel %vm5004, %v4997, %v5001
        %v5006 = vand.u32 2147483647, %v4953
        %vm5007 = vcmp.eq.f32.partialorder %v5006, 8.507059e+37
        %v5008 = vand.u32 %v4953, 2147483648
        %v5009 = vor.u32 1.1754944e-38, %v5008
        %v5010 = vsel %vm5007, %v5009, %v5005
        %v5011 = vmul.f32 1.0, %v5010
        %v5012 = vrcp.pop %v4954
        %v5013 = vmul.f32 %v4954, %v5012
        %v5014 = vsub.f32 1.0, %v5013
        %v5015 = vmul.f32 %v5012, %v5014
        %v5016 = vadd.f32 %v5012, %v5015
        %vm5017 = vweird.f32 %v4954
        %vm5018 = vweird.f32 %v5012
        %vm5019 = vmor %vm5017, %vm5018
        %v5020 = vsel %vm5019, %v5012, %v5016
        %v5021 = vand.u32 2147483647, %v4954
        %vm5022 = vcmp.eq.f32.partialorder %v5021, 8.507059e+37
        %v5023 = vand.u32 %v4954, 2147483648
        %v5024 = vor.u32 1.1754944e-38, %v5023
        %v5025 = vsel %vm5022, %v5024, %v5020
        %v5026 = vmul.f32 1.0, %v5025
        %v5027 = vrcp.pop %v4955
        %v5028 = vmul.f32 %v4955, %v5027
        %v5029 = vsub.f32 1.0, %v5028
        %v5030 = vmul.f32 %v5027, %v5029
        %v5031 = vadd.f32 %v5027, %v5030
        %vm5032 = vweird.f32 %v4955
        %vm5033 = vweird.f32 %v5027
        %vm5034 = vmor %vm5032, %vm5033
        %v5035 = vsel %vm5034, %v5027, %v5031
        %v5036 = vand.u32 2147483647, %v4955
        %vm5037 = vcmp.eq.f32.partialorder %v5036, 8.507059e+37
        %v5038 = vand.u32 %v4955, 2147483648
        %v5039 = vor.u32 1.1754944e-38, %v5038
        %v5040 = vsel %vm5037, %v5039, %v5035
        %v5041 = vmul.f32 1.0, %v5040
        %v5042 = vrcp.pop %v4956
        %v5043 = vmul.f32 %v4956, %v5042
        %v5044 = vsub.f32 1.0, %v5043
        %v5045 = vmul.f32 %v5042, %v5044
        %v5046 = vadd.f32 %v5042, %v5045
        %vm5047 = vweird.f32 %v4956
        %vm5048 = vweird.f32 %v5042
        %vm5049 = vmor %vm5047, %vm5048
        %v5050 = vsel %vm5049, %v5042, %v5046
        %v5051 = vand.u32 2147483647, %v4956
        %vm5052 = vcmp.eq.f32.partialorder %v5051, 8.507059e+37
        %v5053 = vand.u32 %v4956, 2147483648
        %v5054 = vor.u32 1.1754944e-38, %v5053
        %v5055 = vsel %vm5052, %v5054, %v5050
        %v5056 = vmul.f32 1.0, %v5055
        %v5057 = vrcp.pop %v4957
        %v5058 = vmul.f32 %v4957, %v5057
        %v5059 = vsub.f32 1.0, %v5058
        %v5060 = vmul.f32 %v5057, %v5059
        %v5061 = vadd.f32 %v5057, %v5060
        %vm5062 = vweird.f32 %v4957
        %vm5063 = vweird.f32 %v5057
        %vm5064 = vmor %vm5062, %vm5063
        %v5065 = vsel %vm5064, %v5057, %v5061
        %v5066 = vand.u32 2147483647, %v4957
        %vm5067 = vcmp.eq.f32.partialorder %v5066, 8.507059e+37
        %v5068 = vand.u32 %v4957, 2147483648
        %v5069 = vor.u32 1.1754944e-38, %v5068
        %v5070 = vsel %vm5067, %v5069, %v5065
        %v5071 = vmul.f32 1.0, %v5070
        %v5072 = vrcp.pop %v4958
        %v5073 = vmul.f32 %v4958, %v5072
        %v5074 = vsub.f32 1.0, %v5073
        %v5075 = vmul.f32 %v5072, %v5074
        %v5076 = vadd.f32 %v5072, %v5075
        %vm5077 = vweird.f32 %v4958
        %vm5078 = vweird.f32 %v5072
        %vm5079 = vmor %vm5077, %vm5078
        %v5080 = vsel %vm5079, %v5072, %v5076
        %v5081 = vand.u32 2147483647, %v4958
        %vm5082 = vcmp.eq.f32.partialorder %v5081, 8.507059e+37
        %v5083 = vand.u32 %v4958, 2147483648
        %v5084 = vor.u32 1.1754944e-38, %v5083
        %v5085 = vsel %vm5082, %v5084, %v5080
        %v5086 = vmul.f32 1.0, %v5085
        %v5087 = vrcp.pop %v4959
        %v5088 = vmul.f32 %v4959, %v5087
        %v5089 = vsub.f32 1.0, %v5088
        %v5090 = vmul.f32 %v5087, %v5089
        %v5091 = vadd.f32 %v5087, %v5090
        %vm5092 = vweird.f32 %v4959
        %vm5093 = vweird.f32 %v5087
        %vm5094 = vmor %vm5092, %vm5093
        %v5095 = vsel %vm5094, %v5087, %v5091
        %v5096 = vand.u32 2147483647, %v4959
        %vm5097 = vcmp.eq.f32.partialorder %v5096, 8.507059e+37
        %v5098 = vand.u32 %v4959, 2147483648
        %v5099 = vor.u32 1.1754944e-38, %v5098
        %v5100 = vsel %vm5097, %v5099, %v5095
        %v5101 = vmul.f32 1.0, %v5100
        %v5102 = vrcp.pop %v4960
        %v5103 = vmul.f32 %v4960, %v5102
        %v5104 = vsub.f32 1.0, %v5103
        %v5105 = vmul.f32 %v5102, %v5104
        %v5106 = vadd.f32 %v5102, %v5105
        %vm5107 = vweird.f32 %v4960
        %vm5108 = vweird.f32 %v5102
        %vm5109 = vmor %vm5107, %vm5108
        %v5110 = vsel %vm5109, %v5102, %v5106
        %v5111 = vand.u32 2147483647, %v4960
        %vm5112 = vcmp.eq.f32.partialorder %v5111, 8.507059e+37
        %v5113 = vand.u32 %v4960, 2147483648
        %v5114 = vor.u32 1.1754944e-38, %v5113
        %v5115 = vsel %vm5112, %v5114, %v5110
        %v5116 = vmul.f32 1.0, %v5115
        %v5117 = vrcp.pop %v4961
        %v5118 = vmul.f32 %v4961, %v5117
        %v5119 = vsub.f32 1.0, %v5118
        %v5120 = vmul.f32 %v5117, %v5119
        %v5121 = vadd.f32 %v5117, %v5120
        %vm5122 = vweird.f32 %v4961
        %vm5123 = vweird.f32 %v5117
        %vm5124 = vmor %vm5122, %vm5123
        %v5125 = vsel %vm5124, %v5117, %v5121
        %v5126 = vand.u32 2147483647, %v4961
        %vm5127 = vcmp.eq.f32.partialorder %v5126, 8.507059e+37
        %v5128 = vand.u32 %v4961, 2147483648
        %v5129 = vor.u32 1.1754944e-38, %v5128
        %v5130 = vsel %vm5127, %v5129, %v5125
        %v5131 = vmul.f32 1.0, %v5130
        %v5132 = vrcp.pop %v4962
        %v5133 = vmul.f32 %v4962, %v5132
        %v5134 = vsub.f32 1.0, %v5133
        %v5135 = vmul.f32 %v5132, %v5134
        %v5136 = vadd.f32 %v5132, %v5135
        %vm5137 = vweird.f32 %v4962
        %vm5138 = vweird.f32 %v5132
        %vm5139 = vmor %vm5137, %vm5138
        %v5140 = vsel %vm5139, %v5132, %v5136
        %v5141 = vand.u32 2147483647, %v4962
        %vm5142 = vcmp.eq.f32.partialorder %v5141, 8.507059e+37
        %v5143 = vand.u32 %v4962, 2147483648
        %v5144 = vor.u32 1.1754944e-38, %v5143
        %v5145 = vsel %vm5142, %v5144, %v5140
        %v5146 = vmul.f32 1.0, %v5145
        %v5147 = vrcp.pop %v4963
        %v5148 = vmul.f32 %v4963, %v5147
        %v5149 = vsub.f32 1.0, %v5148
        %v5150 = vmul.f32 %v5147, %v5149
        %v5151 = vadd.f32 %v5147, %v5150
        %vm5152 = vweird.f32 %v4963
        %vm5153 = vweird.f32 %v5147
        %vm5154 = vmor %vm5152, %vm5153
        %v5155 = vsel %vm5154, %v5147, %v5151
        %v5156 = vand.u32 2147483647, %v4963
        %vm5157 = vcmp.eq.f32.partialorder %v5156, 8.507059e+37
        %v5158 = vand.u32 %v4963, 2147483648
        %v5159 = vor.u32 1.1754944e-38, %v5158
        %v5160 = vsel %vm5157, %v5159, %v5155
        %v5161 = vmul.f32 1.0, %v5160
        %v5162 = vrcp.pop %v4964
        %v5163 = vmul.f32 %v4964, %v5162
        %v5164 = vsub.f32 1.0, %v5163
        %v5165 = vmul.f32 %v5162, %v5164
        %v5166 = vadd.f32 %v5162, %v5165
        %vm5167 = vweird.f32 %v4964
        %vm5168 = vweird.f32 %v5162
        %vm5169 = vmor %vm5167, %vm5168
        %v5170 = vsel %vm5169, %v5162, %v5166
        %v5171 = vand.u32 2147483647, %v4964
        %vm5172 = vcmp.eq.f32.partialorder %v5171, 8.507059e+37
        %v5173 = vand.u32 %v4964, 2147483648
        %v5174 = vor.u32 1.1754944e-38, %v5173
        %v5175 = vsel %vm5172, %v5174, %v5170
        %v5176 = vmul.f32 1.0, %v5175
        %v5177 = vrcp.pop %v4965
        %v5178 = vmul.f32 %v4965, %v5177
        %v5179 = vsub.f32 1.0, %v5178
        %v5180 = vmul.f32 %v5177, %v5179
        %v5181 = vadd.f32 %v5177, %v5180
        %vm5182 = vweird.f32 %v4965
        %vm5183 = vweird.f32 %v5177
        %vm5184 = vmor %vm5182, %vm5183
        %v5185 = vsel %vm5184, %v5177, %v5181
        %v5186 = vand.u32 2147483647, %v4965
        %vm5187 = vcmp.eq.f32.partialorder %v5186, 8.507059e+37
        %v5188 = vand.u32 %v4965, 2147483648
        %v5189 = vor.u32 1.1754944e-38, %v5188
        %v5190 = vsel %vm5187, %v5189, %v5185
        %v5191 = vmul.f32 1.0, %v5190
        %v5192 = vrcp.pop %v4966
        %v5193 = vmul.f32 %v4966, %v5192
        %v5194 = vsub.f32 1.0, %v5193
        %v5195 = vmul.f32 %v5192, %v5194
        %v5196 = vadd.f32 %v5192, %v5195
        %vm5197 = vweird.f32 %v4966
        %vm5198 = vweird.f32 %v5192
        %vm5199 = vmor %vm5197, %vm5198
        %v5200 = vsel %vm5199, %v5192, %v5196
        %v5201 = vand.u32 2147483647, %v4966
        %vm5202 = vcmp.eq.f32.partialorder %v5201, 8.507059e+37
        %v5203 = vand.u32 %v4966, 2147483648
        %v5204 = vor.u32 1.1754944e-38, %v5203
        %v5205 = vsel %vm5202, %v5204, %v5200
        %v5206 = vmul.f32 1.0, %v5205
        %v5207 = vmul.f32 %v4887, %v4981
        %v5208 = vmul.f32 %v4888, %v4996
        %v5209 = vmul.f32 %v4889, %v5011
        %v5210 = vmul.f32 %v4890, %v5026
        %v5211 = vmul.f32 %v4891, %v5041
        %v5212 = vmul.f32 %v4892, %v5056
        %v5213 = vmul.f32 %v4893, %v5071
        %v5214 = vmul.f32 %v4894, %v5086
        %v5215 = vmul.f32 %v4895, %v5101
        %v5216 = vmul.f32 %v4896, %v5116
        %v5217 = vmul.f32 %v4897, %v5131
        %v5218 = vmul.f32 %v4898, %v5146
        %v5219 = vmul.f32 %v4899, %v5161
        %v5220 = vmul.f32 %v4900, %v5176
        %v5221 = vmul.f32 %v4901, %v5191
        %v5222 = vmul.f32 %v4902, %v5206
        %v5223 = vpack.c.bf16 %v5211, %v5207
        %v5224 = vpack.c.bf16 %v5212, %v5208
        %v5225 = vpack.c.bf16 %v5213, %v5209
        %v5226 = vpack.c.bf16 %v5214, %v5210
        %v5227 = vpack.c.bf16 %v5219, %v5215
        %v5228 = vpack.c.bf16 %v5220, %v5216
        %v5229 = vpack.c.bf16 %v5221, %v5217
        %v5230 = vpack.c.bf16 %v5222, %v5218
        %v5231 = vld [vmem:[%s6] sm:$0x1]
        %v5232 = vld [vmem:[#allocation2] sm:$0x1]
        %5234 = vset.pattern.permute.xlu0 0
        %5235 = vperm.xlu0 %5234, %v5232
        %v5236 = vpop.permute.xlu0 %5235
        %v5238 = vperm.slane %v5236, 0
        %vm5239 = vcmask 261120
        %v5241 = vsel %vm5239, %v5231, 0
        %5243 = vmatpush.bf16.msra.mxu0 0
        %5244 = vmatpush.bf16.msra.mxu0 0
        %5245 = vmatpush.bf16.msra.mxu0 0
        %5246 = vmatpush.bf16.msra.mxu0 0
        %5247 = vmatpush.bf16.msra.mxu0 0
        %5248 = vmatpush.bf16.msra.mxu0 0
        %5249 = vmatpush.bf16.msra.mxu0 %v5227
        %5250 = vmatpush.bf16.msra.mxu0 %v5223
        %5251 = vmatmul.bf16.gmra.mxu0 %v5241
        %v5252 = vpop.f32.mrf.mxu0
        %v5253 = vadd.f32 %v5238, %v5252
        %v5254 = vpop.f32.mrf.mxu0
        %5255 = vdwg.mxu0
        %5256 = vmatpush.bf16.msra.mxu0 0
        %5257 = vmatpush.bf16.msra.mxu0 0
        %5258 = vmatpush.bf16.msra.mxu0 0
        %5259 = vmatpush.bf16.msra.mxu0 0
        %5260 = vmatpush.bf16.msra.mxu0 0
        %5261 = vmatpush.bf16.msra.mxu0 0
        %5262 = vmatpush.bf16.msra.mxu0 %v5228
        %5263 = vmatpush.bf16.msra.mxu0 %v5224
        %5264 = vmatmul.bf16.gmra.mxu0 %v5241
        %v5265 = vpop.f32.mrf.mxu0
        %v5266 = vadd.f32 %v5238, %v5265
        %v5267 = vpop.f32.mrf.mxu0
        %5268 = vdwg.mxu0
        %5269 = vmatpush.bf16.msra.mxu0 0
        %5270 = vmatpush.bf16.msra.mxu0 0
        %5271 = vmatpush.bf16.msra.mxu0 0
        %5272 = vmatpush.bf16.msra.mxu0 0
        %5273 = vmatpush.bf16.msra.mxu0 0
        %5274 = vmatpush.bf16.msra.mxu0 0
        %5275 = vmatpush.bf16.msra.mxu0 %v5229
        %5276 = vmatpush.bf16.msra.mxu0 %v5225
        %5277 = vmatmul.bf16.gmra.mxu0 %v5241
        %v5278 = vpop.f32.mrf.mxu0
        %v5279 = vadd.f32 %v5238, %v5278
        %v5280 = vpop.f32.mrf.mxu0
        %5281 = vdwg.mxu0
        %5282 = vmatpush.bf16.msra.mxu0 0
        %5283 = vmatpush.bf16.msra.mxu0 0
        %5284 = vmatpush.bf16.msra.mxu0 0
        %5285 = vmatpush.bf16.msra.mxu0 0
        %5286 = vmatpush.bf16.msra.mxu0 0
        %5287 = vmatpush.bf16.msra.mxu0 0
        %5288 = vmatpush.bf16.msra.mxu0 %v5230
        %5289 = vmatpush.bf16.msra.mxu0 %v5226
        %5290 = vmatmul.bf16.gmra.mxu0 %v5241
        %v5291 = vpop.f32.mrf.mxu0
        %v5292 = vadd.f32 %v5238, %v5291
        %v5293 = vpop.f32.mrf.mxu0
        %5294 = vdwg.mxu0
        %v5299 = vrot.slane %v5266, 7
        %v5300 = vrot.slane %v5279, 6
        %v5301 = vrot.slane %v5292, 5
        %vm5302 = vcmask 1040384
        %v5303 = vsel %vm5302, %v5253, %v5299
        %vm5304 = vcmask 1042434
        %v5305 = vsel %vm5304, %v5300, %v5301
        %vm5306 = vcmask 1041408
        %v5307 = vsel %vm5306, %v5303, %v5305
        %v5309 = vlaneseq
        %vm5310 = vcmp.ge.s32.totalorder %v5309, 0
        %vm5311 = vcmp.lt.s32.totalorder %v5309, 512
        %vm5312 = vmand %vm5310, %vm5311
        %5313 = vst.msk [vmem:[%s344] sm:$0xf] %vm5312, %v5307
        %s5314 = sand.u32 %s209, 1
        %s5315 = scalar_lea.sflag [#allocation5], %s5314
        %s5316 = sand.u32 %s209, 1
        %s5317 = smul.addr %s5316, 4
        %s5318 = scalar_lea.vmem [#allocation8], %s5317
        // Predicated region
        $region61: #{tpu_custom_call.1} parent=51 // pred_check
          %p5319 = pneg %p219
        $region62: #{tpu_custom_call.1} parent=51 // pred_check_branch
          %5321 = sbr.rel (%p5319) target = $region64
        $region63: #{tpu_custom_call.1} parent=51 // pred_region
          %s5322 = smul.u32 4, %s28
          %5324 = vsyncadd %s5315, 0
          %s5325 = scalar_lea.hbm %s8, %s5322
          %s5327 = sshll.u32 %s5318, 4
          %s5328 = int_to_ptr.vmem [resolvable:$true] %s5327
          %s5329 = sshll.u32 %s5325, 4
          %s5330 = int_to_ptr.hbm [resolvable:$true] %s5329
          %5332 = dma.vmem_to_hbm [thread:$0]  %s5328, 64, %s5330, %s5315
        $region64: #{tpu_custom_call.1} parent=51 // pred_fallthru
          _
      $region52: #{tpu_custom_call.1} parent=5 // pred_fallthru
        _
      %p5333 = scmp.le.s32.totalorder 2, %s23
      // Predicated region
      $region65: #{tpu_custom_call.1} parent=5 // pred_check
        %p5334 = pneg %p5333
      $region66: #{tpu_custom_call.1} parent=5 // pred_check_branch
        %5336 = sbr.rel (%p5334) target = $region68
      $region67: #{tpu_custom_call.1} parent=5 // pred_region
        %s5337 = ssub.s32 %s23, 2
        // Predicated region
        $region69: #{tpu_custom_call.1} parent=67 // pred_check
          %p5338 = pneg %p225
        $region70: #{tpu_custom_call.1} parent=67 // pred_check_branch
          %5340 = sbr.rel (%p5338) target = $region72
        $region71: #{tpu_custom_call.1} parent=67 // pred_region
          %s5341 = sand.u32 %s210, 1
          %s5342 = scalar_lea.sflag [#allocation5], %s5341
          %s5343 = sand.u32 %s210, 1
          %s5344 = smul.addr %s5343, 4
          %s5345 = scalar_lea.vmem [#allocation8], %s5344
          %5347 = dma.done %s5342, 64
        $region72: #{tpu_custom_call.1} parent=67 // pred_fallthru
          _
      $region68: #{tpu_custom_call.1} parent=5 // pred_fallthru
        _
    $region6: #{tpu_custom_call.1} parent=1 // loop_footer
      %s27 = sadd.s32 1, %s23
    $region7: #{tpu_custom_call.1} parent=1 // loop_footer_branch
      %22 = sbr.rel target = $region3
    $region8: #{tpu_custom_call.1} parent=1 // loop_exit
      _
    %5348 = vsyncpa [#allocation4], 1
    %s5349 = scalar_lea.sflag [#allocation4], 1
    %5350 = vsyncpa %s5349, 1
    %5351 = vsyncpa [#allocation7], 1
    %5352 = vsyncpa [#allocation5], 1
    %s5353 = scalar_lea.sflag [#allocation5], 1
    %5354 = vsyncpa %s5353, 1

</llo_original>
